<compile_context>
chip_gen: v5e
topology: v5e:2x2
jax: 0.10.0
libtpu: 0.0.40
codegen_flags: <defaults>
</compile_context>

<pallas_src>
import functools
import math

import numpy as np
import jax
import jax.numpy as jnp
from jax.experimental import pallas as pl
from jax.experimental.pallas import tpu as pltpu


# ----------------------- host-side (trace-time) constant construction -----------------------

def _povey_window(N):
    n = np.arange(N, dtype=np.float64)
    a = 2.0 * math.pi / N
    return np.power(0.5 - 0.5 * np.cos(a * n), 0.85)


def _kaldi_mel_fbank(num_filters, fft_length, fs, low_freq, high_freq):
    """Kaldi-style triangular mel filterbank, shape (fft_length//2+1, num_filters)."""
    if high_freq <= 0:
        high_freq = fs / 2.0 + high_freq

    def mel(f):
        return 1127.0 * np.log(1.0 + np.asarray(f, np.float64) / 700.0)

    mel_low, mel_high = mel(low_freq), mel(high_freq)
    mel_delta = (mel_high - mel_low) / (num_filters + 1)
    nfreq = fft_length // 2 + 1
    fft_mels = mel(np.arange(nfreq, dtype=np.float64) * fs / fft_length)
    fb = np.zeros((nfreq, num_filters), dtype=np.float64)
    for j in range(num_filters):
        left = mel_low + j * mel_delta
        center = left + mel_delta
        right = center + mel_delta
        up = (fft_mels - left) / (center - left)
        down = (right - fft_mels) / (right - center)
        fb[:, j] = np.maximum(0.0, np.minimum(up, down))
    return fb


def _dct_matrix(num_ceps, num_filters):
    n = np.arange(num_filters, dtype=np.float64)[:, None]
    k = np.arange(num_ceps, dtype=np.float64)[None, :]
    dct = np.cos(math.pi / float(num_filters) * (n + 0.5) * k)
    dct[:, 0] *= 1.0 / math.sqrt(2.0)
    dct *= math.sqrt(2.0 / float(num_filters))
    return dct


def _lifter_vec(num_ceps, Q):
    if Q == 0:
        return np.ones((num_ceps,), dtype=np.float64)
    return 1.0 + 0.5 * Q * np.sin(math.pi * np.arange(num_ceps, dtype=np.float64) / Q)


def _folded_rdft_matrix(N, fft_length, n_freq, window, preemph):
    """(N+1, 2*n_freq) matrix A such that, for the contiguous extended frame row
         e = [x_{-1}, x_0, ..., x_{N-1}]        (x_{-1} = sample just before the frame),
       e @ A == concat(Re rfft(window * preemph(x), fft_length)[:n_freq],
                       Im rfft(window * preemph(x), fft_length)[:n_freq]).
       Pre-emphasis (incl. the frame-boundary sample, i.e. torch's whole-waveform
       replicate-pad semantics), the povey window and the zero-padded real DFT are all
       folded into one matrix -> a single MXU matmul in the kernel."""
    n = np.arange(N, dtype=np.float64)[:, None]
    k = np.arange(n_freq, dtype=np.float64)[None, :]
    ang = 2.0 * math.pi * n * k / float(fft_length)
    C = np.concatenate([np.cos(ang), -np.sin(ang)], axis=1)      # (N, 2F)
    W = window[:, None] * C                                      # w[m] * C[m, :]
    A = np.zeros((N + 1, 2 * n_freq), dtype=np.float64)
    # frame sample m = w[m] * (e[m+1] - preemph * e[m])
    A[1:] = W                                                    # e[j] as the "+x_m" term (m=j-1)
    if preemph != 0.0:
        A[:N] -= preemph * W                                     # e[j] as the "-p*x_m" term (m=j)
    return A


# ------------------------------------ Pallas kernel ------------------------------------

def _mfcc_kernel(*refs, n_freq, use_fft_mag, use_energy):
    if use_energy:
        frm_ref, loge_ref, dft_ref, fb_ref, dct_ref, out_ref = refs
    else:
        frm_ref, dft_ref, fb_ref, dct_ref, out_ref = refs
        loge_ref = None

    # Pre-emphasis + povey window + zero-padded rFFT, all folded into dft_ref:
    # one (TILE, N+1) x (N+1, 2F) MXU matmul (bf16 operands by default, f32 accumulation).
    y = jnp.dot(frm_ref[...], dft_ref[...], preferred_element_type=jnp.float32)   # (TILE, 2F)
    re = y[:, :n_freq]
    im = y[:, n_freq:]
    spec = re * re + im * im                                                       # |X|^2
    if use_fft_mag:
        spec = jnp.sqrt(spec)                                                      # |X|

    # Mel filterbank in the MXU dtype (bf16 by default), log, then the tiny DCT
    # (lifter pre-folded) in f32.
    mel = jnp.log(jnp.dot(spec.astype(fb_ref.dtype), fb_ref[...],
                          preferred_element_type=jnp.float32) + 1e-10)
    mfcc = jnp.dot(mel, dct_ref[...], preferred_element_type=jnp.float32)          # (TILE, C)

    out_ref[...] = mfcc
    if use_energy:
        # Intended Kaldi semantics: replace C0 with the raw log-energy per frame.
        # Direct 1-lane column store (replaces the old full-tile iota + where select).
        out_ref[:, 0:1] = loge_ref[...]


# --------------------------------------- module ---------------------------------------

class Wav2MFCC:
    def __init__(self, fs=16000, frame_length=25, frame_shift=10, fft_length=512,
                 remove_dc_offset=True, preemph_coeff=0.97, window_type='povey',
                 use_fft_mag=False, dither=1.0, fb_type='mel_kaldi',
                 low_freq=20, high_freq=0, num_filters=23, norm_filters=False,
                 num_ceps=13, snip_edges=True, center=False, cepstral_lifter=22,
                 energy_floor=0, raw_energy=True, use_energy=True,
                 tile_rows=2048, mxu_bf16=True):
        assert snip_edges and not center, "only snip_edges=True / center=False implemented"
        # TODO(synk): snip_edges=False / center=True reflection-padded framing not implemented.
        assert window_type == 'povey', "only the default povey window implemented"
        assert fb_type == 'mel_kaldi' and not norm_filters, "only default mel_kaldi fbank implemented"
        # TODO(synk): other window types / filterbank types / norm_filters not implemented.
        assert raw_energy or not use_energy, "only raw_energy=True supported with use_energy"
        # TODO(synk): raw_energy=False (post-window) log-energy path not implemented.

        self.fs = fs
        self.N = int(math.floor(frame_length * fs / 1000))
        self.shift = int(math.floor(frame_shift * fs / 1000))
        assert self.N <= fft_length, "frame length must fit in fft_length"
        self.fft_length = fft_length
        self.remove_dc_offset = remove_dc_offset
        self.preemph_coeff = float(preemph_coeff)
        self.dither = float(dither)
        self.use_fft_mag = use_fft_mag
        self.num_filters = num_filters
        self.num_ceps = num_ceps
        self.use_energy = use_energy
        self.tile_rows = int(tile_rows)
        self.mxu_dtype = jnp.bfloat16 if mxu_bf16 else jnp.float32
        # NOTE: Wav2FFT hard-codes energy_floor=0 into Wav2Win, so (matching torch) the
        # user-supplied energy_floor is not applied to the framing-stage log-energy.

        window = _povey_window(self.N)
        fb_full = _kaldi_mel_fbank(num_filters, fft_length, fs, low_freq, high_freq)
        # Drop the Nyquist bin when it carries no mel weight (true for the default
        # high_freq == fs/2): the rDFT output becomes a lane-exact 2*256 = 512 columns.
        if np.all(fb_full[-1] == 0.0):
            fb_full = fb_full[:-1]
        self.n_freq = fb_full.shape[0]

        dft = _folded_rdft_matrix(self.N, fft_length, self.n_freq, window, self.preemph_coeff)
        dct = _dct_matrix(num_ceps, num_filters)
        if cepstral_lifter > 0:
            dct = dct * _lifter_vec(num_ceps, cepstral_lifter)[None, :]      # fold lifter

        # Constant operands: constant index_map -> fetched once by the pipeline; total
        # footprint <1 MiB even double-buffered, so no Buffered(1) override is needed.
        self.dft = jnp.asarray(dft, dtype=self.mxu_dtype)                    # (N+1, 2F)
        self.fb = jnp.asarray(fb_full, dtype=self.mxu_dtype)                 # (F, M)  bf16 matmul
        self.dct = jnp.asarray(dct, dtype=jnp.float32)                       # (M, C)  f32

        self._forward_jit = jax.jit(self._forward)

    # ----------------------------------- forward -----------------------------------

    def _forward(self, x, key):
        x = jnp.asarray(x, jnp.float32)
        B, S = x.shape
        N, shift = self.N, self.shift
        assert S >= N, "waveform shorter than one frame"

        if self.dither != 0.0:
            assert key is not None, "dither > 0 requires a PRNG key"
            x = x + self.dither * jax.random.normal(key, x.shape, x.dtype)
        if self.remove_dc_offset:
            x = x - jnp.mean(x, axis=1, keepdims=True)

        # ---- framing without a gather: chunk reshape + static slices + lane concat ----
        T = 1 + (S - N) // shift                       # snip_edges frame count
        c = -(-(N + 1) // shift)                       # chunks spanned by one (N+1) window
        rem = (N + 1) - (c - 1) * shift
        target = (T + c - 1) * shift
        # x_ext[i] = x[i-1] with replicate pad at i=0 (torch's replicate-pad pre-emphasis).
        x_ext = jnp.concatenate([x[:, :1], x], axis=1)                        # (B, S+1)
        if target > S + 1:
            x_ext = jnp.pad(x_ext, ((0, 0), (0, target - (S + 1))))          # zeros never read
        else:
            x_ext = x_ext[:, :target]
        chunks = x_ext.reshape(B, T + c - 1, shift)
        parts = [chunks[:, k:k + T] for k in range(c - 1)]
        parts.append(chunks[:, c - 1:c - 1 + T, :rem])
        # frame row t = x_ext[t*shift : t*shift + N + 1] = [x_{-1}, x_0, ..., x_{N-1}]
        frames_ext = jnp.concatenate(parts, axis=-1)                          # (B, T, N+1) f32

        R = B * T
        NP1 = N + 1
        Cc = self.num_ceps

        loge = None
        if self.use_energy:
            # Kaldi raw_energy=True: log-energy of the un-preemphasized, un-windowed frame,
            # computed here in exact f32 (before the bf16 cast of the frames).
            raw = frames_ext[..., 1:]
            loge = jnp.log(jnp.sum(raw * raw, axis=-1, keepdims=True) + 1e-15)
            loge = loge.reshape(R, 1)

        frames = frames_ext.astype(self.mxu_dtype).reshape(R, NP1)            # kernel LHS (bf16)

        # Row tile: big enough to amortize the ~0.35 us per-grid-step overhead, a multiple
        # of 16 (bf16 sublane packing) and capped at ceil(R/2) so the grid has >= 2 steps
        # (keeps both v7x TensorCores busy through the "parallel" grid axis).
        half = -(-R // 2)
        half = -(-half // 16) * 16
        tile = max(16, (min(self.tile_rows, half) // 16) * 16)
        grid = (pl.cdiv(R, tile),)

        kernel = functools.partial(
            _mfcc_kernel, n_freq=self.n_freq,
            use_fft_mag=self.use_fft_mag, use_energy=self.use_energy)

        in_specs = [pl.BlockSpec((tile, NP1), lambda r: (r, 0))]              # frames
        operands = [frames]
        if self.use_energy:
            in_specs.append(pl.BlockSpec((tile, 1), lambda r: (r, 0)))        # raw log-energy
            operands.append(loge)
        in_specs += [
            pl.BlockSpec((NP1, 2 * self.n_freq), lambda r: (0, 0)),           # folded rDFT
            pl.BlockSpec((self.n_freq, self.num_filters), lambda r: (0, 0)),  # mel fbank
            pl.BlockSpec((self.num_filters, Cc), lambda r: (0, 0)),           # DCT * lifter
        ]
        operands += [self.dft, self.fb, self.dct]

        compiler_kwargs = dict(dimension_semantics=("parallel",))
        if tile > 1024:
            # Large row tiles can exceed v5e's 16 MiB scoped-VMEM default; raise it with
            # headroom (still far below v7x's 64 MiB physical VMEM).
            compiler_kwargs["vmem_limit_bytes"] = 40 * 1024 * 1024

        mfcc = pl.pallas_call(
            kernel,
            out_shape=jax.ShapeDtypeStruct((R, Cc), jnp.float32),
            grid_spec=pltpu.PrefetchScalarGridSpec(
                num_scalar_prefetch=0,
                grid=grid,
                in_specs=in_specs,
                out_specs=pl.BlockSpec((tile, Cc), lambda r: (r, 0)),
            ),
            compiler_params=pltpu.CompilerParams(**compiler_kwargs),
        )(*operands)

        return mfcc.reshape(B, T, Cc)

    def __call__(self, x, key=None):
        return self._forward_jit(x, key)


# ---------------------------------------- demo ----------------------------------------

if __name__ == "__main__":
    key = jax.random.PRNGKey(0)
    k_wav, k_dith = jax.random.split(key)

    batch = 3
    num_samples = 16000          # 1 s @ 16 kHz -> 98 frames/utt, 294 rows -> 2 grid steps
    x = 0.1 * jax.random.normal(k_wav, (batch, num_samples), jnp.float32)

    model = Wav2MFCC()           # defaults: dither=1, use_energy=True, bf16 MXU operands
    y = model(x, key=k_dith)
    jax.block_until_ready(y)

    expected_T = 1 + (num_samples - model.N) // model.shift
    assert y.shape == (batch, expected_T, model.num_ceps) and y.dtype == jnp.float32
    assert bool(jnp.all(jnp.isfinite(y)))
    print("KERNEL_OK")
</pallas_src>

<mosaic_0001>
module attributes {stable_mosaic.version = 11 : i64} {
  func.func @_mfcc_kernel(%arg0: i32, %arg1: memref<160x401xbf16, #tpu.memory_space<vmem>>, %arg2: memref<160x1xf32, #tpu.memory_space<vmem>>, %arg3: memref<401x514xbf16, #tpu.memory_space<vmem>>, %arg4: memref<257x23xbf16, #tpu.memory_space<vmem>>, %arg5: memref<23x13xf32, #tpu.memory_space<vmem>>, %arg6: memref<160x13xf32, #tpu.memory_space<vmem>>) attributes {dimension_semantics = [#tpu.dimension_semantics<parallel>], iteration_bounds = array<i64: 2>, scalar_prefetch = 0 : i64, scratch_operands = 0 : i64, tpu.core_type = #tpu.core_type<tc>, window_params = [{transform_indices = @transform_0, window_bounds = array<i64: 160, 401>}, {transform_indices = @transform_1, window_bounds = array<i64: 160, 1>}, {pipeline_mode = #tpu.pipeline_mode<synchronous>, transform_indices = @transform_2, window_bounds = array<i64: 401, 514>}, {pipeline_mode = #tpu.pipeline_mode<synchronous>, transform_indices = @transform_3, window_bounds = array<i64: 257, 23>}, {pipeline_mode = #tpu.pipeline_mode<synchronous>, transform_indices = @transform_4, window_bounds = array<i64: 23, 13>}, {transform_indices = @transform_5, window_bounds = array<i64: 160, 13>}]} {
    %c0 = arith.constant 0 : index
    %c0_0 = arith.constant 0 : index
    %0 = vector.load %arg1[%c0, %c0_0] : memref<160x401xbf16, #tpu.memory_space<vmem>>, vector<160x401xbf16>
    %c0_1 = arith.constant 0 : index
    %c0_2 = arith.constant 0 : index
    %1 = vector.load %arg3[%c0_1, %c0_2] : memref<401x514xbf16, #tpu.memory_space<vmem>>, vector<401x514xbf16>
    %cst = arith.constant dense<0.000000e+00> : vector<160x514xf32>
    %2 = tpu.matmul %0, %1, %cst {dimension_numbers = #tpu.dot_dimension_numbers<[1], [0], [0], [1], [0, 0, 1, 1], [], []>} : vector<160x401xbf16>, vector<401x514xbf16>, vector<160x514xf32> -> vector<160x514xf32>
    %3 = vector.extract_strided_slice %2 {offsets = [0, 0], sizes = [160, 257], strides = [1, 1]} : vector<160x514xf32> to vector<160x257xf32>
    %4 = vector.extract_strided_slice %2 {offsets = [0, 257], sizes = [160, 257], strides = [1, 1]} : vector<160x514xf32> to vector<160x257xf32>
    %5 = arith.mulf %3, %3 : vector<160x257xf32>
    %6 = arith.mulf %4, %4 : vector<160x257xf32>
    %7 = arith.addf %5, %6 : vector<160x257xf32>
    %8 = arith.truncf %7 : vector<160x257xf32> to vector<160x257xbf16>
    %c0_3 = arith.constant 0 : index
    %c0_4 = arith.constant 0 : index
    %9 = vector.load %arg4[%c0_3, %c0_4] : memref<257x23xbf16, #tpu.memory_space<vmem>>, vector<257x23xbf16>
    %cst_5 = arith.constant dense<0.000000e+00> : vector<160x23xf32>
    %10 = tpu.matmul %8, %9, %cst_5 {dimension_numbers = #tpu.dot_dimension_numbers<[1], [0], [0], [1], [0, 0, 1, 1], [], []>} : vector<160x257xbf16>, vector<257x23xbf16>, vector<160x23xf32> -> vector<160x23xf32>
    %cst_6 = arith.constant 1.000000e-10 : f32
    %11 = vector.broadcast %cst_6 : f32 to vector<160x23xf32>
    %12 = arith.addf %10, %11 : vector<160x23xf32>
    %13 = math.log %12 : vector<160x23xf32>
    %c0_7 = arith.constant 0 : index
    %c0_8 = arith.constant 0 : index
    %14 = vector.load %arg5[%c0_7, %c0_8] : memref<23x13xf32, #tpu.memory_space<vmem>>, vector<23x13xf32>
    %cst_9 = arith.constant dense<0.000000e+00> : vector<160x13xf32>
    %15 = tpu.matmul %13, %14, %cst_9 {dimension_numbers = #tpu.dot_dimension_numbers<[1], [0], [0], [1], [0, 0, 1, 1], [], []>} : vector<160x23xf32>, vector<23x13xf32>, vector<160x13xf32> -> vector<160x13xf32>
    %c0_10 = arith.constant 0 : index
    %c0_11 = arith.constant 0 : index
    %16 = vector.load %arg6[%c0_10, %c0_11] : memref<160x13xf32, #tpu.memory_space<vmem>>, vector<160x13xf32>
    tpu.vector_store %arg6[%c0_10, %c0_11], %15 {strides = array<i32>} : memref<160x13xf32, #tpu.memory_space<vmem>>, vector<160x13xf32>,
    %c0_12 = arith.constant 0 : index
    %c0_13 = arith.constant 0 : index
    %17 = vector.load %arg2[%c0_12, %c0_13] : memref<160x1xf32, #tpu.memory_space<vmem>>, vector<160x1xf32>
    %c0_14 = arith.constant 0 : index
    %c0_15 = arith.constant 0 : index
    %18 = vector.load %arg6[%c0_14, %c0_15] : memref<160x13xf32, #tpu.memory_space<vmem>>, vector<160x1xf32>
    tpu.vector_store %arg6[%c0_14, %c0_15], %17 {strides = array<i32>} : memref<160x13xf32, #tpu.memory_space<vmem>>, vector<160x1xf32>,
    return
  }
  func.func @transform_0(%arg0: i32) -> (i32, i32) {
    %c0_i32 = arith.constant 0 : i32
    %c0_i32_0 = arith.constant 0 : i32
    return %arg0, %c0_i32 : i32, i32
  }
  func.func @transform_1(%arg0: i32) -> (i32, i32) {
    %c0_i32 = arith.constant 0 : i32
    %c0_i32_0 = arith.constant 0 : i32
    return %arg0, %c0_i32 : i32, i32
  }
  func.func @transform_2(%arg0: i32) -> (i32, i32) {
    %c0_i32 = arith.constant 0 : i32
    %c0_i32_0 = arith.constant 0 : i32
    %c0_i32_1 = arith.constant 0 : i32
    return %c0_i32, %c0_i32_0 : i32, i32
  }
  func.func @transform_3(%arg0: i32) -> (i32, i32) {
    %c0_i32 = arith.constant 0 : i32
    %c0_i32_0 = arith.constant 0 : i32
    %c0_i32_1 = arith.constant 0 : i32
    return %c0_i32, %c0_i32_0 : i32, i32
  }
  func.func @transform_4(%arg0: i32) -> (i32, i32) {
    %c0_i32 = arith.constant 0 : i32
    %c0_i32_0 = arith.constant 0 : i32
    %c0_i32_1 = arith.constant 0 : i32
    return %c0_i32, %c0_i32_0 : i32, i32
  }
  func.func @transform_5(%arg0: i32) -> (i32, i32) {
    %c0_i32 = arith.constant 0 : i32
    %c0_i32_0 = arith.constant 0 : i32
    return %arg0, %c0_i32 : i32, i32
  }
}

</mosaic_0001>

<llo_original>
// kernel: _forward.1
$region0: #{_forward.1}
  #allocation0 [shape = 'u32[]', space=smem, size = 0x4, offset = 0x4, fixed_abs, tag = 'smem constant byte address 0x4 - core index']
  #allocation1 [shape = 'u32[72,128]{1,0:T(1,128)}', space=vmem, size = 0x9000, scoped, tag = 'internal scratch']
  %s0 = inlined_call_operand.vmem [shape: bf16[294,401], index: 0, kind: input, shape index: {}]
  %s1 = inlined_call_operand.vmem [shape: f32[294,1], index: 1, kind: input, shape index: {}]
  %s2 = inlined_call_operand.vmem [shape: bf16[401,514], index: 2, kind: input, shape index: {}]
  %s3 = inlined_call_operand.vmem [shape: bf16[257,23], index: 3, kind: input, shape index: {}]
  %s4 = inlined_call_operand.vmem [shape: f32[23,13], index: 4, kind: input, shape index: {}]
  %s5 = inlined_call_operand.vmem [shape: f32[294,13], index: 5, kind: output, shape index: {}]
  %s6 = sld [smem:[#allocation0]]
  $region101: #{_forward.1} parent=0
    _
  %s8 = ssub.s32 1, %s6
  %s9 = scalar_select 0, %s8, %s6
  $region1: #{_forward.1} parent=0
    #allocation2 [shape = 'u8[163840]{0}', space=vmem, size = 0x28000, scoped, tag = 'output window, operand 0']
    loop: start=0, step=1, limit=4
    $region2: #{_forward.1} parent=1 // loop_pre_header
      _
    $region3: #{_forward.1} parent=1 // loop_header
      %s11 = sphi 0, %s15
      %p12 = scmp.ge.s32.totalorder %s11, 4
      %s21 = sphi 0, %s23
      %s24 = sphi 0, %s21
      %s25 = sphi 0, %s24
      %s41 = sphi 0, %s25
      %s47 = sphi 0, %s49
      %s50 = sphi 0, %s47
      %s51 = sphi 0, %s50
      %s67 = sphi 0, %s51
      %s71 = sphi 0, %s71
      %s73 = sphi 0, %s71
      %s74 = sphi 0, %s73
      %s88 = sphi 0, %s74
      %s92 = sphi 0, %s92
      %s94 = sphi 0, %s92
      %s95 = sphi 0, %s94
      %s109 = sphi 0, %s95
      %s113 = sphi 0, %s113
      %s115 = sphi 0, %s113
      %s116 = sphi 0, %s115
      %s130 = sphi 0, %s116
      %s136 = sphi 0, %s138
      %s139 = sphi 0, %s136
      %s140 = sphi 0, %s139
      %s156 = sphi 0, %s140
    $region4: #{_forward.1} parent=1 // loop_header_branch
      %14 = sbr.rel (%p12) target = $region8
    $region5: #{_forward.1} parent=1 // loop_body
      %s16 = ssub.s32 %s11, 1
      %s17 = ssub.s32 %s11, 2
      %s18 = sadd.s32 %s11, 1
      %s19 = ssub.s32 %s11, %s18
      %p20 = scmp.eq.s32.totalorder %s19, 0
      %s22 = sadd.s32 %s21, 1
      %s23 = scalar_select %p20, %s21, %s22
      %p26 = pneg %p20
      %p27 = scmp.eq.s32.totalorder %s11, 1
      %p28 = por %p26, %p27
      %p29 = scmp.ne.s32.totalorder %s21, %s24
      %p30 = scmp.eq.s32.totalorder %s11, 0
      %p31 = por %p29, %p30
      %p32 = scmp.ne.s32.totalorder %s21, %s24
      %p33 = scmp.eq.s32.totalorder %s16, 1
      %p34 = por %p32, %p33
      %p35 = scmp.ne.s32.totalorder %s24, %s25
      %p36 = scmp.eq.s32.totalorder %s16, 0
      %p37 = por %p35, %p36
      %p38 = scmp.ne.s32.totalorder %s24, %s25
      %p39 = scmp.eq.s32.totalorder %s17, 1
      %p40 = por %p38, %p39
      %p42 = scmp.ne.s32.totalorder %s25, %s41
      %p43 = scmp.eq.s32.totalorder %s17, 0
      %p44 = por %p42, %p43
      %s45 = ssub.s32 %s11, %s18
      %p46 = scmp.eq.s32.totalorder %s45, 0
      %s48 = sadd.s32 %s47, 1
      %s49 = scalar_select %p46, %s47, %s48
      %p52 = pneg %p46
      %p53 = scmp.eq.s32.totalorder %s11, 1
      %p54 = por %p52, %p53
      %p55 = scmp.ne.s32.totalorder %s47, %s50
      %p56 = scmp.eq.s32.totalorder %s11, 0
      %p57 = por %p55, %p56
      %p58 = scmp.ne.s32.totalorder %s47, %s50
      %p59 = scmp.eq.s32.totalorder %s16, 1
      %p60 = por %p58, %p59
      %p61 = scmp.ne.s32.totalorder %s50, %s51
      %p62 = scmp.eq.s32.totalorder %s16, 0
      %p63 = por %p61, %p62
      %p64 = scmp.ne.s32.totalorder %s50, %s51
      %p65 = scmp.eq.s32.totalorder %s17, 1
      %p66 = por %p64, %p65
      %p68 = scmp.ne.s32.totalorder %s51, %s67
      %p69 = scmp.eq.s32.totalorder %s17, 0
      %p70 = por %p68, %p69
      %s72 = sadd.s32 %s71, 1
      %p75 = scmp.eq.s32.totalorder %s11, 1
      %p76 = scmp.ne.s32.totalorder %s71, %s73
      %p77 = scmp.eq.s32.totalorder %s11, 0
      %p78 = por %p76, %p77
      %p79 = scmp.ne.s32.totalorder %s71, %s73
      %p80 = scmp.eq.s32.totalorder %s16, 1
      %p81 = por %p79, %p80
      %p82 = scmp.ne.s32.totalorder %s73, %s74
      %p83 = scmp.eq.s32.totalorder %s16, 0
      %p84 = por %p82, %p83
      %p85 = scmp.ne.s32.totalorder %s73, %s74
      %p86 = scmp.eq.s32.totalorder %s17, 1
      %p87 = por %p85, %p86
      %p89 = scmp.ne.s32.totalorder %s74, %s88
      %p90 = scmp.eq.s32.totalorder %s17, 0
      %p91 = por %p89, %p90
      %s93 = sadd.s32 %s92, 1
      %p96 = scmp.eq.s32.totalorder %s11, 1
      %p97 = scmp.ne.s32.totalorder %s92, %s94
      %p98 = scmp.eq.s32.totalorder %s11, 0
      %p99 = por %p97, %p98
      %p100 = scmp.ne.s32.totalorder %s92, %s94
      %p101 = scmp.eq.s32.totalorder %s16, 1
      %p102 = por %p100, %p101
      %p103 = scmp.ne.s32.totalorder %s94, %s95
      %p104 = scmp.eq.s32.totalorder %s16, 0
      %p105 = por %p103, %p104
      %p106 = scmp.ne.s32.totalorder %s94, %s95
      %p107 = scmp.eq.s32.totalorder %s17, 1
      %p108 = por %p106, %p107
      %p110 = scmp.ne.s32.totalorder %s95, %s109
      %p111 = scmp.eq.s32.totalorder %s17, 0
      %p112 = por %p110, %p111
      %s114 = sadd.s32 %s113, 1
      %p117 = scmp.eq.s32.totalorder %s11, 1
      %p118 = scmp.ne.s32.totalorder %s113, %s115
      %p119 = scmp.eq.s32.totalorder %s11, 0
      %p120 = por %p118, %p119
      %p121 = scmp.ne.s32.totalorder %s113, %s115
      %p122 = scmp.eq.s32.totalorder %s16, 1
      %p123 = por %p121, %p122
      %p124 = scmp.ne.s32.totalorder %s115, %s116
      %p125 = scmp.eq.s32.totalorder %s16, 0
      %p126 = por %p124, %p125
      %p127 = scmp.ne.s32.totalorder %s115, %s116
      %p128 = scmp.eq.s32.totalorder %s17, 1
      %p129 = por %p127, %p128
      %p131 = scmp.ne.s32.totalorder %s116, %s130
      %p132 = scmp.eq.s32.totalorder %s17, 0
      %p133 = por %p131, %p132
      %s134 = ssub.s32 %s11, %s18
      %p135 = scmp.eq.s32.totalorder %s134, 0
      %s137 = sadd.s32 %s136, 1
      %s138 = scalar_select %p135, %s136, %s137
      %p141 = pneg %p135
      %p142 = scmp.eq.s32.totalorder %s11, 1
      %p143 = por %p141, %p142
      %p144 = scmp.ne.s32.totalorder %s136, %s139
      %p145 = scmp.eq.s32.totalorder %s11, 0
      %p146 = por %p144, %p145
      %p147 = scmp.ne.s32.totalorder %s136, %s139
      %p148 = scmp.eq.s32.totalorder %s16, 1
      %p149 = por %p147, %p148
      %p150 = scmp.ne.s32.totalorder %s139, %s140
      %p151 = scmp.eq.s32.totalorder %s16, 0
      %p152 = por %p150, %p151
      %p153 = scmp.ne.s32.totalorder %s139, %s140
      %p154 = scmp.eq.s32.totalorder %s17, 1
      %p155 = por %p153, %p154
      %p157 = scmp.ne.s32.totalorder %s140, %s156
      %p158 = scmp.eq.s32.totalorder %s17, 0
      %p159 = por %p157, %p158
      %p160 = scmp.le.s32.totalorder 1, %s11
      %p161 = scmp.lt.s32.totalorder %s11, 3
      %p162 = pnand %p160, %p161
      %p163 = pneg %p162
      // Predicated region
      $region9: #{_forward.1} parent=5 // pred_check
        _
      $region10: #{_forward.1} parent=5 // pred_check_branch
        %165 = sbr.rel (%p162) target = $region12
      $region11: #{_forward.1} parent=5 // pred_region
        %s166 = ssub.s32 %s11, 1
        // Predicated region
        $region13: #{_forward.1} parent=11 // pred_check
          %p167 = pneg %p84
        $region14: #{_forward.1} parent=11 // pred_check_branch
          %169 = sbr.rel (%p167) target = $region16
        $region15: #{_forward.1} parent=11 // pred_region
          _
        $region16: #{_forward.1} parent=11 // pred_fallthru
          _
        // Predicated region
        $region17: #{_forward.1} parent=11 // pred_check
          %p170 = pneg %p105
        $region18: #{_forward.1} parent=11 // pred_check_branch
          %172 = sbr.rel (%p170) target = $region20
        $region19: #{_forward.1} parent=11 // pred_region
          _
        $region20: #{_forward.1} parent=11 // pred_fallthru
          _
        // Predicated region
        $region21: #{_forward.1} parent=11 // pred_check
          %p173 = pneg %p126
        $region22: #{_forward.1} parent=11 // pred_check_branch
          %175 = sbr.rel (%p173) target = $region24
        $region23: #{_forward.1} parent=11 // pred_region
          _
        $region24: #{_forward.1} parent=11 // pred_fallthru
          _
      $region12: #{_forward.1} parent=5 // pred_fallthru
        _
      %p176 = scmp.lt.s32.totalorder %s11, 2
      // Predicated region
      $region25: #{_forward.1} parent=5 // pred_check
        %p177 = pneg %p176
      $region26: #{_forward.1} parent=5 // pred_check_branch
        %179 = sbr.rel (%p177) target = $region28
      $region27: #{_forward.1} parent=5 // pred_region
        // Predicated region
        $region29: #{_forward.1} parent=27 // pred_check
          %p180 = pneg %p31
        $region30: #{_forward.1} parent=27 // pred_check_branch
          %182 = sbr.rel (%p180) target = $region32
        $region31: #{_forward.1} parent=27 // pred_region
          %s183 = smul.u32 20, %s11
          %s184 = ssub.s32 37, %s183
          %p185 = scmp.lt.s32.totalorder %s184, 20
          %s186 = scalar_select %p185, %s184, 20
          %s187 = smul.u32 4, %s186
          %s188 = smul.u32 %s187, 4
          %p189 = scmp.lt.s32.totalorder %s183, 36
          %s190 = scalar_select %p189, %s183, 36
          %s191 = smul.addr %s190, 4
          %s192 = smul.addr %s191, 4
          %s193 = scalar_lea.vmem %s0, %s192
          %s194 = smul.u32 20, %s11
          %s195 = ssub.s32 37, %s194
          %p196 = scmp.lt.s32.totalorder %s195, 20
          %s197 = scalar_select %p196, %s195, 20
          %s198 = smul.u32 4, %s197
          %s199 = smul.u32 %s198, 4
        $region32: #{_forward.1} parent=27 // pred_fallthru
          _
        // Predicated region
        $region33: #{_forward.1} parent=27 // pred_check
          %p200 = pneg %p57
        $region34: #{_forward.1} parent=27 // pred_check_branch
          %202 = sbr.rel (%p200) target = $region36
        $region35: #{_forward.1} parent=27 // pred_region
          %s203 = smul.u32 20, %s11
          %s204 = ssub.s32 37, %s203
          %p205 = scmp.lt.s32.totalorder %s204, 20
          %s206 = scalar_select %p205, %s204, 20
          %s207 = smul.u32 8, %s206
          %p208 = scmp.lt.s32.totalorder %s203, 36
          %s209 = scalar_select %p208, %s203, 36
          %s210 = smul.addr %s209, 8
          %s211 = scalar_lea.vmem %s1, %s210
          %s212 = smul.u32 20, %s11
          %s213 = ssub.s32 37, %s212
          %p214 = scmp.lt.s32.totalorder %s213, 20
          %s215 = scalar_select %p214, %s213, 20
          %s216 = smul.u32 8, %s215
        $region36: #{_forward.1} parent=27 // pred_fallthru
          _
      $region28: #{_forward.1} parent=5 // pred_fallthru
        _
      %p217 = scmp.le.s32.totalorder 1, %s11
      %p218 = scmp.lt.s32.totalorder %s11, 3
      %p219 = pnand %p217, %p218
      %p220 = pneg %p219
      // Predicated region
      $region37: #{_forward.1} parent=5 // pred_check
        _
      $region38: #{_forward.1} parent=5 // pred_check_branch
        %222 = sbr.rel (%p219) target = $region40
      $region39: #{_forward.1} parent=5 // pred_region
        %s223 = ssub.s32 %s11, 1
        %s224 = smul.u32 20, %s16
        %s225 = ssub.s32 37, %s224
        %p226 = scmp.lt.s32.totalorder %s225, 20
        %s227 = scalar_select %p226, %s225, 20
        %s228 = smul.u32 4, %s227
        %s229 = smul.u32 %s228, 4
        %p230 = scmp.lt.s32.totalorder %s224, 36
        %s231 = scalar_select %p230, %s224, 36
        %s232 = smul.addr %s231, 4
        %s233 = smul.addr %s232, 4
        %s234 = scalar_lea.vmem %s0, %s233
        %p235 = pneg %p37
        %p236 = pneg %p34
        %s237 = smul.u32 20, %s16
        %s238 = ssub.s32 37, %s237
        %p239 = scmp.lt.s32.totalorder %s238, 20
        %s240 = scalar_select %p239, %s238, 20
        %s241 = smul.u32 8, %s240
        %p242 = scmp.lt.s32.totalorder %s237, 36
        %s243 = scalar_select %p242, %s237, 36
        %s244 = smul.addr %s243, 8
        %s245 = scalar_lea.vmem %s1, %s244
        %p246 = pneg %p63
        %p247 = pneg %p60
        %p248 = pneg %p84
        %p249 = pneg %p81
        %p250 = pneg %p105
        %p251 = pneg %p102
        %p252 = pneg %p126
        %p253 = pneg %p123
        %p254 = pneg %p152
        %p255 = pneg %p149
        %s256 = sand.u32 %s139, 1
        %s257 = sand.u32 %s139, 1
        %s258 = smul.addr %s257, 160
        %s259 = scalar_lea.vmem [#allocation2], %s258
        %s260 = smul.u32 20, %s16
        %s261 = ssub.s32 37, %s260
        %p262 = scmp.lt.s32.totalorder %s261, 20
        %s263 = scalar_select %p262, %s261, 20
        %s264 = smul.u32 4, %s263
        %s265 = smul.u32 %s264, 4
        %p266 = scmp.lt.s32.totalorder %s260, 36
        %s267 = scalar_select %p266, %s260, 36
        %s268 = smul.addr %s267, 4
        %s269 = smul.addr %s268, 4
        %s270 = scalar_lea.vmem %s0, %s269
        %s271 = smul.u32 20, %s16
        %s272 = ssub.s32 37, %s271
        %p273 = scmp.lt.s32.totalorder %s272, 20
        %s274 = scalar_select %p273, %s272, 20
        %s275 = smul.u32 4, %s274
        %s276 = smul.u32 %s275, 4
        %s277 = smul.u32 20, %s16
        %s278 = ssub.s32 37, %s277
        %p279 = scmp.lt.s32.totalorder %s278, 20
        %s280 = scalar_select %p279, %s278, 20
        %s281 = smul.u32 8, %s280
        %p282 = scmp.lt.s32.totalorder %s277, 36
        %s283 = scalar_select %p282, %s277, 36
        %s284 = smul.addr %s283, 8
        %s285 = scalar_lea.vmem %s1, %s284
        %s286 = smul.u32 20, %s16
        %s287 = ssub.s32 37, %s286
        %p288 = scmp.lt.s32.totalorder %s287, 20
        %s289 = scalar_select %p288, %s287, 20
        %s290 = smul.u32 8, %s289
        %s291 = smul.u32 20, %s16
        %s292 = ssub.s32 37, %s291
        %p293 = scmp.lt.s32.totalorder %s292, 20
        %s294 = scalar_select %p293, %s292, 20
        %s295 = smul.u32 8, %s294
        %v297 = vld [vmem:[%s270] sm:$0xff]
        %v298 = vld [vmem:[%s270 + $0x8] sm:$0xff]
        %v299 = vld [vmem:[%s270 + $0x10] sm:$0xff]
        %v300 = vld [vmem:[%s270 + $0x18] sm:$0xff]
        %v301 = vld [vmem:[%s270 + $0x20] sm:$0xff]
        %v302 = vld [vmem:[%s270 + $0x28] sm:$0xff]
        %v303 = vld [vmem:[%s270 + $0x30] sm:$0xff]
        %v304 = vld [vmem:[%s270 + $0x38] sm:$0xff]
        %v305 = vld [vmem:[%s270 + $0x40] sm:$0xff]
        %v306 = vld [vmem:[%s270 + $0x48] sm:$0xff]
        %v307 = vld [vmem:[%s270 + $0x50] sm:$0xff]
        %v308 = vld [vmem:[%s270 + $0x58] sm:$0xff]
        %v309 = vld [vmem:[%s270 + $0x60] sm:$0xff]
        %v310 = vld [vmem:[%s270 + $0x68] sm:$0xff]
        %v311 = vld [vmem:[%s270 + $0x70] sm:$0xff]
        %v312 = vld [vmem:[%s270 + $0x78] sm:$0xff]
        %v313 = vld [vmem:[%s270 + $0x80] sm:$0xff]
        %v314 = vld [vmem:[%s270 + $0x88] sm:$0xff]
        %v315 = vld [vmem:[%s270 + $0x90] sm:$0xff]
        %v316 = vld [vmem:[%s270 + $0x98] sm:$0xff]
        %v317 = vld [vmem:[%s270 + $0xa0] sm:$0xff]
        %v318 = vld [vmem:[%s270 + $0xa8] sm:$0xff]
        %v319 = vld [vmem:[%s270 + $0xb0] sm:$0xff]
        %v320 = vld [vmem:[%s270 + $0xb8] sm:$0xff]
        %v321 = vld [vmem:[%s270 + $0xc0] sm:$0xff]
        %v322 = vld [vmem:[%s270 + $0xc8] sm:$0xff]
        %v323 = vld [vmem:[%s270 + $0xd0] sm:$0xff]
        %v324 = vld [vmem:[%s270 + $0xd8] sm:$0xff]
        %v325 = vld [vmem:[%s270 + $0xe0] sm:$0xff]
        %v326 = vld [vmem:[%s270 + $0xe8] sm:$0xff]
        %v327 = vld [vmem:[%s270 + $0xf0] sm:$0xff]
        %v328 = vld [vmem:[%s270 + $0xf8] sm:$0xff]
        %v329 = vld [vmem:[%s270 + $0x100] sm:$0xff]
        %v330 = vld [vmem:[%s270 + $0x108] sm:$0xff]
        %v331 = vld [vmem:[%s270 + $0x110] sm:$0xff]
        %v332 = vld [vmem:[%s270 + $0x118] sm:$0xff]
        %v333 = vld [vmem:[%s270 + $0x120] sm:$0xff]
        %v334 = vld [vmem:[%s270 + $0x128] sm:$0xff]
        %v335 = vld [vmem:[%s270 + $0x130] sm:$0xff]
        %v336 = vld [vmem:[%s270 + $0x138] sm:$0xff]
        %v337 = vld [vmem:[%s2] sm:$0xff]
        %v338 = vld [vmem:[%s2 + $0x8] sm:$0xff]
        %v339 = vld [vmem:[%s2 + $0x10] sm:$0xf]
        %v340 = vld [vmem:[%s2 + $0x14] sm:$0xff]
        %v341 = vld [vmem:[%s2 + $0x1c] sm:$0xff]
        %v342 = vld [vmem:[%s2 + $0x24] sm:$0xf]
        %v343 = vld [vmem:[%s2 + $0x28] sm:$0xff]
        %v344 = vld [vmem:[%s2 + $0x30] sm:$0xff]
        %v345 = vld [vmem:[%s2 + $0x38] sm:$0xf]
        %v346 = vld [vmem:[%s2 + $0x3c] sm:$0xff]
        %v347 = vld [vmem:[%s2 + $0x44] sm:$0xff]
        %v348 = vld [vmem:[%s2 + $0x4c] sm:$0xf]
        %v349 = vld [vmem:[%s2 + $0x50] sm:$0xff]
        %v350 = vld [vmem:[%s2 + $0x58] sm:$0xff]
        %v351 = vld [vmem:[%s2 + $0x60] sm:$0xf]
        %v352 = vld [vmem:[%s2 + $0x64] sm:$0xff]
        %v353 = vld [vmem:[%s2 + $0x6c] sm:$0xff]
        %v354 = vld [vmem:[%s2 + $0x74] sm:$0xf]
        %v355 = vld [vmem:[%s2 + $0x78] sm:$0xff]
        %v356 = vld [vmem:[%s2 + $0x80] sm:$0xff]
        %v357 = vld [vmem:[%s2 + $0x88] sm:$0xf]
        %v358 = vld [vmem:[%s2 + $0x8c] sm:$0xff]
        %v359 = vld [vmem:[%s2 + $0x94] sm:$0xff]
        %v360 = vld [vmem:[%s2 + $0x9c] sm:$0xf]
        %v361 = vld [vmem:[%s2 + $0xa0] sm:$0xff]
        %v362 = vld [vmem:[%s2 + $0xa8] sm:$0xff]
        %v363 = vld [vmem:[%s2 + $0xb0] sm:$0xf]
        %v364 = vld [vmem:[%s2 + $0xb4] sm:$0xff]
        %v365 = vld [vmem:[%s2 + $0xbc] sm:$0xff]
        %v366 = vld [vmem:[%s2 + $0xc4] sm:$0xf]
        %v367 = vld [vmem:[%s2 + $0xc8] sm:$0xff]
        %v368 = vld [vmem:[%s2 + $0xd0] sm:$0xff]
        %v369 = vld [vmem:[%s2 + $0xd8] sm:$0xf]
        %v370 = vld [vmem:[%s2 + $0xdc] sm:$0xff]
        %v371 = vld [vmem:[%s2 + $0xe4] sm:$0xff]
        %v372 = vld [vmem:[%s2 + $0xec] sm:$0xf]
        %v373 = vld [vmem:[%s2 + $0xf0] sm:$0xff]
        %v374 = vld [vmem:[%s2 + $0xf8] sm:$0xff]
        %v375 = vld [vmem:[%s2 + $0x100] sm:$0xf]
        %v376 = vld [vmem:[%s2 + $0x104] sm:$0xff]
        %v377 = vld [vmem:[%s2 + $0x10c] sm:$0xff]
        %v378 = vld [vmem:[%s2 + $0x114] sm:$0xf]
        %v379 = vld [vmem:[%s2 + $0x118] sm:$0xff]
        %v380 = vld [vmem:[%s2 + $0x120] sm:$0xff]
        %v381 = vld [vmem:[%s2 + $0x128] sm:$0xf]
        %v382 = vld [vmem:[%s2 + $0x12c] sm:$0xff]
        %v383 = vld [vmem:[%s2 + $0x134] sm:$0xff]
        %v384 = vld [vmem:[%s2 + $0x13c] sm:$0xf]
        %v385 = vld [vmem:[%s2 + $0x140] sm:$0xff]
        %v386 = vld [vmem:[%s2 + $0x148] sm:$0xff]
        %v387 = vld [vmem:[%s2 + $0x150] sm:$0xf]
        %v388 = vld [vmem:[%s2 + $0x154] sm:$0xff]
        %v389 = vld [vmem:[%s2 + $0x15c] sm:$0xff]
        %v390 = vld [vmem:[%s2 + $0x164] sm:$0xf]
        %v391 = vld [vmem:[%s2 + $0x168] sm:$0xff]
        %v392 = vld [vmem:[%s2 + $0x170] sm:$0xff]
        %v393 = vld [vmem:[%s2 + $0x178] sm:$0xf]
        %v394 = vld [vmem:[%s2 + $0x17c] sm:$0xff]
        %v395 = vld [vmem:[%s2 + $0x184] sm:$0xff]
        %v396 = vld [vmem:[%s2 + $0x18c] sm:$0xf]
        %v397 = vld [vmem:[%s2 + $0x190] sm:$0xff]
        %v398 = vld [vmem:[%s2 + $0x198] sm:$0xff]
        %v399 = vld [vmem:[%s2 + $0x1a0] sm:$0xf]
        %v400 = vld [vmem:[%s2 + $0x1a4] sm:$0xff]
        %v401 = vld [vmem:[%s2 + $0x1ac] sm:$0xff]
        %v402 = vld [vmem:[%s2 + $0x1b4] sm:$0xf]
        %v403 = vld [vmem:[%s2 + $0x1b8] sm:$0xff]
        %v404 = vld [vmem:[%s2 + $0x1c0] sm:$0xff]
        %v405 = vld [vmem:[%s2 + $0x1c8] sm:$0xf]
        %v406 = vld [vmem:[%s2 + $0x1cc] sm:$0xff]
        %v407 = vld [vmem:[%s2 + $0x1d4] sm:$0xff]
        %v408 = vld [vmem:[%s2 + $0x1dc] sm:$0xf]
        %v409 = vld [vmem:[%s2 + $0x1e0] sm:$0xff]
        %v410 = vld [vmem:[%s2 + $0x1e8] sm:$0xff]
        %v411 = vld [vmem:[%s2 + $0x1f0] sm:$0xf]
        %v412 = vld [vmem:[%s2 + $0x1f4] sm:$0xff]
        %v413 = vld [vmem:[%s2 + $0x1fc] sm:$0xff]
        %v414 = vld [vmem:[%s2 + $0x204] sm:$0xf]
        %v415 = vld [vmem:[%s2 + $0x208] sm:$0xff]
        %v416 = vld [vmem:[%s2 + $0x210] sm:$0xff]
        %v417 = vld [vmem:[%s2 + $0x218] sm:$0xf]
        %v418 = vld [vmem:[%s2 + $0x21c] sm:$0xff]
        %v419 = vld [vmem:[%s2 + $0x224] sm:$0xff]
        %v420 = vld [vmem:[%s2 + $0x22c] sm:$0xf]
        %v421 = vld [vmem:[%s2 + $0x230] sm:$0xff]
        %v422 = vld [vmem:[%s2 + $0x238] sm:$0xff]
        %v423 = vld [vmem:[%s2 + $0x240] sm:$0xf]
        %v424 = vld [vmem:[%s2 + $0x244] sm:$0xff]
        %v425 = vld [vmem:[%s2 + $0x24c] sm:$0xff]
        %v426 = vld [vmem:[%s2 + $0x254] sm:$0xf]
        %v427 = vld [vmem:[%s2 + $0x258] sm:$0xff]
        %v428 = vld [vmem:[%s2 + $0x260] sm:$0xff]
        %v429 = vld [vmem:[%s2 + $0x268] sm:$0xf]
        %v430 = vld [vmem:[%s2 + $0x26c] sm:$0xff]
        %v431 = vld [vmem:[%s2 + $0x274] sm:$0xff]
        %v432 = vld [vmem:[%s2 + $0x27c] sm:$0xf]
        %v433 = vld [vmem:[%s2 + $0x280] sm:$0xff]
        %v434 = vld [vmem:[%s2 + $0x288] sm:$0xff]
        %v435 = vld [vmem:[%s2 + $0x290] sm:$0xf]
        %v436 = vld [vmem:[%s2 + $0x294] sm:$0xff]
        %v437 = vld [vmem:[%s2 + $0x29c] sm:$0xff]
        %v438 = vld [vmem:[%s2 + $0x2a4] sm:$0xf]
        %v439 = vld [vmem:[%s2 + $0x2a8] sm:$0xff]
        %v440 = vld [vmem:[%s2 + $0x2b0] sm:$0xff]
        %v441 = vld [vmem:[%s2 + $0x2b8] sm:$0xf]
        %v442 = vld [vmem:[%s2 + $0x2bc] sm:$0xff]
        %v443 = vld [vmem:[%s2 + $0x2c4] sm:$0xff]
        %v444 = vld [vmem:[%s2 + $0x2cc] sm:$0xf]
        %v445 = vld [vmem:[%s2 + $0x2d0] sm:$0xff]
        %v446 = vld [vmem:[%s2 + $0x2d8] sm:$0xff]
        %v447 = vld [vmem:[%s2 + $0x2e0] sm:$0xf]
        %v448 = vld [vmem:[%s2 + $0x2e4] sm:$0xff]
        %v449 = vld [vmem:[%s2 + $0x2ec] sm:$0xff]
        %v450 = vld [vmem:[%s2 + $0x2f4] sm:$0xf]
        %v451 = vld [vmem:[%s2 + $0x2f8] sm:$0xff]
        %v452 = vld [vmem:[%s2 + $0x300] sm:$0xff]
        %v453 = vld [vmem:[%s2 + $0x308] sm:$0xf]
        %v454 = vld [vmem:[%s2 + $0x30c] sm:$0xff]
        %v455 = vld [vmem:[%s2 + $0x314] sm:$0xff]
        %v456 = vld [vmem:[%s2 + $0x31c] sm:$0xf]
        %v457 = vld [vmem:[%s2 + $0x320] sm:$0xff]
        %v458 = vld [vmem:[%s2 + $0x328] sm:$0xff]
        %v459 = vld [vmem:[%s2 + $0x330] sm:$0xf]
        %v460 = vld [vmem:[%s2 + $0x334] sm:$0xff]
        %v461 = vld [vmem:[%s2 + $0x33c] sm:$0xff]
        %v462 = vld [vmem:[%s2 + $0x344] sm:$0xf]
        %v463 = vld [vmem:[%s2 + $0x348] sm:$0xff]
        %v464 = vld [vmem:[%s2 + $0x350] sm:$0xff]
        %v465 = vld [vmem:[%s2 + $0x358] sm:$0xf]
        %v466 = vld [vmem:[%s2 + $0x35c] sm:$0xff]
        %v467 = vld [vmem:[%s2 + $0x364] sm:$0xff]
        %v468 = vld [vmem:[%s2 + $0x36c] sm:$0xf]
        %v469 = vld [vmem:[%s2 + $0x370] sm:$0xff]
        %v470 = vld [vmem:[%s2 + $0x378] sm:$0xff]
        %v471 = vld [vmem:[%s2 + $0x380] sm:$0xf]
        %v472 = vld [vmem:[%s2 + $0x384] sm:$0xff]
        %v473 = vld [vmem:[%s2 + $0x38c] sm:$0xff]
        %v474 = vld [vmem:[%s2 + $0x394] sm:$0xf]
        %v475 = vld [vmem:[%s2 + $0x398] sm:$0xff]
        %v476 = vld [vmem:[%s2 + $0x3a0] sm:$0xff]
        %v477 = vld [vmem:[%s2 + $0x3a8] sm:$0xf]
        %v478 = vld [vmem:[%s2 + $0x3ac] sm:$0xff]
        %v479 = vld [vmem:[%s2 + $0x3b4] sm:$0xff]
        %v480 = vld [vmem:[%s2 + $0x3bc] sm:$0xf]
        %v481 = vld [vmem:[%s2 + $0x3c0] sm:$0xff]
        %v482 = vld [vmem:[%s2 + $0x3c8] sm:$0xff]
        %v483 = vld [vmem:[%s2 + $0x3d0] sm:$0xf]
        %v484 = vld [vmem:[%s2 + $0x3d4] sm:$0xff]
        %v485 = vld [vmem:[%s2 + $0x3dc] sm:$0xff]
        %v486 = vld [vmem:[%s2 + $0x3e4] sm:$0xf]
        %v487 = vld [vmem:[%s2 + $0x3e8] sm:$0x11]
        %v488 = vld [vmem:[%s2 + $0x3f0] sm:$0x11]
        %v489 = vld [vmem:[%s2 + $0x3f8] sm:$0x1]
        %v530 = vunpack.c.l.b16 %v297
        %v531 = vunpack.c.h.b16 %v297
        %v532 = vunpack.c.l.b16 %v298
        %v533 = vunpack.c.h.b16 %v298
        %v534 = vunpack.c.l.b16 %v299
        %v535 = vunpack.c.h.b16 %v299
        %v536 = vunpack.c.l.b16 %v300
        %v537 = vunpack.c.h.b16 %v300
        %v538 = vunpack.c.l.b16 %v301
        %v539 = vunpack.c.h.b16 %v301
        %v540 = vunpack.c.l.b16 %v302
        %v541 = vunpack.c.h.b16 %v302
        %v542 = vunpack.c.l.b16 %v303
        %v543 = vunpack.c.h.b16 %v303
        %v544 = vunpack.c.l.b16 %v304
        %v545 = vunpack.c.h.b16 %v304
        %v546 = vunpack.c.l.b16 %v305
        %v547 = vunpack.c.h.b16 %v305
        %v548 = vunpack.c.l.b16 %v306
        %v549 = vunpack.c.h.b16 %v306
        %v550 = vunpack.c.l.b16 %v307
        %v551 = vunpack.c.h.b16 %v307
        %v552 = vunpack.c.l.b16 %v308
        %v553 = vunpack.c.h.b16 %v308
        %v554 = vunpack.c.l.b16 %v309
        %v555 = vunpack.c.h.b16 %v309
        %v556 = vunpack.c.l.b16 %v310
        %v557 = vunpack.c.h.b16 %v310
        %v558 = vunpack.c.l.b16 %v311
        %v559 = vunpack.c.h.b16 %v311
        %v560 = vunpack.c.l.b16 %v312
        %v561 = vunpack.c.h.b16 %v312
        %v562 = vunpack.c.l.b16 %v313
        %v563 = vunpack.c.h.b16 %v313
        %v564 = vunpack.c.l.b16 %v314
        %v565 = vunpack.c.h.b16 %v314
        %v566 = vunpack.c.l.b16 %v315
        %v567 = vunpack.c.h.b16 %v315
        %v568 = vunpack.c.l.b16 %v316
        %v569 = vunpack.c.h.b16 %v316
        %v570 = vunpack.c.l.b16 %v317
        %v571 = vunpack.c.h.b16 %v317
        %v572 = vunpack.c.l.b16 %v318
        %v573 = vunpack.c.h.b16 %v318
        %v574 = vunpack.c.l.b16 %v319
        %v575 = vunpack.c.h.b16 %v319
        %v576 = vunpack.c.l.b16 %v320
        %v577 = vunpack.c.h.b16 %v320
        %v578 = vunpack.c.l.b16 %v321
        %v579 = vunpack.c.h.b16 %v321
        %v580 = vunpack.c.l.b16 %v322
        %v581 = vunpack.c.h.b16 %v322
        %v582 = vunpack.c.l.b16 %v323
        %v583 = vunpack.c.h.b16 %v323
        %v584 = vunpack.c.l.b16 %v324
        %v585 = vunpack.c.h.b16 %v324
        %v586 = vunpack.c.l.b16 %v325
        %v587 = vunpack.c.h.b16 %v325
        %v588 = vunpack.c.l.b16 %v326
        %v589 = vunpack.c.h.b16 %v326
        %v590 = vunpack.c.l.b16 %v327
        %v591 = vunpack.c.h.b16 %v327
        %v592 = vunpack.c.l.b16 %v328
        %v593 = vunpack.c.h.b16 %v328
        %v594 = vunpack.c.l.b16 %v329
        %v595 = vunpack.c.h.b16 %v329
        %v596 = vunpack.c.l.b16 %v330
        %v597 = vunpack.c.h.b16 %v330
        %v598 = vunpack.c.l.b16 %v331
        %v599 = vunpack.c.h.b16 %v331
        %v600 = vunpack.c.l.b16 %v332
        %v601 = vunpack.c.h.b16 %v332
        %v602 = vunpack.c.l.b16 %v333
        %v603 = vunpack.c.h.b16 %v333
        %v604 = vunpack.c.l.b16 %v334
        %v605 = vunpack.c.h.b16 %v334
        %v606 = vunpack.c.l.b16 %v335
        %v607 = vunpack.c.h.b16 %v335
        %v608 = vunpack.c.l.b16 %v336
        %v609 = vunpack.c.h.b16 %v336
        %v610 = vpack.c.b16 %v534, %v530
        %v611 = vpack.c.b16 %v535, %v531
        %v612 = vpack.c.b16 %v536, %v532
        %v613 = vpack.c.b16 %v537, %v533
        %v614 = vpack.c.b16 %v542, %v538
        %v615 = vpack.c.b16 %v543, %v539
        %v616 = vpack.c.b16 %v544, %v540
        %v617 = vpack.c.b16 %v545, %v541
        %v618 = vpack.c.b16 %v550, %v546
        %v619 = vpack.c.b16 %v551, %v547
        %v620 = vpack.c.b16 %v552, %v548
        %v621 = vpack.c.b16 %v553, %v549
        %v622 = vpack.c.b16 %v558, %v554
        %v623 = vpack.c.b16 %v559, %v555
        %v624 = vpack.c.b16 %v560, %v556
        %v625 = vpack.c.b16 %v561, %v557
        %v626 = vpack.c.b16 %v566, %v562
        %v627 = vpack.c.b16 %v567, %v563
        %v628 = vpack.c.b16 %v568, %v564
        %v629 = vpack.c.b16 %v569, %v565
        %v630 = vpack.c.b16 %v574, %v570
        %v631 = vpack.c.b16 %v575, %v571
        %v632 = vpack.c.b16 %v576, %v572
        %v633 = vpack.c.b16 %v577, %v573
        %v634 = vpack.c.b16 %v582, %v578
        %v635 = vpack.c.b16 %v583, %v579
        %v636 = vpack.c.b16 %v584, %v580
        %v637 = vpack.c.b16 %v585, %v581
        %v638 = vpack.c.b16 %v590, %v586
        %v639 = vpack.c.b16 %v591, %v587
        %v640 = vpack.c.b16 %v592, %v588
        %v641 = vpack.c.b16 %v593, %v589
        %v642 = vpack.c.b16 %v598, %v594
        %v643 = vpack.c.b16 %v599, %v595
        %v644 = vpack.c.b16 %v600, %v596
        %v645 = vpack.c.b16 %v601, %v597
        %v646 = vpack.c.b16 %v606, %v602
        %v647 = vpack.c.b16 %v607, %v603
        %v648 = vpack.c.b16 %v608, %v604
        %v649 = vpack.c.b16 %v609, %v605
        %v833 = vunpack.c.l.b16 %v337
        %v834 = vunpack.c.h.b16 %v337
        %v835 = vunpack.c.l.b16 %v338
        %v836 = vunpack.c.h.b16 %v338
        %v837 = vunpack.c.l.b16 %v339
        %v838 = vunpack.c.l.b16 %v340
        %v839 = vunpack.c.h.b16 %v340
        %v840 = vunpack.c.l.b16 %v341
        %v841 = vunpack.c.h.b16 %v341
        %v842 = vunpack.c.l.b16 %v342
        %v843 = vunpack.c.l.b16 %v343
        %v844 = vunpack.c.h.b16 %v343
        %v845 = vunpack.c.l.b16 %v344
        %v846 = vunpack.c.h.b16 %v344
        %v847 = vunpack.c.l.b16 %v345
        %v848 = vunpack.c.l.b16 %v346
        %v849 = vunpack.c.h.b16 %v346
        %v850 = vunpack.c.l.b16 %v347
        %v851 = vunpack.c.h.b16 %v347
        %v852 = vunpack.c.l.b16 %v348
        %v853 = vunpack.c.l.b16 %v349
        %v854 = vunpack.c.h.b16 %v349
        %v855 = vunpack.c.l.b16 %v350
        %v856 = vunpack.c.h.b16 %v350
        %v857 = vunpack.c.l.b16 %v351
        %v858 = vunpack.c.l.b16 %v352
        %v859 = vunpack.c.h.b16 %v352
        %v860 = vunpack.c.l.b16 %v353
        %v861 = vunpack.c.h.b16 %v353
        %v862 = vunpack.c.l.b16 %v354
        %v863 = vunpack.c.l.b16 %v355
        %v864 = vunpack.c.h.b16 %v355
        %v865 = vunpack.c.l.b16 %v356
        %v866 = vunpack.c.h.b16 %v356
        %v867 = vunpack.c.l.b16 %v357
        %v868 = vunpack.c.l.b16 %v358
        %v869 = vunpack.c.h.b16 %v358
        %v870 = vunpack.c.l.b16 %v359
        %v871 = vunpack.c.h.b16 %v359
        %v872 = vunpack.c.l.b16 %v360
        %v873 = vunpack.c.l.b16 %v361
        %v874 = vunpack.c.h.b16 %v361
        %v875 = vunpack.c.l.b16 %v362
        %v876 = vunpack.c.h.b16 %v362
        %v877 = vunpack.c.l.b16 %v363
        %v878 = vunpack.c.l.b16 %v364
        %v879 = vunpack.c.h.b16 %v364
        %v880 = vunpack.c.l.b16 %v365
        %v881 = vunpack.c.h.b16 %v365
        %v882 = vunpack.c.l.b16 %v366
        %v883 = vunpack.c.l.b16 %v367
        %v884 = vunpack.c.h.b16 %v367
        %v885 = vunpack.c.l.b16 %v368
        %v886 = vunpack.c.h.b16 %v368
        %v887 = vunpack.c.l.b16 %v369
        %v888 = vunpack.c.l.b16 %v370
        %v889 = vunpack.c.h.b16 %v370
        %v890 = vunpack.c.l.b16 %v371
        %v891 = vunpack.c.h.b16 %v371
        %v892 = vunpack.c.l.b16 %v372
        %v893 = vunpack.c.l.b16 %v373
        %v894 = vunpack.c.h.b16 %v373
        %v895 = vunpack.c.l.b16 %v374
        %v896 = vunpack.c.h.b16 %v374
        %v897 = vunpack.c.l.b16 %v375
        %v898 = vunpack.c.l.b16 %v376
        %v899 = vunpack.c.h.b16 %v376
        %v900 = vunpack.c.l.b16 %v377
        %v901 = vunpack.c.h.b16 %v377
        %v902 = vunpack.c.l.b16 %v378
        %v903 = vunpack.c.l.b16 %v379
        %v904 = vunpack.c.h.b16 %v379
        %v905 = vunpack.c.l.b16 %v380
        %v906 = vunpack.c.h.b16 %v380
        %v907 = vunpack.c.l.b16 %v381
        %v908 = vunpack.c.l.b16 %v382
        %v909 = vunpack.c.h.b16 %v382
        %v910 = vunpack.c.l.b16 %v383
        %v911 = vunpack.c.h.b16 %v383
        %v912 = vunpack.c.l.b16 %v384
        %v913 = vunpack.c.l.b16 %v385
        %v914 = vunpack.c.h.b16 %v385
        %v915 = vunpack.c.l.b16 %v386
        %v916 = vunpack.c.h.b16 %v386
        %v917 = vunpack.c.l.b16 %v387
        %v918 = vunpack.c.l.b16 %v388
        %v919 = vunpack.c.h.b16 %v388
        %v920 = vunpack.c.l.b16 %v389
        %v921 = vunpack.c.h.b16 %v389
        %v922 = vunpack.c.l.b16 %v390
        %v923 = vunpack.c.l.b16 %v391
        %v924 = vunpack.c.h.b16 %v391
        %v925 = vunpack.c.l.b16 %v392
        %v926 = vunpack.c.h.b16 %v392
        %v927 = vunpack.c.l.b16 %v393
        %v928 = vunpack.c.l.b16 %v394
        %v929 = vunpack.c.h.b16 %v394
        %v930 = vunpack.c.l.b16 %v395
        %v931 = vunpack.c.h.b16 %v395
        %v932 = vunpack.c.l.b16 %v396
        %v933 = vunpack.c.l.b16 %v397
        %v934 = vunpack.c.h.b16 %v397
        %v935 = vunpack.c.l.b16 %v398
        %v936 = vunpack.c.h.b16 %v398
        %v937 = vunpack.c.l.b16 %v399
        %v938 = vunpack.c.l.b16 %v400
        %v939 = vunpack.c.h.b16 %v400
        %v940 = vunpack.c.l.b16 %v401
        %v941 = vunpack.c.h.b16 %v401
        %v942 = vunpack.c.l.b16 %v402
        %v943 = vunpack.c.l.b16 %v403
        %v944 = vunpack.c.h.b16 %v403
        %v945 = vunpack.c.l.b16 %v404
        %v946 = vunpack.c.h.b16 %v404
        %v947 = vunpack.c.l.b16 %v405
        %v948 = vunpack.c.l.b16 %v406
        %v949 = vunpack.c.h.b16 %v406
        %v950 = vunpack.c.l.b16 %v407
        %v951 = vunpack.c.h.b16 %v407
        %v952 = vunpack.c.l.b16 %v408
        %v953 = vunpack.c.l.b16 %v409
        %v954 = vunpack.c.h.b16 %v409
        %v955 = vunpack.c.l.b16 %v410
        %v956 = vunpack.c.h.b16 %v410
        %v957 = vunpack.c.l.b16 %v411
        %v958 = vunpack.c.l.b16 %v412
        %v959 = vunpack.c.h.b16 %v412
        %v960 = vunpack.c.l.b16 %v413
        %v961 = vunpack.c.h.b16 %v413
        %v962 = vunpack.c.l.b16 %v414
        %v963 = vunpack.c.l.b16 %v415
        %v964 = vunpack.c.h.b16 %v415
        %v965 = vunpack.c.l.b16 %v416
        %v966 = vunpack.c.h.b16 %v416
        %v967 = vunpack.c.l.b16 %v417
        %v968 = vunpack.c.l.b16 %v418
        %v969 = vunpack.c.h.b16 %v418
        %v970 = vunpack.c.l.b16 %v419
        %v971 = vunpack.c.h.b16 %v419
        %v972 = vunpack.c.l.b16 %v420
        %v973 = vunpack.c.l.b16 %v421
        %v974 = vunpack.c.h.b16 %v421
        %v975 = vunpack.c.l.b16 %v422
        %v976 = vunpack.c.h.b16 %v422
        %v977 = vunpack.c.l.b16 %v423
        %v978 = vunpack.c.l.b16 %v424
        %v979 = vunpack.c.h.b16 %v424
        %v980 = vunpack.c.l.b16 %v425
        %v981 = vunpack.c.h.b16 %v425
        %v982 = vunpack.c.l.b16 %v426
        %v983 = vunpack.c.l.b16 %v427
        %v984 = vunpack.c.h.b16 %v427
        %v985 = vunpack.c.l.b16 %v428
        %v986 = vunpack.c.h.b16 %v428
        %v987 = vunpack.c.l.b16 %v429
        %v988 = vunpack.c.l.b16 %v430
        %v989 = vunpack.c.h.b16 %v430
        %v990 = vunpack.c.l.b16 %v431
        %v991 = vunpack.c.h.b16 %v431
        %v992 = vunpack.c.l.b16 %v432
        %v993 = vunpack.c.l.b16 %v433
        %v994 = vunpack.c.h.b16 %v433
        %v995 = vunpack.c.l.b16 %v434
        %v996 = vunpack.c.h.b16 %v434
        %v997 = vunpack.c.l.b16 %v435
        %v998 = vunpack.c.l.b16 %v436
        %v999 = vunpack.c.h.b16 %v436
        %v1000 = vunpack.c.l.b16 %v437
        %v1001 = vunpack.c.h.b16 %v437
        %v1002 = vunpack.c.l.b16 %v438
        %v1003 = vunpack.c.l.b16 %v439
        %v1004 = vunpack.c.h.b16 %v439
        %v1005 = vunpack.c.l.b16 %v440
        %v1006 = vunpack.c.h.b16 %v440
        %v1007 = vunpack.c.l.b16 %v441
        %v1008 = vunpack.c.l.b16 %v442
        %v1009 = vunpack.c.h.b16 %v442
        %v1010 = vunpack.c.l.b16 %v443
        %v1011 = vunpack.c.h.b16 %v443
        %v1012 = vunpack.c.l.b16 %v444
        %v1013 = vunpack.c.l.b16 %v445
        %v1014 = vunpack.c.h.b16 %v445
        %v1015 = vunpack.c.l.b16 %v446
        %v1016 = vunpack.c.h.b16 %v446
        %v1017 = vunpack.c.l.b16 %v447
        %v1018 = vunpack.c.l.b16 %v448
        %v1019 = vunpack.c.h.b16 %v448
        %v1020 = vunpack.c.l.b16 %v449
        %v1021 = vunpack.c.h.b16 %v449
        %v1022 = vunpack.c.l.b16 %v450
        %v1023 = vunpack.c.l.b16 %v451
        %v1024 = vunpack.c.h.b16 %v451
        %v1025 = vunpack.c.l.b16 %v452
        %v1026 = vunpack.c.h.b16 %v452
        %v1027 = vunpack.c.l.b16 %v453
        %v1028 = vunpack.c.l.b16 %v454
        %v1029 = vunpack.c.h.b16 %v454
        %v1030 = vunpack.c.l.b16 %v455
        %v1031 = vunpack.c.h.b16 %v455
        %v1032 = vunpack.c.l.b16 %v456
        %v1033 = vunpack.c.l.b16 %v457
        %v1034 = vunpack.c.h.b16 %v457
        %v1035 = vunpack.c.l.b16 %v458
        %v1036 = vunpack.c.h.b16 %v458
        %v1037 = vunpack.c.l.b16 %v459
        %v1038 = vunpack.c.l.b16 %v460
        %v1039 = vunpack.c.h.b16 %v460
        %v1040 = vunpack.c.l.b16 %v461
        %v1041 = vunpack.c.h.b16 %v461
        %v1042 = vunpack.c.l.b16 %v462
        %v1043 = vunpack.c.l.b16 %v463
        %v1044 = vunpack.c.h.b16 %v463
        %v1045 = vunpack.c.l.b16 %v464
        %v1046 = vunpack.c.h.b16 %v464
        %v1047 = vunpack.c.l.b16 %v465
        %v1048 = vunpack.c.l.b16 %v466
        %v1049 = vunpack.c.h.b16 %v466
        %v1050 = vunpack.c.l.b16 %v467
        %v1051 = vunpack.c.h.b16 %v467
        %v1052 = vunpack.c.l.b16 %v468
        %v1053 = vunpack.c.l.b16 %v469
        %v1054 = vunpack.c.h.b16 %v469
        %v1055 = vunpack.c.l.b16 %v470
        %v1056 = vunpack.c.h.b16 %v470
        %v1057 = vunpack.c.l.b16 %v471
        %v1058 = vunpack.c.l.b16 %v472
        %v1059 = vunpack.c.h.b16 %v472
        %v1060 = vunpack.c.l.b16 %v473
        %v1061 = vunpack.c.h.b16 %v473
        %v1062 = vunpack.c.l.b16 %v474
        %v1063 = vunpack.c.l.b16 %v475
        %v1064 = vunpack.c.h.b16 %v475
        %v1065 = vunpack.c.l.b16 %v476
        %v1066 = vunpack.c.h.b16 %v476
        %v1067 = vunpack.c.l.b16 %v477
        %v1068 = vunpack.c.l.b16 %v478
        %v1069 = vunpack.c.h.b16 %v478
        %v1070 = vunpack.c.l.b16 %v479
        %v1071 = vunpack.c.h.b16 %v479
        %v1072 = vunpack.c.l.b16 %v480
        %v1073 = vunpack.c.l.b16 %v481
        %v1074 = vunpack.c.h.b16 %v481
        %v1075 = vunpack.c.l.b16 %v482
        %v1076 = vunpack.c.h.b16 %v482
        %v1077 = vunpack.c.l.b16 %v483
        %v1078 = vunpack.c.l.b16 %v484
        %v1079 = vunpack.c.h.b16 %v484
        %v1080 = vunpack.c.l.b16 %v485
        %v1081 = vunpack.c.h.b16 %v485
        %v1082 = vunpack.c.l.b16 %v486
        %v1083 = vunpack.c.l.b16 %v487
        %v1084 = vunpack.c.h.b16 %v487
        %v1085 = vunpack.c.l.b16 %v488
        %v1086 = vunpack.c.h.b16 %v488
        %v1087 = vunpack.c.l.b16 %v489
        %v1088 = vpack.c.b16 %v838, %v833
        %v1089 = vpack.c.b16 %v839, %v834
        %v1090 = vpack.c.b16 %v840, %v835
        %v1091 = vpack.c.b16 %v841, %v836
        %v1092 = vpack.c.b16 %v842, %v837
        %v1093 = vpack.c.b16 %v848, %v843
        %v1094 = vpack.c.b16 %v849, %v844
        %v1095 = vpack.c.b16 %v850, %v845
        %v1096 = vpack.c.b16 %v851, %v846
        %v1097 = vpack.c.b16 %v852, %v847
        %v1098 = vpack.c.b16 %v858, %v853
        %v1099 = vpack.c.b16 %v859, %v854
        %v1100 = vpack.c.b16 %v860, %v855
        %v1101 = vpack.c.b16 %v861, %v856
        %v1102 = vpack.c.b16 %v862, %v857
        %v1103 = vpack.c.b16 %v868, %v863
        %v1104 = vpack.c.b16 %v869, %v864
        %v1105 = vpack.c.b16 %v870, %v865
        %v1106 = vpack.c.b16 %v871, %v866
        %v1107 = vpack.c.b16 %v872, %v867
        %v1108 = vpack.c.b16 %v878, %v873
        %v1109 = vpack.c.b16 %v879, %v874
        %v1110 = vpack.c.b16 %v880, %v875
        %v1111 = vpack.c.b16 %v881, %v876
        %v1112 = vpack.c.b16 %v882, %v877
        %v1113 = vpack.c.b16 %v888, %v883
        %v1114 = vpack.c.b16 %v889, %v884
        %v1115 = vpack.c.b16 %v890, %v885
        %v1116 = vpack.c.b16 %v891, %v886
        %v1117 = vpack.c.b16 %v892, %v887
        %v1118 = vpack.c.b16 %v898, %v893
        %v1119 = vpack.c.b16 %v899, %v894
        %v1120 = vpack.c.b16 %v900, %v895
        %v1121 = vpack.c.b16 %v901, %v896
        %v1122 = vpack.c.b16 %v902, %v897
        %v1123 = vpack.c.b16 %v908, %v903
        %v1124 = vpack.c.b16 %v909, %v904
        %v1125 = vpack.c.b16 %v910, %v905
        %v1126 = vpack.c.b16 %v911, %v906
        %v1127 = vpack.c.b16 %v912, %v907
        %v1128 = vpack.c.b16 %v918, %v913
        %v1129 = vpack.c.b16 %v919, %v914
        %v1130 = vpack.c.b16 %v920, %v915
        %v1131 = vpack.c.b16 %v921, %v916
        %v1132 = vpack.c.b16 %v922, %v917
        %v1133 = vpack.c.b16 %v928, %v923
        %v1134 = vpack.c.b16 %v929, %v924
        %v1135 = vpack.c.b16 %v930, %v925
        %v1136 = vpack.c.b16 %v931, %v926
        %v1137 = vpack.c.b16 %v932, %v927
        %v1138 = vpack.c.b16 %v938, %v933
        %v1139 = vpack.c.b16 %v939, %v934
        %v1140 = vpack.c.b16 %v940, %v935
        %v1141 = vpack.c.b16 %v941, %v936
        %v1142 = vpack.c.b16 %v942, %v937
        %v1143 = vpack.c.b16 %v948, %v943
        %v1144 = vpack.c.b16 %v949, %v944
        %v1145 = vpack.c.b16 %v950, %v945
        %v1146 = vpack.c.b16 %v951, %v946
        %v1147 = vpack.c.b16 %v952, %v947
        %v1148 = vpack.c.b16 %v958, %v953
        %v1149 = vpack.c.b16 %v959, %v954
        %v1150 = vpack.c.b16 %v960, %v955
        %v1151 = vpack.c.b16 %v961, %v956
        %v1152 = vpack.c.b16 %v962, %v957
        %v1153 = vpack.c.b16 %v968, %v963
        %v1154 = vpack.c.b16 %v969, %v964
        %v1155 = vpack.c.b16 %v970, %v965
        %v1156 = vpack.c.b16 %v971, %v966
        %v1157 = vpack.c.b16 %v972, %v967
        %v1158 = vpack.c.b16 %v978, %v973
        %v1159 = vpack.c.b16 %v979, %v974
        %v1160 = vpack.c.b16 %v980, %v975
        %v1161 = vpack.c.b16 %v981, %v976
        %v1162 = vpack.c.b16 %v982, %v977
        %v1163 = vpack.c.b16 %v988, %v983
        %v1164 = vpack.c.b16 %v989, %v984
        %v1165 = vpack.c.b16 %v990, %v985
        %v1166 = vpack.c.b16 %v991, %v986
        %v1167 = vpack.c.b16 %v992, %v987
        %v1168 = vpack.c.b16 %v998, %v993
        %v1169 = vpack.c.b16 %v999, %v994
        %v1170 = vpack.c.b16 %v1000, %v995
        %v1171 = vpack.c.b16 %v1001, %v996
        %v1172 = vpack.c.b16 %v1002, %v997
        %v1173 = vpack.c.b16 %v1008, %v1003
        %v1174 = vpack.c.b16 %v1009, %v1004
        %v1175 = vpack.c.b16 %v1010, %v1005
        %v1176 = vpack.c.b16 %v1011, %v1006
        %v1177 = vpack.c.b16 %v1012, %v1007
        %v1178 = vpack.c.b16 %v1018, %v1013
        %v1179 = vpack.c.b16 %v1019, %v1014
        %v1180 = vpack.c.b16 %v1020, %v1015
        %v1181 = vpack.c.b16 %v1021, %v1016
        %v1182 = vpack.c.b16 %v1022, %v1017
        %v1183 = vpack.c.b16 %v1028, %v1023
        %v1184 = vpack.c.b16 %v1029, %v1024
        %v1185 = vpack.c.b16 %v1030, %v1025
        %v1186 = vpack.c.b16 %v1031, %v1026
        %v1187 = vpack.c.b16 %v1032, %v1027
        %v1188 = vpack.c.b16 %v1038, %v1033
        %v1189 = vpack.c.b16 %v1039, %v1034
        %v1190 = vpack.c.b16 %v1040, %v1035
        %v1191 = vpack.c.b16 %v1041, %v1036
        %v1192 = vpack.c.b16 %v1042, %v1037
        %v1193 = vpack.c.b16 %v1048, %v1043
        %v1194 = vpack.c.b16 %v1049, %v1044
        %v1195 = vpack.c.b16 %v1050, %v1045
        %v1196 = vpack.c.b16 %v1051, %v1046
        %v1197 = vpack.c.b16 %v1052, %v1047
        %v1198 = vpack.c.b16 %v1058, %v1053
        %v1199 = vpack.c.b16 %v1059, %v1054
        %v1200 = vpack.c.b16 %v1060, %v1055
        %v1201 = vpack.c.b16 %v1061, %v1056
        %v1202 = vpack.c.b16 %v1062, %v1057
        %v1203 = vpack.c.b16 %v1068, %v1063
        %v1204 = vpack.c.b16 %v1069, %v1064
        %v1205 = vpack.c.b16 %v1070, %v1065
        %v1206 = vpack.c.b16 %v1071, %v1066
        %v1207 = vpack.c.b16 %v1072, %v1067
        %v1208 = vpack.c.b16 %v1078, %v1073
        %v1209 = vpack.c.b16 %v1079, %v1074
        %v1210 = vpack.c.b16 %v1080, %v1075
        %v1211 = vpack.c.b16 %v1081, %v1076
        %v1212 = vpack.c.b16 %v1082, %v1077
        %v1213 = vpack.c.b16 %v1083, %v1083
        %v1214 = vpack.c.b16 %v1084, %v1084
        %v1215 = vpack.c.b16 %v1085, %v1085
        %v1216 = vpack.c.b16 %v1086, %v1086
        %v1217 = vpack.c.b16 %v1087, %v1087
        %vm1343 = vcmask 138240
        %v1345 = vsel %vm1343, %v613, 0
        %v1348 = vsel %vm1343, %v617, 0
        %v1351 = vsel %vm1343, %v621, 0
        %v1354 = vsel %vm1343, %v625, 0
        %v1357 = vsel %vm1343, %v629, 0
        %v1360 = vsel %vm1343, %v633, 0
        %v1363 = vsel %vm1343, %v637, 0
        %v1366 = vsel %vm1343, %v641, 0
        %v1369 = vsel %vm1343, %v645, 0
        %v1372 = vsel %vm1343, %v649, 0
        %vm1374 = vcmask 1040384
        %v1375 = vsel 0, 4294967295, 65535
        %v1376 = vsel %vm1374, %v1375, 0
        %v1378 = vand.u32 %v1213, %v1376
        %v1381 = vand.u32 %v1214, %v1376
        %v1384 = vand.u32 %v1215, %v1376
        %v1387 = vand.u32 %v1216, %v1376
        %v1390 = vand.u32 %v1217, %v1376
        %1392 = vmatpush.bf16.msra.mxu0 %v1123
        %1393 = vmatpush.bf16.msra.mxu0 %v1118
        %1394 = vmatpush.bf16.msra.mxu0 %v1113
        %1395 = vmatpush.bf16.msra.mxu0 %v1108
        %1396 = vmatpush.bf16.msra.mxu0 %v1103
        %1397 = vmatpush.bf16.msra.mxu0 %v1098
        %1398 = vmatpush.bf16.msra.mxu0 %v1093
        %1399 = vmatpush.bf16.msra.mxu0 %v1088
        %1400 = vmatmul.bf16.gmra.mxu0 %v610
        %v1401 = vpop.f32.mrf.mxu0
        %v1402 = vadd.f32 0.0, %v1401
        %v1403 = vpop.f32.mrf.mxu0
        %v1404 = vadd.f32 0.0, %v1403
        %1405 = vmatmul.bf16.gmra.mxu0 %v614
        %v1406 = vpop.f32.mrf.mxu0
        %v1407 = vadd.f32 0.0, %v1406
        %v1408 = vpop.f32.mrf.mxu0
        %v1409 = vadd.f32 0.0, %v1408
        %1410 = vmatmul.bf16.gmra.mxu0 %v618
        %v1411 = vpop.f32.mrf.mxu0
        %v1412 = vadd.f32 0.0, %v1411
        %v1413 = vpop.f32.mrf.mxu0
        %v1414 = vadd.f32 0.0, %v1413
        %1415 = vmatmul.bf16.gmra.mxu0 %v622
        %v1416 = vpop.f32.mrf.mxu0
        %v1417 = vadd.f32 0.0, %v1416
        %v1418 = vpop.f32.mrf.mxu0
        %v1419 = vadd.f32 0.0, %v1418
        %1420 = vmatmul.bf16.gmra.mxu0 %v626
        %v1421 = vpop.f32.mrf.mxu0
        %v1422 = vadd.f32 0.0, %v1421
        %v1423 = vpop.f32.mrf.mxu0
        %v1424 = vadd.f32 0.0, %v1423
        %1425 = vmatmul.bf16.gmra.mxu0 %v630
        %v1426 = vpop.f32.mrf.mxu0
        %v1427 = vadd.f32 0.0, %v1426
        %v1428 = vpop.f32.mrf.mxu0
        %v1429 = vadd.f32 0.0, %v1428
        %1430 = vmatmul.bf16.gmra.mxu0 %v634
        %v1431 = vpop.f32.mrf.mxu0
        %v1432 = vadd.f32 0.0, %v1431
        %v1433 = vpop.f32.mrf.mxu0
        %v1434 = vadd.f32 0.0, %v1433
        %1435 = vmatmul.bf16.gmra.mxu0 %v638
        %v1436 = vpop.f32.mrf.mxu0
        %v1437 = vadd.f32 0.0, %v1436
        %v1438 = vpop.f32.mrf.mxu0
        %v1439 = vadd.f32 0.0, %v1438
        %1440 = vmatmul.bf16.gmra.mxu0 %v642
        %v1441 = vpop.f32.mrf.mxu0
        %v1442 = vadd.f32 0.0, %v1441
        %v1443 = vpop.f32.mrf.mxu0
        %v1444 = vadd.f32 0.0, %v1443
        %1445 = vmatmul.bf16.gmra.mxu0 %v646
        %v1446 = vpop.f32.mrf.mxu0
        %v1447 = vadd.f32 0.0, %v1446
        %v1448 = vpop.f32.mrf.mxu0
        %v1449 = vadd.f32 0.0, %v1448
        %1450 = vdwg.mxu0
        %1451 = vmatpush.bf16.msra.mxu0 %v1163
        %1452 = vmatpush.bf16.msra.mxu0 %v1158
        %1453 = vmatpush.bf16.msra.mxu0 %v1153
        %1454 = vmatpush.bf16.msra.mxu0 %v1148
        %1455 = vmatpush.bf16.msra.mxu0 %v1143
        %1456 = vmatpush.bf16.msra.mxu0 %v1138
        %1457 = vmatpush.bf16.msra.mxu0 %v1133
        %1458 = vmatpush.bf16.msra.mxu0 %v1128
        %1459 = vmatmul.bf16.gmra.mxu0 %v611
        %v1460 = vpop.f32.mrf.mxu0
        %v1461 = vadd.f32 %v1402, %v1460
        %v1462 = vpop.f32.mrf.mxu0
        %v1463 = vadd.f32 %v1404, %v1462
        %1464 = vmatmul.bf16.gmra.mxu0 %v615
        %v1465 = vpop.f32.mrf.mxu0
        %v1466 = vadd.f32 %v1407, %v1465
        %v1467 = vpop.f32.mrf.mxu0
        %v1468 = vadd.f32 %v1409, %v1467
        %1469 = vmatmul.bf16.gmra.mxu0 %v619
        %v1470 = vpop.f32.mrf.mxu0
        %v1471 = vadd.f32 %v1412, %v1470
        %v1472 = vpop.f32.mrf.mxu0
        %v1473 = vadd.f32 %v1414, %v1472
        %1474 = vmatmul.bf16.gmra.mxu0 %v623
        %v1475 = vpop.f32.mrf.mxu0
        %v1476 = vadd.f32 %v1417, %v1475
        %v1477 = vpop.f32.mrf.mxu0
        %v1478 = vadd.f32 %v1419, %v1477
        %1479 = vmatmul.bf16.gmra.mxu0 %v627
        %v1480 = vpop.f32.mrf.mxu0
        %v1481 = vadd.f32 %v1422, %v1480
        %v1482 = vpop.f32.mrf.mxu0
        %v1483 = vadd.f32 %v1424, %v1482
        %1484 = vmatmul.bf16.gmra.mxu0 %v631
        %v1485 = vpop.f32.mrf.mxu0
        %v1486 = vadd.f32 %v1427, %v1485
        %v1487 = vpop.f32.mrf.mxu0
        %v1488 = vadd.f32 %v1429, %v1487
        %1489 = vmatmul.bf16.gmra.mxu0 %v635
        %v1490 = vpop.f32.mrf.mxu0
        %v1491 = vadd.f32 %v1432, %v1490
        %v1492 = vpop.f32.mrf.mxu0
        %v1493 = vadd.f32 %v1434, %v1492
        %1494 = vmatmul.bf16.gmra.mxu0 %v639
        %v1495 = vpop.f32.mrf.mxu0
        %v1496 = vadd.f32 %v1437, %v1495
        %v1497 = vpop.f32.mrf.mxu0
        %v1498 = vadd.f32 %v1439, %v1497
        %1499 = vmatmul.bf16.gmra.mxu0 %v643
        %v1500 = vpop.f32.mrf.mxu0
        %v1501 = vadd.f32 %v1442, %v1500
        %v1502 = vpop.f32.mrf.mxu0
        %v1503 = vadd.f32 %v1444, %v1502
        %1504 = vmatmul.bf16.gmra.mxu0 %v647
        %v1505 = vpop.f32.mrf.mxu0
        %v1506 = vadd.f32 %v1447, %v1505
        %v1507 = vpop.f32.mrf.mxu0
        %v1508 = vadd.f32 %v1449, %v1507
        %1509 = vdwg.mxu0
        %1510 = vmatpush.bf16.msra.mxu0 %v1203
        %1511 = vmatpush.bf16.msra.mxu0 %v1198
        %1512 = vmatpush.bf16.msra.mxu0 %v1193
        %1513 = vmatpush.bf16.msra.mxu0 %v1188
        %1514 = vmatpush.bf16.msra.mxu0 %v1183
        %1515 = vmatpush.bf16.msra.mxu0 %v1178
        %1516 = vmatpush.bf16.msra.mxu0 %v1173
        %1517 = vmatpush.bf16.msra.mxu0 %v1168
        %1518 = vmatmul.bf16.gmra.mxu0 %v612
        %v1519 = vpop.f32.mrf.mxu0
        %v1520 = vadd.f32 %v1461, %v1519
        %v1521 = vpop.f32.mrf.mxu0
        %v1522 = vadd.f32 %v1463, %v1521
        %1523 = vmatmul.bf16.gmra.mxu0 %v616
        %v1524 = vpop.f32.mrf.mxu0
        %v1525 = vadd.f32 %v1466, %v1524
        %v1526 = vpop.f32.mrf.mxu0
        %v1527 = vadd.f32 %v1468, %v1526
        %1528 = vmatmul.bf16.gmra.mxu0 %v620
        %v1529 = vpop.f32.mrf.mxu0
        %v1530 = vadd.f32 %v1471, %v1529
        %v1531 = vpop.f32.mrf.mxu0
        %v1532 = vadd.f32 %v1473, %v1531
        %1533 = vmatmul.bf16.gmra.mxu0 %v624
        %v1534 = vpop.f32.mrf.mxu0
        %v1535 = vadd.f32 %v1476, %v1534
        %v1536 = vpop.f32.mrf.mxu0
        %v1537 = vadd.f32 %v1478, %v1536
        %1538 = vmatmul.bf16.gmra.mxu0 %v628
        %v1539 = vpop.f32.mrf.mxu0
        %v1540 = vadd.f32 %v1481, %v1539
        %v1541 = vpop.f32.mrf.mxu0
        %v1542 = vadd.f32 %v1483, %v1541
        %1543 = vmatmul.bf16.gmra.mxu0 %v632
        %v1544 = vpop.f32.mrf.mxu0
        %v1545 = vadd.f32 %v1486, %v1544
        %v1546 = vpop.f32.mrf.mxu0
        %v1547 = vadd.f32 %v1488, %v1546
        %1548 = vmatmul.bf16.gmra.mxu0 %v636
        %v1549 = vpop.f32.mrf.mxu0
        %v1550 = vadd.f32 %v1491, %v1549
        %v1551 = vpop.f32.mrf.mxu0
        %v1552 = vadd.f32 %v1493, %v1551
        %1553 = vmatmul.bf16.gmra.mxu0 %v640
        %v1554 = vpop.f32.mrf.mxu0
        %v1555 = vadd.f32 %v1496, %v1554
        %v1556 = vpop.f32.mrf.mxu0
        %v1557 = vadd.f32 %v1498, %v1556
        %1558 = vmatmul.bf16.gmra.mxu0 %v644
        %v1559 = vpop.f32.mrf.mxu0
        %v1560 = vadd.f32 %v1501, %v1559
        %v1561 = vpop.f32.mrf.mxu0
        %v1562 = vadd.f32 %v1503, %v1561
        %1563 = vmatmul.bf16.gmra.mxu0 %v648
        %v1564 = vpop.f32.mrf.mxu0
        %v1565 = vadd.f32 %v1506, %v1564
        %v1566 = vpop.f32.mrf.mxu0
        %v1567 = vadd.f32 %v1508, %v1566
        %1568 = vdwg.mxu0
        %1569 = vmatpush.bf16.msra.mxu0 0
        %1570 = vmatpush.bf16.msra.mxu0 0
        %1571 = vmatpush.bf16.msra.mxu0 0
        %1572 = vmatpush.bf16.msra.mxu0 0
        %1573 = vmatpush.bf16.msra.mxu0 0
        %1574 = vmatpush.bf16.msra.mxu0 0
        %1575 = vmatpush.bf16.msra.mxu0 %v1378
        %1576 = vmatpush.bf16.msra.mxu0 %v1208
        %1577 = vmatmul.bf16.gmra.mxu0 %v1345
        %v1578 = vpop.f32.mrf.mxu0
        %v1579 = vadd.f32 %v1520, %v1578
        %v1580 = vpop.f32.mrf.mxu0
        %v1581 = vadd.f32 %v1522, %v1580
        %1582 = vmatmul.bf16.gmra.mxu0 %v1348
        %v1583 = vpop.f32.mrf.mxu0
        %v1584 = vadd.f32 %v1525, %v1583
        %v1585 = vpop.f32.mrf.mxu0
        %v1586 = vadd.f32 %v1527, %v1585
        %1587 = vmatmul.bf16.gmra.mxu0 %v1351
        %v1588 = vpop.f32.mrf.mxu0
        %v1589 = vadd.f32 %v1530, %v1588
        %v1590 = vpop.f32.mrf.mxu0
        %v1591 = vadd.f32 %v1532, %v1590
        %1592 = vmatmul.bf16.gmra.mxu0 %v1354
        %v1593 = vpop.f32.mrf.mxu0
        %v1594 = vadd.f32 %v1535, %v1593
        %v1595 = vpop.f32.mrf.mxu0
        %v1596 = vadd.f32 %v1537, %v1595
        %1597 = vmatmul.bf16.gmra.mxu0 %v1357
        %v1598 = vpop.f32.mrf.mxu0
        %v1599 = vadd.f32 %v1540, %v1598
        %v1600 = vpop.f32.mrf.mxu0
        %v1601 = vadd.f32 %v1542, %v1600
        %1602 = vmatmul.bf16.gmra.mxu0 %v1360
        %v1603 = vpop.f32.mrf.mxu0
        %v1604 = vadd.f32 %v1545, %v1603
        %v1605 = vpop.f32.mrf.mxu0
        %v1606 = vadd.f32 %v1547, %v1605
        %1607 = vmatmul.bf16.gmra.mxu0 %v1363
        %v1608 = vpop.f32.mrf.mxu0
        %v1609 = vadd.f32 %v1550, %v1608
        %v1610 = vpop.f32.mrf.mxu0
        %v1611 = vadd.f32 %v1552, %v1610
        %1612 = vmatmul.bf16.gmra.mxu0 %v1366
        %v1613 = vpop.f32.mrf.mxu0
        %v1614 = vadd.f32 %v1555, %v1613
        %v1615 = vpop.f32.mrf.mxu0
        %v1616 = vadd.f32 %v1557, %v1615
        %1617 = vmatmul.bf16.gmra.mxu0 %v1369
        %v1618 = vpop.f32.mrf.mxu0
        %v1619 = vadd.f32 %v1560, %v1618
        %v1620 = vpop.f32.mrf.mxu0
        %v1621 = vadd.f32 %v1562, %v1620
        %1622 = vmatmul.bf16.gmra.mxu0 %v1372
        %v1623 = vpop.f32.mrf.mxu0
        %v1624 = vadd.f32 %v1565, %v1623
        %v1625 = vpop.f32.mrf.mxu0
        %v1626 = vadd.f32 %v1567, %v1625
        %1627 = vdwg.mxu0
        %1628 = vmatpush.bf16.msra.mxu0 %v1124
        %1629 = vmatpush.bf16.msra.mxu0 %v1119
        %1630 = vmatpush.bf16.msra.mxu0 %v1114
        %1631 = vmatpush.bf16.msra.mxu0 %v1109
        %1632 = vmatpush.bf16.msra.mxu0 %v1104
        %1633 = vmatpush.bf16.msra.mxu0 %v1099
        %1634 = vmatpush.bf16.msra.mxu0 %v1094
        %1635 = vmatpush.bf16.msra.mxu0 %v1089
        %1636 = vmatmul.bf16.gmra.mxu0 %v610
        %v1637 = vpop.f32.mrf.mxu0
        %v1638 = vadd.f32 0.0, %v1637
        %v1639 = vpop.f32.mrf.mxu0
        %v1640 = vadd.f32 0.0, %v1639
        %1641 = vmatmul.bf16.gmra.mxu0 %v614
        %v1642 = vpop.f32.mrf.mxu0
        %v1643 = vadd.f32 0.0, %v1642
        %v1644 = vpop.f32.mrf.mxu0
        %v1645 = vadd.f32 0.0, %v1644
        %1646 = vmatmul.bf16.gmra.mxu0 %v618
        %v1647 = vpop.f32.mrf.mxu0
        %v1648 = vadd.f32 0.0, %v1647
        %v1649 = vpop.f32.mrf.mxu0
        %v1650 = vadd.f32 0.0, %v1649
        %1651 = vmatmul.bf16.gmra.mxu0 %v622
        %v1652 = vpop.f32.mrf.mxu0
        %v1653 = vadd.f32 0.0, %v1652
        %v1654 = vpop.f32.mrf.mxu0
        %v1655 = vadd.f32 0.0, %v1654
        %1656 = vmatmul.bf16.gmra.mxu0 %v626
        %v1657 = vpop.f32.mrf.mxu0
        %v1658 = vadd.f32 0.0, %v1657
        %v1659 = vpop.f32.mrf.mxu0
        %v1660 = vadd.f32 0.0, %v1659
        %1661 = vmatmul.bf16.gmra.mxu0 %v630
        %v1662 = vpop.f32.mrf.mxu0
        %v1663 = vadd.f32 0.0, %v1662
        %v1664 = vpop.f32.mrf.mxu0
        %v1665 = vadd.f32 0.0, %v1664
        %1666 = vmatmul.bf16.gmra.mxu0 %v634
        %v1667 = vpop.f32.mrf.mxu0
        %v1668 = vadd.f32 0.0, %v1667
        %v1669 = vpop.f32.mrf.mxu0
        %v1670 = vadd.f32 0.0, %v1669
        %1671 = vmatmul.bf16.gmra.mxu0 %v638
        %v1672 = vpop.f32.mrf.mxu0
        %v1673 = vadd.f32 0.0, %v1672
        %v1674 = vpop.f32.mrf.mxu0
        %v1675 = vadd.f32 0.0, %v1674
        %1676 = vmatmul.bf16.gmra.mxu0 %v642
        %v1677 = vpop.f32.mrf.mxu0
        %v1678 = vadd.f32 0.0, %v1677
        %v1679 = vpop.f32.mrf.mxu0
        %v1680 = vadd.f32 0.0, %v1679
        %1681 = vmatmul.bf16.gmra.mxu0 %v646
        %v1682 = vpop.f32.mrf.mxu0
        %v1683 = vadd.f32 0.0, %v1682
        %v1684 = vpop.f32.mrf.mxu0
        %v1685 = vadd.f32 0.0, %v1684
        %1686 = vdwg.mxu0
        %1687 = vmatpush.bf16.msra.mxu0 %v1164
        %1688 = vmatpush.bf16.msra.mxu0 %v1159
        %1689 = vmatpush.bf16.msra.mxu0 %v1154
        %1690 = vmatpush.bf16.msra.mxu0 %v1149
        %1691 = vmatpush.bf16.msra.mxu0 %v1144
        %1692 = vmatpush.bf16.msra.mxu0 %v1139
        %1693 = vmatpush.bf16.msra.mxu0 %v1134
        %1694 = vmatpush.bf16.msra.mxu0 %v1129
        %1695 = vmatmul.bf16.gmra.mxu0 %v611
        %v1696 = vpop.f32.mrf.mxu0
        %v1697 = vadd.f32 %v1638, %v1696
        %v1698 = vpop.f32.mrf.mxu0
        %v1699 = vadd.f32 %v1640, %v1698
        %1700 = vmatmul.bf16.gmra.mxu0 %v615
        %v1701 = vpop.f32.mrf.mxu0
        %v1702 = vadd.f32 %v1643, %v1701
        %v1703 = vpop.f32.mrf.mxu0
        %v1704 = vadd.f32 %v1645, %v1703
        %1705 = vmatmul.bf16.gmra.mxu0 %v619
        %v1706 = vpop.f32.mrf.mxu0
        %v1707 = vadd.f32 %v1648, %v1706
        %v1708 = vpop.f32.mrf.mxu0
        %v1709 = vadd.f32 %v1650, %v1708
        %1710 = vmatmul.bf16.gmra.mxu0 %v623
        %v1711 = vpop.f32.mrf.mxu0
        %v1712 = vadd.f32 %v1653, %v1711
        %v1713 = vpop.f32.mrf.mxu0
        %v1714 = vadd.f32 %v1655, %v1713
        %1715 = vmatmul.bf16.gmra.mxu0 %v627
        %v1716 = vpop.f32.mrf.mxu0
        %v1717 = vadd.f32 %v1658, %v1716
        %v1718 = vpop.f32.mrf.mxu0
        %v1719 = vadd.f32 %v1660, %v1718
        %1720 = vmatmul.bf16.gmra.mxu0 %v631
        %v1721 = vpop.f32.mrf.mxu0
        %v1722 = vadd.f32 %v1663, %v1721
        %v1723 = vpop.f32.mrf.mxu0
        %v1724 = vadd.f32 %v1665, %v1723
        %1725 = vmatmul.bf16.gmra.mxu0 %v635
        %v1726 = vpop.f32.mrf.mxu0
        %v1727 = vadd.f32 %v1668, %v1726
        %v1728 = vpop.f32.mrf.mxu0
        %v1729 = vadd.f32 %v1670, %v1728
        %1730 = vmatmul.bf16.gmra.mxu0 %v639
        %v1731 = vpop.f32.mrf.mxu0
        %v1732 = vadd.f32 %v1673, %v1731
        %v1733 = vpop.f32.mrf.mxu0
        %v1734 = vadd.f32 %v1675, %v1733
        %1735 = vmatmul.bf16.gmra.mxu0 %v643
        %v1736 = vpop.f32.mrf.mxu0
        %v1737 = vadd.f32 %v1678, %v1736
        %v1738 = vpop.f32.mrf.mxu0
        %v1739 = vadd.f32 %v1680, %v1738
        %1740 = vmatmul.bf16.gmra.mxu0 %v647
        %v1741 = vpop.f32.mrf.mxu0
        %v1742 = vadd.f32 %v1683, %v1741
        %v1743 = vpop.f32.mrf.mxu0
        %v1744 = vadd.f32 %v1685, %v1743
        %1745 = vdwg.mxu0
        %1746 = vmatpush.bf16.msra.mxu0 %v1204
        %1747 = vmatpush.bf16.msra.mxu0 %v1199
        %1748 = vmatpush.bf16.msra.mxu0 %v1194
        %1749 = vmatpush.bf16.msra.mxu0 %v1189
        %1750 = vmatpush.bf16.msra.mxu0 %v1184
        %1751 = vmatpush.bf16.msra.mxu0 %v1179
        %1752 = vmatpush.bf16.msra.mxu0 %v1174
        %1753 = vmatpush.bf16.msra.mxu0 %v1169
        %1754 = vmatmul.bf16.gmra.mxu0 %v612
        %v1755 = vpop.f32.mrf.mxu0
        %v1756 = vadd.f32 %v1697, %v1755
        %v1757 = vpop.f32.mrf.mxu0
        %v1758 = vadd.f32 %v1699, %v1757
        %1759 = vmatmul.bf16.gmra.mxu0 %v616
        %v1760 = vpop.f32.mrf.mxu0
        %v1761 = vadd.f32 %v1702, %v1760
        %v1762 = vpop.f32.mrf.mxu0
        %v1763 = vadd.f32 %v1704, %v1762
        %1764 = vmatmul.bf16.gmra.mxu0 %v620
        %v1765 = vpop.f32.mrf.mxu0
        %v1766 = vadd.f32 %v1707, %v1765
        %v1767 = vpop.f32.mrf.mxu0
        %v1768 = vadd.f32 %v1709, %v1767
        %1769 = vmatmul.bf16.gmra.mxu0 %v624
        %v1770 = vpop.f32.mrf.mxu0
        %v1771 = vadd.f32 %v1712, %v1770
        %v1772 = vpop.f32.mrf.mxu0
        %v1773 = vadd.f32 %v1714, %v1772
        %1774 = vmatmul.bf16.gmra.mxu0 %v628
        %v1775 = vpop.f32.mrf.mxu0
        %v1776 = vadd.f32 %v1717, %v1775
        %v1777 = vpop.f32.mrf.mxu0
        %v1778 = vadd.f32 %v1719, %v1777
        %1779 = vmatmul.bf16.gmra.mxu0 %v632
        %v1780 = vpop.f32.mrf.mxu0
        %v1781 = vadd.f32 %v1722, %v1780
        %v1782 = vpop.f32.mrf.mxu0
        %v1783 = vadd.f32 %v1724, %v1782
        %1784 = vmatmul.bf16.gmra.mxu0 %v636
        %v1785 = vpop.f32.mrf.mxu0
        %v1786 = vadd.f32 %v1727, %v1785
        %v1787 = vpop.f32.mrf.mxu0
        %v1788 = vadd.f32 %v1729, %v1787
        %1789 = vmatmul.bf16.gmra.mxu0 %v640
        %v1790 = vpop.f32.mrf.mxu0
        %v1791 = vadd.f32 %v1732, %v1790
        %v1792 = vpop.f32.mrf.mxu0
        %v1793 = vadd.f32 %v1734, %v1792
        %1794 = vmatmul.bf16.gmra.mxu0 %v644
        %v1795 = vpop.f32.mrf.mxu0
        %v1796 = vadd.f32 %v1737, %v1795
        %v1797 = vpop.f32.mrf.mxu0
        %v1798 = vadd.f32 %v1739, %v1797
        %1799 = vmatmul.bf16.gmra.mxu0 %v648
        %v1800 = vpop.f32.mrf.mxu0
        %v1801 = vadd.f32 %v1742, %v1800
        %v1802 = vpop.f32.mrf.mxu0
        %v1803 = vadd.f32 %v1744, %v1802
        %1804 = vdwg.mxu0
        %1805 = vmatpush.bf16.msra.mxu0 0
        %1806 = vmatpush.bf16.msra.mxu0 0
        %1807 = vmatpush.bf16.msra.mxu0 0
        %1808 = vmatpush.bf16.msra.mxu0 0
        %1809 = vmatpush.bf16.msra.mxu0 0
        %1810 = vmatpush.bf16.msra.mxu0 0
        %1811 = vmatpush.bf16.msra.mxu0 %v1381
        %1812 = vmatpush.bf16.msra.mxu0 %v1209
        %1813 = vmatmul.bf16.gmra.mxu0 %v1345
        %v1814 = vpop.f32.mrf.mxu0
        %v1815 = vadd.f32 %v1756, %v1814
        %v1816 = vpop.f32.mrf.mxu0
        %v1817 = vadd.f32 %v1758, %v1816
        %1818 = vmatmul.bf16.gmra.mxu0 %v1348
        %v1819 = vpop.f32.mrf.mxu0
        %v1820 = vadd.f32 %v1761, %v1819
        %v1821 = vpop.f32.mrf.mxu0
        %v1822 = vadd.f32 %v1763, %v1821
        %1823 = vmatmul.bf16.gmra.mxu0 %v1351
        %v1824 = vpop.f32.mrf.mxu0
        %v1825 = vadd.f32 %v1766, %v1824
        %v1826 = vpop.f32.mrf.mxu0
        %v1827 = vadd.f32 %v1768, %v1826
        %1828 = vmatmul.bf16.gmra.mxu0 %v1354
        %v1829 = vpop.f32.mrf.mxu0
        %v1830 = vadd.f32 %v1771, %v1829
        %v1831 = vpop.f32.mrf.mxu0
        %v1832 = vadd.f32 %v1773, %v1831
        %1833 = vmatmul.bf16.gmra.mxu0 %v1357
        %v1834 = vpop.f32.mrf.mxu0
        %v1835 = vadd.f32 %v1776, %v1834
        %v1836 = vpop.f32.mrf.mxu0
        %v1837 = vadd.f32 %v1778, %v1836
        %1838 = vmatmul.bf16.gmra.mxu0 %v1360
        %v1839 = vpop.f32.mrf.mxu0
        %v1840 = vadd.f32 %v1781, %v1839
        %v1841 = vpop.f32.mrf.mxu0
        %v1842 = vadd.f32 %v1783, %v1841
        %1843 = vmatmul.bf16.gmra.mxu0 %v1363
        %v1844 = vpop.f32.mrf.mxu0
        %v1845 = vadd.f32 %v1786, %v1844
        %v1846 = vpop.f32.mrf.mxu0
        %v1847 = vadd.f32 %v1788, %v1846
        %1848 = vmatmul.bf16.gmra.mxu0 %v1366
        %v1849 = vpop.f32.mrf.mxu0
        %v1850 = vadd.f32 %v1791, %v1849
        %v1851 = vpop.f32.mrf.mxu0
        %v1852 = vadd.f32 %v1793, %v1851
        %1853 = vmatmul.bf16.gmra.mxu0 %v1369
        %v1854 = vpop.f32.mrf.mxu0
        %v1855 = vadd.f32 %v1796, %v1854
        %v1856 = vpop.f32.mrf.mxu0
        %v1857 = vadd.f32 %v1798, %v1856
        %1858 = vmatmul.bf16.gmra.mxu0 %v1372
        %v1859 = vpop.f32.mrf.mxu0
        %v1860 = vadd.f32 %v1801, %v1859
        %v1861 = vpop.f32.mrf.mxu0
        %v1862 = vadd.f32 %v1803, %v1861
        %1863 = vdwg.mxu0
        %1864 = vmatpush.bf16.msra.mxu0 %v1125
        %1865 = vmatpush.bf16.msra.mxu0 %v1120
        %1866 = vmatpush.bf16.msra.mxu0 %v1115
        %1867 = vmatpush.bf16.msra.mxu0 %v1110
        %1868 = vmatpush.bf16.msra.mxu0 %v1105
        %1869 = vmatpush.bf16.msra.mxu0 %v1100
        %1870 = vmatpush.bf16.msra.mxu0 %v1095
        %1871 = vmatpush.bf16.msra.mxu0 %v1090
        %1872 = vmatmul.bf16.gmra.mxu0 %v610
        %v1873 = vpop.f32.mrf.mxu0
        %v1874 = vadd.f32 0.0, %v1873
        %v1875 = vpop.f32.mrf.mxu0
        %v1876 = vadd.f32 0.0, %v1875
        %1877 = vmatmul.bf16.gmra.mxu0 %v614
        %v1878 = vpop.f32.mrf.mxu0
        %v1879 = vadd.f32 0.0, %v1878
        %v1880 = vpop.f32.mrf.mxu0
        %v1881 = vadd.f32 0.0, %v1880
        %1882 = vmatmul.bf16.gmra.mxu0 %v618
        %v1883 = vpop.f32.mrf.mxu0
        %v1884 = vadd.f32 0.0, %v1883
        %v1885 = vpop.f32.mrf.mxu0
        %v1886 = vadd.f32 0.0, %v1885
        %1887 = vmatmul.bf16.gmra.mxu0 %v622
        %v1888 = vpop.f32.mrf.mxu0
        %v1889 = vadd.f32 0.0, %v1888
        %v1890 = vpop.f32.mrf.mxu0
        %v1891 = vadd.f32 0.0, %v1890
        %1892 = vmatmul.bf16.gmra.mxu0 %v626
        %v1893 = vpop.f32.mrf.mxu0
        %v1894 = vadd.f32 0.0, %v1893
        %v1895 = vpop.f32.mrf.mxu0
        %v1896 = vadd.f32 0.0, %v1895
        %1897 = vmatmul.bf16.gmra.mxu0 %v630
        %v1898 = vpop.f32.mrf.mxu0
        %v1899 = vadd.f32 0.0, %v1898
        %v1900 = vpop.f32.mrf.mxu0
        %v1901 = vadd.f32 0.0, %v1900
        %1902 = vmatmul.bf16.gmra.mxu0 %v634
        %v1903 = vpop.f32.mrf.mxu0
        %v1904 = vadd.f32 0.0, %v1903
        %v1905 = vpop.f32.mrf.mxu0
        %v1906 = vadd.f32 0.0, %v1905
        %1907 = vmatmul.bf16.gmra.mxu0 %v638
        %v1908 = vpop.f32.mrf.mxu0
        %v1909 = vadd.f32 0.0, %v1908
        %v1910 = vpop.f32.mrf.mxu0
        %v1911 = vadd.f32 0.0, %v1910
        %1912 = vmatmul.bf16.gmra.mxu0 %v642
        %v1913 = vpop.f32.mrf.mxu0
        %v1914 = vadd.f32 0.0, %v1913
        %v1915 = vpop.f32.mrf.mxu0
        %v1916 = vadd.f32 0.0, %v1915
        %1917 = vmatmul.bf16.gmra.mxu0 %v646
        %v1918 = vpop.f32.mrf.mxu0
        %v1919 = vadd.f32 0.0, %v1918
        %v1920 = vpop.f32.mrf.mxu0
        %v1921 = vadd.f32 0.0, %v1920
        %1922 = vdwg.mxu0
        %1923 = vmatpush.bf16.msra.mxu0 %v1165
        %1924 = vmatpush.bf16.msra.mxu0 %v1160
        %1925 = vmatpush.bf16.msra.mxu0 %v1155
        %1926 = vmatpush.bf16.msra.mxu0 %v1150
        %1927 = vmatpush.bf16.msra.mxu0 %v1145
        %1928 = vmatpush.bf16.msra.mxu0 %v1140
        %1929 = vmatpush.bf16.msra.mxu0 %v1135
        %1930 = vmatpush.bf16.msra.mxu0 %v1130
        %1931 = vmatmul.bf16.gmra.mxu0 %v611
        %v1932 = vpop.f32.mrf.mxu0
        %v1933 = vadd.f32 %v1874, %v1932
        %v1934 = vpop.f32.mrf.mxu0
        %v1935 = vadd.f32 %v1876, %v1934
        %1936 = vmatmul.bf16.gmra.mxu0 %v615
        %v1937 = vpop.f32.mrf.mxu0
        %v1938 = vadd.f32 %v1879, %v1937
        %v1939 = vpop.f32.mrf.mxu0
        %v1940 = vadd.f32 %v1881, %v1939
        %1941 = vmatmul.bf16.gmra.mxu0 %v619
        %v1942 = vpop.f32.mrf.mxu0
        %v1943 = vadd.f32 %v1884, %v1942
        %v1944 = vpop.f32.mrf.mxu0
        %v1945 = vadd.f32 %v1886, %v1944
        %1946 = vmatmul.bf16.gmra.mxu0 %v623
        %v1947 = vpop.f32.mrf.mxu0
        %v1948 = vadd.f32 %v1889, %v1947
        %v1949 = vpop.f32.mrf.mxu0
        %v1950 = vadd.f32 %v1891, %v1949
        %1951 = vmatmul.bf16.gmra.mxu0 %v627
        %v1952 = vpop.f32.mrf.mxu0
        %v1953 = vadd.f32 %v1894, %v1952
        %v1954 = vpop.f32.mrf.mxu0
        %v1955 = vadd.f32 %v1896, %v1954
        %1956 = vmatmul.bf16.gmra.mxu0 %v631
        %v1957 = vpop.f32.mrf.mxu0
        %v1958 = vadd.f32 %v1899, %v1957
        %v1959 = vpop.f32.mrf.mxu0
        %v1960 = vadd.f32 %v1901, %v1959
        %1961 = vmatmul.bf16.gmra.mxu0 %v635
        %v1962 = vpop.f32.mrf.mxu0
        %v1963 = vadd.f32 %v1904, %v1962
        %v1964 = vpop.f32.mrf.mxu0
        %v1965 = vadd.f32 %v1906, %v1964
        %1966 = vmatmul.bf16.gmra.mxu0 %v639
        %v1967 = vpop.f32.mrf.mxu0
        %v1968 = vadd.f32 %v1909, %v1967
        %v1969 = vpop.f32.mrf.mxu0
        %v1970 = vadd.f32 %v1911, %v1969
        %1971 = vmatmul.bf16.gmra.mxu0 %v643
        %v1972 = vpop.f32.mrf.mxu0
        %v1973 = vadd.f32 %v1914, %v1972
        %v1974 = vpop.f32.mrf.mxu0
        %v1975 = vadd.f32 %v1916, %v1974
        %1976 = vmatmul.bf16.gmra.mxu0 %v647
        %v1977 = vpop.f32.mrf.mxu0
        %v1978 = vadd.f32 %v1919, %v1977
        %v1979 = vpop.f32.mrf.mxu0
        %v1980 = vadd.f32 %v1921, %v1979
        %1981 = vdwg.mxu0
        %1982 = vmatpush.bf16.msra.mxu0 %v1205
        %1983 = vmatpush.bf16.msra.mxu0 %v1200
        %1984 = vmatpush.bf16.msra.mxu0 %v1195
        %1985 = vmatpush.bf16.msra.mxu0 %v1190
        %1986 = vmatpush.bf16.msra.mxu0 %v1185
        %1987 = vmatpush.bf16.msra.mxu0 %v1180
        %1988 = vmatpush.bf16.msra.mxu0 %v1175
        %1989 = vmatpush.bf16.msra.mxu0 %v1170
        %1990 = vmatmul.bf16.gmra.mxu0 %v612
        %v1991 = vpop.f32.mrf.mxu0
        %v1992 = vadd.f32 %v1933, %v1991
        %v1993 = vpop.f32.mrf.mxu0
        %v1994 = vadd.f32 %v1935, %v1993
        %1995 = vmatmul.bf16.gmra.mxu0 %v616
        %v1996 = vpop.f32.mrf.mxu0
        %v1997 = vadd.f32 %v1938, %v1996
        %v1998 = vpop.f32.mrf.mxu0
        %v1999 = vadd.f32 %v1940, %v1998
        %2000 = vmatmul.bf16.gmra.mxu0 %v620
        %v2001 = vpop.f32.mrf.mxu0
        %v2002 = vadd.f32 %v1943, %v2001
        %v2003 = vpop.f32.mrf.mxu0
        %v2004 = vadd.f32 %v1945, %v2003
        %2005 = vmatmul.bf16.gmra.mxu0 %v624
        %v2006 = vpop.f32.mrf.mxu0
        %v2007 = vadd.f32 %v1948, %v2006
        %v2008 = vpop.f32.mrf.mxu0
        %v2009 = vadd.f32 %v1950, %v2008
        %2010 = vmatmul.bf16.gmra.mxu0 %v628
        %v2011 = vpop.f32.mrf.mxu0
        %v2012 = vadd.f32 %v1953, %v2011
        %v2013 = vpop.f32.mrf.mxu0
        %v2014 = vadd.f32 %v1955, %v2013
        %2015 = vmatmul.bf16.gmra.mxu0 %v632
        %v2016 = vpop.f32.mrf.mxu0
        %v2017 = vadd.f32 %v1958, %v2016
        %v2018 = vpop.f32.mrf.mxu0
        %v2019 = vadd.f32 %v1960, %v2018
        %2020 = vmatmul.bf16.gmra.mxu0 %v636
        %v2021 = vpop.f32.mrf.mxu0
        %v2022 = vadd.f32 %v1963, %v2021
        %v2023 = vpop.f32.mrf.mxu0
        %v2024 = vadd.f32 %v1965, %v2023
        %2025 = vmatmul.bf16.gmra.mxu0 %v640
        %v2026 = vpop.f32.mrf.mxu0
        %v2027 = vadd.f32 %v1968, %v2026
        %v2028 = vpop.f32.mrf.mxu0
        %v2029 = vadd.f32 %v1970, %v2028
        %2030 = vmatmul.bf16.gmra.mxu0 %v644
        %v2031 = vpop.f32.mrf.mxu0
        %v2032 = vadd.f32 %v1973, %v2031
        %v2033 = vpop.f32.mrf.mxu0
        %v2034 = vadd.f32 %v1975, %v2033
        %2035 = vmatmul.bf16.gmra.mxu0 %v648
        %v2036 = vpop.f32.mrf.mxu0
        %v2037 = vadd.f32 %v1978, %v2036
        %v2038 = vpop.f32.mrf.mxu0
        %v2039 = vadd.f32 %v1980, %v2038
        %2040 = vdwg.mxu0
        %2041 = vmatpush.bf16.msra.mxu0 0
        %2042 = vmatpush.bf16.msra.mxu0 0
        %2043 = vmatpush.bf16.msra.mxu0 0
        %2044 = vmatpush.bf16.msra.mxu0 0
        %2045 = vmatpush.bf16.msra.mxu0 0
        %2046 = vmatpush.bf16.msra.mxu0 0
        %2047 = vmatpush.bf16.msra.mxu0 %v1384
        %2048 = vmatpush.bf16.msra.mxu0 %v1210
        %2049 = vmatmul.bf16.gmra.mxu0 %v1345
        %v2050 = vpop.f32.mrf.mxu0
        %v2051 = vadd.f32 %v1992, %v2050
        %v2052 = vpop.f32.mrf.mxu0
        %v2053 = vadd.f32 %v1994, %v2052
        %2054 = vmatmul.bf16.gmra.mxu0 %v1348
        %v2055 = vpop.f32.mrf.mxu0
        %v2056 = vadd.f32 %v1997, %v2055
        %v2057 = vpop.f32.mrf.mxu0
        %v2058 = vadd.f32 %v1999, %v2057
        %2059 = vmatmul.bf16.gmra.mxu0 %v1351
        %v2060 = vpop.f32.mrf.mxu0
        %v2061 = vadd.f32 %v2002, %v2060
        %v2062 = vpop.f32.mrf.mxu0
        %v2063 = vadd.f32 %v2004, %v2062
        %2064 = vmatmul.bf16.gmra.mxu0 %v1354
        %v2065 = vpop.f32.mrf.mxu0
        %v2066 = vadd.f32 %v2007, %v2065
        %v2067 = vpop.f32.mrf.mxu0
        %v2068 = vadd.f32 %v2009, %v2067
        %2069 = vmatmul.bf16.gmra.mxu0 %v1357
        %v2070 = vpop.f32.mrf.mxu0
        %v2071 = vadd.f32 %v2012, %v2070
        %v2072 = vpop.f32.mrf.mxu0
        %v2073 = vadd.f32 %v2014, %v2072
        %2074 = vmatmul.bf16.gmra.mxu0 %v1360
        %v2075 = vpop.f32.mrf.mxu0
        %v2076 = vadd.f32 %v2017, %v2075
        %v2077 = vpop.f32.mrf.mxu0
        %v2078 = vadd.f32 %v2019, %v2077
        %2079 = vmatmul.bf16.gmra.mxu0 %v1363
        %v2080 = vpop.f32.mrf.mxu0
        %v2081 = vadd.f32 %v2022, %v2080
        %v2082 = vpop.f32.mrf.mxu0
        %v2083 = vadd.f32 %v2024, %v2082
        %2084 = vmatmul.bf16.gmra.mxu0 %v1366
        %v2085 = vpop.f32.mrf.mxu0
        %v2086 = vadd.f32 %v2027, %v2085
        %v2087 = vpop.f32.mrf.mxu0
        %v2088 = vadd.f32 %v2029, %v2087
        %2089 = vmatmul.bf16.gmra.mxu0 %v1369
        %v2090 = vpop.f32.mrf.mxu0
        %v2091 = vadd.f32 %v2032, %v2090
        %v2092 = vpop.f32.mrf.mxu0
        %v2093 = vadd.f32 %v2034, %v2092
        %2094 = vmatmul.bf16.gmra.mxu0 %v1372
        %v2095 = vpop.f32.mrf.mxu0
        %v2096 = vadd.f32 %v2037, %v2095
        %v2097 = vpop.f32.mrf.mxu0
        %v2098 = vadd.f32 %v2039, %v2097
        %2099 = vdwg.mxu0
        %2100 = vmatpush.bf16.msra.mxu0 %v1126
        %2101 = vmatpush.bf16.msra.mxu0 %v1121
        %2102 = vmatpush.bf16.msra.mxu0 %v1116
        %2103 = vmatpush.bf16.msra.mxu0 %v1111
        %2104 = vmatpush.bf16.msra.mxu0 %v1106
        %2105 = vmatpush.bf16.msra.mxu0 %v1101
        %2106 = vmatpush.bf16.msra.mxu0 %v1096
        %2107 = vmatpush.bf16.msra.mxu0 %v1091
        %2108 = vmatmul.bf16.gmra.mxu0 %v610
        %v2109 = vpop.f32.mrf.mxu0
        %v2110 = vadd.f32 0.0, %v2109
        %v2111 = vpop.f32.mrf.mxu0
        %v2112 = vadd.f32 0.0, %v2111
        %2113 = vmatmul.bf16.gmra.mxu0 %v614
        %v2114 = vpop.f32.mrf.mxu0
        %v2115 = vadd.f32 0.0, %v2114
        %v2116 = vpop.f32.mrf.mxu0
        %v2117 = vadd.f32 0.0, %v2116
        %2118 = vmatmul.bf16.gmra.mxu0 %v618
        %v2119 = vpop.f32.mrf.mxu0
        %v2120 = vadd.f32 0.0, %v2119
        %v2121 = vpop.f32.mrf.mxu0
        %v2122 = vadd.f32 0.0, %v2121
        %2123 = vmatmul.bf16.gmra.mxu0 %v622
        %v2124 = vpop.f32.mrf.mxu0
        %v2125 = vadd.f32 0.0, %v2124
        %v2126 = vpop.f32.mrf.mxu0
        %v2127 = vadd.f32 0.0, %v2126
        %2128 = vmatmul.bf16.gmra.mxu0 %v626
        %v2129 = vpop.f32.mrf.mxu0
        %v2130 = vadd.f32 0.0, %v2129
        %v2131 = vpop.f32.mrf.mxu0
        %v2132 = vadd.f32 0.0, %v2131
        %2133 = vmatmul.bf16.gmra.mxu0 %v630
        %v2134 = vpop.f32.mrf.mxu0
        %v2135 = vadd.f32 0.0, %v2134
        %v2136 = vpop.f32.mrf.mxu0
        %v2137 = vadd.f32 0.0, %v2136
        %2138 = vmatmul.bf16.gmra.mxu0 %v634
        %v2139 = vpop.f32.mrf.mxu0
        %v2140 = vadd.f32 0.0, %v2139
        %v2141 = vpop.f32.mrf.mxu0
        %v2142 = vadd.f32 0.0, %v2141
        %2143 = vmatmul.bf16.gmra.mxu0 %v638
        %v2144 = vpop.f32.mrf.mxu0
        %v2145 = vadd.f32 0.0, %v2144
        %v2146 = vpop.f32.mrf.mxu0
        %v2147 = vadd.f32 0.0, %v2146
        %2148 = vmatmul.bf16.gmra.mxu0 %v642
        %v2149 = vpop.f32.mrf.mxu0
        %v2150 = vadd.f32 0.0, %v2149
        %v2151 = vpop.f32.mrf.mxu0
        %v2152 = vadd.f32 0.0, %v2151
        %2153 = vmatmul.bf16.gmra.mxu0 %v646
        %v2154 = vpop.f32.mrf.mxu0
        %v2155 = vadd.f32 0.0, %v2154
        %v2156 = vpop.f32.mrf.mxu0
        %v2157 = vadd.f32 0.0, %v2156
        %2158 = vdwg.mxu0
        %2159 = vmatpush.bf16.msra.mxu0 %v1166
        %2160 = vmatpush.bf16.msra.mxu0 %v1161
        %2161 = vmatpush.bf16.msra.mxu0 %v1156
        %2162 = vmatpush.bf16.msra.mxu0 %v1151
        %2163 = vmatpush.bf16.msra.mxu0 %v1146
        %2164 = vmatpush.bf16.msra.mxu0 %v1141
        %2165 = vmatpush.bf16.msra.mxu0 %v1136
        %2166 = vmatpush.bf16.msra.mxu0 %v1131
        %2167 = vmatmul.bf16.gmra.mxu0 %v611
        %v2168 = vpop.f32.mrf.mxu0
        %v2169 = vadd.f32 %v2110, %v2168
        %v2170 = vpop.f32.mrf.mxu0
        %v2171 = vadd.f32 %v2112, %v2170
        %2172 = vmatmul.bf16.gmra.mxu0 %v615
        %v2173 = vpop.f32.mrf.mxu0
        %v2174 = vadd.f32 %v2115, %v2173
        %v2175 = vpop.f32.mrf.mxu0
        %v2176 = vadd.f32 %v2117, %v2175
        %2177 = vmatmul.bf16.gmra.mxu0 %v619
        %v2178 = vpop.f32.mrf.mxu0
        %v2179 = vadd.f32 %v2120, %v2178
        %v2180 = vpop.f32.mrf.mxu0
        %v2181 = vadd.f32 %v2122, %v2180
        %2182 = vmatmul.bf16.gmra.mxu0 %v623
        %v2183 = vpop.f32.mrf.mxu0
        %v2184 = vadd.f32 %v2125, %v2183
        %v2185 = vpop.f32.mrf.mxu0
        %v2186 = vadd.f32 %v2127, %v2185
        %2187 = vmatmul.bf16.gmra.mxu0 %v627
        %v2188 = vpop.f32.mrf.mxu0
        %v2189 = vadd.f32 %v2130, %v2188
        %v2190 = vpop.f32.mrf.mxu0
        %v2191 = vadd.f32 %v2132, %v2190
        %2192 = vmatmul.bf16.gmra.mxu0 %v631
        %v2193 = vpop.f32.mrf.mxu0
        %v2194 = vadd.f32 %v2135, %v2193
        %v2195 = vpop.f32.mrf.mxu0
        %v2196 = vadd.f32 %v2137, %v2195
        %2197 = vmatmul.bf16.gmra.mxu0 %v635
        %v2198 = vpop.f32.mrf.mxu0
        %v2199 = vadd.f32 %v2140, %v2198
        %v2200 = vpop.f32.mrf.mxu0
        %v2201 = vadd.f32 %v2142, %v2200
        %2202 = vmatmul.bf16.gmra.mxu0 %v639
        %v2203 = vpop.f32.mrf.mxu0
        %v2204 = vadd.f32 %v2145, %v2203
        %v2205 = vpop.f32.mrf.mxu0
        %v2206 = vadd.f32 %v2147, %v2205
        %2207 = vmatmul.bf16.gmra.mxu0 %v643
        %v2208 = vpop.f32.mrf.mxu0
        %v2209 = vadd.f32 %v2150, %v2208
        %v2210 = vpop.f32.mrf.mxu0
        %v2211 = vadd.f32 %v2152, %v2210
        %2212 = vmatmul.bf16.gmra.mxu0 %v647
        %v2213 = vpop.f32.mrf.mxu0
        %v2214 = vadd.f32 %v2155, %v2213
        %v2215 = vpop.f32.mrf.mxu0
        %v2216 = vadd.f32 %v2157, %v2215
        %2217 = vdwg.mxu0
        %2218 = vmatpush.bf16.msra.mxu0 %v1206
        %2219 = vmatpush.bf16.msra.mxu0 %v1201
        %2220 = vmatpush.bf16.msra.mxu0 %v1196
        %2221 = vmatpush.bf16.msra.mxu0 %v1191
        %2222 = vmatpush.bf16.msra.mxu0 %v1186
        %2223 = vmatpush.bf16.msra.mxu0 %v1181
        %2224 = vmatpush.bf16.msra.mxu0 %v1176
        %2225 = vmatpush.bf16.msra.mxu0 %v1171
        %2226 = vmatmul.bf16.gmra.mxu0 %v612
        %v2227 = vpop.f32.mrf.mxu0
        %v2228 = vadd.f32 %v2169, %v2227
        %v2229 = vpop.f32.mrf.mxu0
        %v2230 = vadd.f32 %v2171, %v2229
        %2231 = vmatmul.bf16.gmra.mxu0 %v616
        %v2232 = vpop.f32.mrf.mxu0
        %v2233 = vadd.f32 %v2174, %v2232
        %v2234 = vpop.f32.mrf.mxu0
        %v2235 = vadd.f32 %v2176, %v2234
        %2236 = vmatmul.bf16.gmra.mxu0 %v620
        %v2237 = vpop.f32.mrf.mxu0
        %v2238 = vadd.f32 %v2179, %v2237
        %v2239 = vpop.f32.mrf.mxu0
        %v2240 = vadd.f32 %v2181, %v2239
        %2241 = vmatmul.bf16.gmra.mxu0 %v624
        %v2242 = vpop.f32.mrf.mxu0
        %v2243 = vadd.f32 %v2184, %v2242
        %v2244 = vpop.f32.mrf.mxu0
        %v2245 = vadd.f32 %v2186, %v2244
        %2246 = vmatmul.bf16.gmra.mxu0 %v628
        %v2247 = vpop.f32.mrf.mxu0
        %v2248 = vadd.f32 %v2189, %v2247
        %v2249 = vpop.f32.mrf.mxu0
        %v2250 = vadd.f32 %v2191, %v2249
        %2251 = vmatmul.bf16.gmra.mxu0 %v632
        %v2252 = vpop.f32.mrf.mxu0
        %v2253 = vadd.f32 %v2194, %v2252
        %v2254 = vpop.f32.mrf.mxu0
        %v2255 = vadd.f32 %v2196, %v2254
        %2256 = vmatmul.bf16.gmra.mxu0 %v636
        %v2257 = vpop.f32.mrf.mxu0
        %v2258 = vadd.f32 %v2199, %v2257
        %v2259 = vpop.f32.mrf.mxu0
        %v2260 = vadd.f32 %v2201, %v2259
        %2261 = vmatmul.bf16.gmra.mxu0 %v640
        %v2262 = vpop.f32.mrf.mxu0
        %v2263 = vadd.f32 %v2204, %v2262
        %v2264 = vpop.f32.mrf.mxu0
        %v2265 = vadd.f32 %v2206, %v2264
        %2266 = vmatmul.bf16.gmra.mxu0 %v644
        %v2267 = vpop.f32.mrf.mxu0
        %v2268 = vadd.f32 %v2209, %v2267
        %v2269 = vpop.f32.mrf.mxu0
        %v2270 = vadd.f32 %v2211, %v2269
        %2271 = vmatmul.bf16.gmra.mxu0 %v648
        %v2272 = vpop.f32.mrf.mxu0
        %v2273 = vadd.f32 %v2214, %v2272
        %v2274 = vpop.f32.mrf.mxu0
        %v2275 = vadd.f32 %v2216, %v2274
        %2276 = vdwg.mxu0
        %2277 = vmatpush.bf16.msra.mxu0 0
        %2278 = vmatpush.bf16.msra.mxu0 0
        %2279 = vmatpush.bf16.msra.mxu0 0
        %2280 = vmatpush.bf16.msra.mxu0 0
        %2281 = vmatpush.bf16.msra.mxu0 0
        %2282 = vmatpush.bf16.msra.mxu0 0
        %2283 = vmatpush.bf16.msra.mxu0 %v1387
        %2284 = vmatpush.bf16.msra.mxu0 %v1211
        %2285 = vmatmul.bf16.gmra.mxu0 %v1345
        %v2286 = vpop.f32.mrf.mxu0
        %v2287 = vadd.f32 %v2228, %v2286
        %v2288 = vpop.f32.mrf.mxu0
        %v2289 = vadd.f32 %v2230, %v2288
        %2290 = vmatmul.bf16.gmra.mxu0 %v1348
        %v2291 = vpop.f32.mrf.mxu0
        %v2292 = vadd.f32 %v2233, %v2291
        %v2293 = vpop.f32.mrf.mxu0
        %v2294 = vadd.f32 %v2235, %v2293
        %2295 = vmatmul.bf16.gmra.mxu0 %v1351
        %v2296 = vpop.f32.mrf.mxu0
        %v2297 = vadd.f32 %v2238, %v2296
        %v2298 = vpop.f32.mrf.mxu0
        %v2299 = vadd.f32 %v2240, %v2298
        %2300 = vmatmul.bf16.gmra.mxu0 %v1354
        %v2301 = vpop.f32.mrf.mxu0
        %v2302 = vadd.f32 %v2243, %v2301
        %v2303 = vpop.f32.mrf.mxu0
        %v2304 = vadd.f32 %v2245, %v2303
        %2305 = vmatmul.bf16.gmra.mxu0 %v1357
        %v2306 = vpop.f32.mrf.mxu0
        %v2307 = vadd.f32 %v2248, %v2306
        %v2308 = vpop.f32.mrf.mxu0
        %v2309 = vadd.f32 %v2250, %v2308
        %2310 = vmatmul.bf16.gmra.mxu0 %v1360
        %v2311 = vpop.f32.mrf.mxu0
        %v2312 = vadd.f32 %v2253, %v2311
        %v2313 = vpop.f32.mrf.mxu0
        %v2314 = vadd.f32 %v2255, %v2313
        %2315 = vmatmul.bf16.gmra.mxu0 %v1363
        %v2316 = vpop.f32.mrf.mxu0
        %v2317 = vadd.f32 %v2258, %v2316
        %v2318 = vpop.f32.mrf.mxu0
        %v2319 = vadd.f32 %v2260, %v2318
        %2320 = vmatmul.bf16.gmra.mxu0 %v1366
        %v2321 = vpop.f32.mrf.mxu0
        %v2322 = vadd.f32 %v2263, %v2321
        %v2323 = vpop.f32.mrf.mxu0
        %v2324 = vadd.f32 %v2265, %v2323
        %2325 = vmatmul.bf16.gmra.mxu0 %v1369
        %v2326 = vpop.f32.mrf.mxu0
        %v2327 = vadd.f32 %v2268, %v2326
        %v2328 = vpop.f32.mrf.mxu0
        %v2329 = vadd.f32 %v2270, %v2328
        %2330 = vmatmul.bf16.gmra.mxu0 %v1372
        %v2331 = vpop.f32.mrf.mxu0
        %v2332 = vadd.f32 %v2273, %v2331
        %v2333 = vpop.f32.mrf.mxu0
        %v2334 = vadd.f32 %v2275, %v2333
        %2335 = vdwg.mxu0
        %2336 = vmatpush.bf16.msra.mxu0 %v1127
        %2337 = vmatpush.bf16.msra.mxu0 %v1122
        %2338 = vmatpush.bf16.msra.mxu0 %v1117
        %2339 = vmatpush.bf16.msra.mxu0 %v1112
        %2340 = vmatpush.bf16.msra.mxu0 %v1107
        %2341 = vmatpush.bf16.msra.mxu0 %v1102
        %2342 = vmatpush.bf16.msra.mxu0 %v1097
        %2343 = vmatpush.bf16.msra.mxu0 %v1092
        %2344 = vmatmul.bf16.gmra.mxu0 %v610
        %v2345 = vpop.f32.mrf.mxu0
        %v2346 = vadd.f32 0.0, %v2345
        %v2347 = vpop.f32.mrf.mxu0
        %v2348 = vadd.f32 0.0, %v2347
        %2349 = vmatmul.bf16.gmra.mxu0 %v614
        %v2350 = vpop.f32.mrf.mxu0
        %v2351 = vadd.f32 0.0, %v2350
        %v2352 = vpop.f32.mrf.mxu0
        %v2353 = vadd.f32 0.0, %v2352
        %2354 = vmatmul.bf16.gmra.mxu0 %v618
        %v2355 = vpop.f32.mrf.mxu0
        %v2356 = vadd.f32 0.0, %v2355
        %v2357 = vpop.f32.mrf.mxu0
        %v2358 = vadd.f32 0.0, %v2357
        %2359 = vmatmul.bf16.gmra.mxu0 %v622
        %v2360 = vpop.f32.mrf.mxu0
        %v2361 = vadd.f32 0.0, %v2360
        %v2362 = vpop.f32.mrf.mxu0
        %v2363 = vadd.f32 0.0, %v2362
        %2364 = vmatmul.bf16.gmra.mxu0 %v626
        %v2365 = vpop.f32.mrf.mxu0
        %v2366 = vadd.f32 0.0, %v2365
        %v2367 = vpop.f32.mrf.mxu0
        %v2368 = vadd.f32 0.0, %v2367
        %2369 = vmatmul.bf16.gmra.mxu0 %v630
        %v2370 = vpop.f32.mrf.mxu0
        %v2371 = vadd.f32 0.0, %v2370
        %v2372 = vpop.f32.mrf.mxu0
        %v2373 = vadd.f32 0.0, %v2372
        %2374 = vmatmul.bf16.gmra.mxu0 %v634
        %v2375 = vpop.f32.mrf.mxu0
        %v2376 = vadd.f32 0.0, %v2375
        %v2377 = vpop.f32.mrf.mxu0
        %v2378 = vadd.f32 0.0, %v2377
        %2379 = vmatmul.bf16.gmra.mxu0 %v638
        %v2380 = vpop.f32.mrf.mxu0
        %v2381 = vadd.f32 0.0, %v2380
        %v2382 = vpop.f32.mrf.mxu0
        %v2383 = vadd.f32 0.0, %v2382
        %2384 = vmatmul.bf16.gmra.mxu0 %v642
        %v2385 = vpop.f32.mrf.mxu0
        %v2386 = vadd.f32 0.0, %v2385
        %v2387 = vpop.f32.mrf.mxu0
        %v2388 = vadd.f32 0.0, %v2387
        %2389 = vmatmul.bf16.gmra.mxu0 %v646
        %v2390 = vpop.f32.mrf.mxu0
        %v2391 = vadd.f32 0.0, %v2390
        %v2392 = vpop.f32.mrf.mxu0
        %v2393 = vadd.f32 0.0, %v2392
        %2394 = vdwg.mxu0
        %2395 = vmatpush.bf16.msra.mxu0 %v1167
        %2396 = vmatpush.bf16.msra.mxu0 %v1162
        %2397 = vmatpush.bf16.msra.mxu0 %v1157
        %2398 = vmatpush.bf16.msra.mxu0 %v1152
        %2399 = vmatpush.bf16.msra.mxu0 %v1147
        %2400 = vmatpush.bf16.msra.mxu0 %v1142
        %2401 = vmatpush.bf16.msra.mxu0 %v1137
        %2402 = vmatpush.bf16.msra.mxu0 %v1132
        %2403 = vmatmul.bf16.gmra.mxu0 %v611
        %v2404 = vpop.f32.mrf.mxu0
        %v2405 = vadd.f32 %v2346, %v2404
        %v2406 = vpop.f32.mrf.mxu0
        %v2407 = vadd.f32 %v2348, %v2406
        %2408 = vmatmul.bf16.gmra.mxu0 %v615
        %v2409 = vpop.f32.mrf.mxu0
        %v2410 = vadd.f32 %v2351, %v2409
        %v2411 = vpop.f32.mrf.mxu0
        %v2412 = vadd.f32 %v2353, %v2411
        %2413 = vmatmul.bf16.gmra.mxu0 %v619
        %v2414 = vpop.f32.mrf.mxu0
        %v2415 = vadd.f32 %v2356, %v2414
        %v2416 = vpop.f32.mrf.mxu0
        %v2417 = vadd.f32 %v2358, %v2416
        %2418 = vmatmul.bf16.gmra.mxu0 %v623
        %v2419 = vpop.f32.mrf.mxu0
        %v2420 = vadd.f32 %v2361, %v2419
        %v2421 = vpop.f32.mrf.mxu0
        %v2422 = vadd.f32 %v2363, %v2421
        %2423 = vmatmul.bf16.gmra.mxu0 %v627
        %v2424 = vpop.f32.mrf.mxu0
        %v2425 = vadd.f32 %v2366, %v2424
        %v2426 = vpop.f32.mrf.mxu0
        %v2427 = vadd.f32 %v2368, %v2426
        %2428 = vmatmul.bf16.gmra.mxu0 %v631
        %v2429 = vpop.f32.mrf.mxu0
        %v2430 = vadd.f32 %v2371, %v2429
        %v2431 = vpop.f32.mrf.mxu0
        %v2432 = vadd.f32 %v2373, %v2431
        %2433 = vmatmul.bf16.gmra.mxu0 %v635
        %v2434 = vpop.f32.mrf.mxu0
        %v2435 = vadd.f32 %v2376, %v2434
        %v2436 = vpop.f32.mrf.mxu0
        %v2437 = vadd.f32 %v2378, %v2436
        %2438 = vmatmul.bf16.gmra.mxu0 %v639
        %v2439 = vpop.f32.mrf.mxu0
        %v2440 = vadd.f32 %v2381, %v2439
        %v2441 = vpop.f32.mrf.mxu0
        %v2442 = vadd.f32 %v2383, %v2441
        %2443 = vmatmul.bf16.gmra.mxu0 %v643
        %v2444 = vpop.f32.mrf.mxu0
        %v2445 = vadd.f32 %v2386, %v2444
        %v2446 = vpop.f32.mrf.mxu0
        %v2447 = vadd.f32 %v2388, %v2446
        %2448 = vmatmul.bf16.gmra.mxu0 %v647
        %v2449 = vpop.f32.mrf.mxu0
        %v2450 = vadd.f32 %v2391, %v2449
        %v2451 = vpop.f32.mrf.mxu0
        %v2452 = vadd.f32 %v2393, %v2451
        %2453 = vdwg.mxu0
        %2454 = vmatpush.bf16.msra.mxu0 %v1207
        %2455 = vmatpush.bf16.msra.mxu0 %v1202
        %2456 = vmatpush.bf16.msra.mxu0 %v1197
        %2457 = vmatpush.bf16.msra.mxu0 %v1192
        %2458 = vmatpush.bf16.msra.mxu0 %v1187
        %2459 = vmatpush.bf16.msra.mxu0 %v1182
        %2460 = vmatpush.bf16.msra.mxu0 %v1177
        %2461 = vmatpush.bf16.msra.mxu0 %v1172
        %2462 = vmatmul.bf16.gmra.mxu0 %v612
        %v2463 = vpop.f32.mrf.mxu0
        %v2464 = vadd.f32 %v2405, %v2463
        %v2465 = vpop.f32.mrf.mxu0
        %v2466 = vadd.f32 %v2407, %v2465
        %2467 = vmatmul.bf16.gmra.mxu0 %v616
        %v2468 = vpop.f32.mrf.mxu0
        %v2469 = vadd.f32 %v2410, %v2468
        %v2470 = vpop.f32.mrf.mxu0
        %v2471 = vadd.f32 %v2412, %v2470
        %2472 = vmatmul.bf16.gmra.mxu0 %v620
        %v2473 = vpop.f32.mrf.mxu0
        %v2474 = vadd.f32 %v2415, %v2473
        %v2475 = vpop.f32.mrf.mxu0
        %v2476 = vadd.f32 %v2417, %v2475
        %2477 = vmatmul.bf16.gmra.mxu0 %v624
        %v2478 = vpop.f32.mrf.mxu0
        %v2479 = vadd.f32 %v2420, %v2478
        %v2480 = vpop.f32.mrf.mxu0
        %v2481 = vadd.f32 %v2422, %v2480
        %2482 = vmatmul.bf16.gmra.mxu0 %v628
        %v2483 = vpop.f32.mrf.mxu0
        %v2484 = vadd.f32 %v2425, %v2483
        %v2485 = vpop.f32.mrf.mxu0
        %v2486 = vadd.f32 %v2427, %v2485
        %2487 = vmatmul.bf16.gmra.mxu0 %v632
        %v2488 = vpop.f32.mrf.mxu0
        %v2489 = vadd.f32 %v2430, %v2488
        %v2490 = vpop.f32.mrf.mxu0
        %v2491 = vadd.f32 %v2432, %v2490
        %2492 = vmatmul.bf16.gmra.mxu0 %v636
        %v2493 = vpop.f32.mrf.mxu0
        %v2494 = vadd.f32 %v2435, %v2493
        %v2495 = vpop.f32.mrf.mxu0
        %v2496 = vadd.f32 %v2437, %v2495
        %2497 = vmatmul.bf16.gmra.mxu0 %v640
        %v2498 = vpop.f32.mrf.mxu0
        %v2499 = vadd.f32 %v2440, %v2498
        %v2500 = vpop.f32.mrf.mxu0
        %v2501 = vadd.f32 %v2442, %v2500
        %2502 = vmatmul.bf16.gmra.mxu0 %v644
        %v2503 = vpop.f32.mrf.mxu0
        %v2504 = vadd.f32 %v2445, %v2503
        %v2505 = vpop.f32.mrf.mxu0
        %v2506 = vadd.f32 %v2447, %v2505
        %2507 = vmatmul.bf16.gmra.mxu0 %v648
        %v2508 = vpop.f32.mrf.mxu0
        %v2509 = vadd.f32 %v2450, %v2508
        %v2510 = vpop.f32.mrf.mxu0
        %v2511 = vadd.f32 %v2452, %v2510
        %2512 = vdwg.mxu0
        %2513 = vmatpush.bf16.msra.mxu0 0
        %2514 = vmatpush.bf16.msra.mxu0 0
        %2515 = vmatpush.bf16.msra.mxu0 0
        %2516 = vmatpush.bf16.msra.mxu0 0
        %2517 = vmatpush.bf16.msra.mxu0 0
        %2518 = vmatpush.bf16.msra.mxu0 0
        %2519 = vmatpush.bf16.msra.mxu0 %v1390
        %2520 = vmatpush.bf16.msra.mxu0 %v1212
        %2521 = vmatmul.bf16.gmra.mxu0 %v1345
        %v2522 = vpop.f32.mrf.mxu0
        %v2523 = vadd.f32 %v2464, %v2522
        %v2524 = vpop.f32.mrf.mxu0
        %v2525 = vadd.f32 %v2466, %v2524
        %2526 = vmatmul.bf16.gmra.mxu0 %v1348
        %v2527 = vpop.f32.mrf.mxu0
        %v2528 = vadd.f32 %v2469, %v2527
        %v2529 = vpop.f32.mrf.mxu0
        %v2530 = vadd.f32 %v2471, %v2529
        %2531 = vmatmul.bf16.gmra.mxu0 %v1351
        %v2532 = vpop.f32.mrf.mxu0
        %v2533 = vadd.f32 %v2474, %v2532
        %v2534 = vpop.f32.mrf.mxu0
        %v2535 = vadd.f32 %v2476, %v2534
        %2536 = vmatmul.bf16.gmra.mxu0 %v1354
        %v2537 = vpop.f32.mrf.mxu0
        %v2538 = vadd.f32 %v2479, %v2537
        %v2539 = vpop.f32.mrf.mxu0
        %v2540 = vadd.f32 %v2481, %v2539
        %2541 = vmatmul.bf16.gmra.mxu0 %v1357
        %v2542 = vpop.f32.mrf.mxu0
        %v2543 = vadd.f32 %v2484, %v2542
        %v2544 = vpop.f32.mrf.mxu0
        %v2545 = vadd.f32 %v2486, %v2544
        %2546 = vmatmul.bf16.gmra.mxu0 %v1360
        %v2547 = vpop.f32.mrf.mxu0
        %v2548 = vadd.f32 %v2489, %v2547
        %v2549 = vpop.f32.mrf.mxu0
        %v2550 = vadd.f32 %v2491, %v2549
        %2551 = vmatmul.bf16.gmra.mxu0 %v1363
        %v2552 = vpop.f32.mrf.mxu0
        %v2553 = vadd.f32 %v2494, %v2552
        %v2554 = vpop.f32.mrf.mxu0
        %v2555 = vadd.f32 %v2496, %v2554
        %2556 = vmatmul.bf16.gmra.mxu0 %v1366
        %v2557 = vpop.f32.mrf.mxu0
        %v2558 = vadd.f32 %v2499, %v2557
        %v2559 = vpop.f32.mrf.mxu0
        %v2560 = vadd.f32 %v2501, %v2559
        %2561 = vmatmul.bf16.gmra.mxu0 %v1369
        %v2562 = vpop.f32.mrf.mxu0
        %v2563 = vadd.f32 %v2504, %v2562
        %v2564 = vpop.f32.mrf.mxu0
        %v2565 = vadd.f32 %v2506, %v2564
        %2566 = vmatmul.bf16.gmra.mxu0 %v1372
        %v2567 = vpop.f32.mrf.mxu0
        %v2568 = vadd.f32 %v2509, %v2567
        %v2569 = vpop.f32.mrf.mxu0
        %v2570 = vadd.f32 %v2511, %v2569
        %2571 = vdwg.mxu0
        %v2572 = vmul.f32 %v1579, %v1579
        %v2573 = vmul.f32 %v1815, %v1815
        %v2574 = vmul.f32 %v2051, %v2051
        %v2575 = vmul.f32 %v1581, %v1581
        %v2576 = vmul.f32 %v1817, %v1817
        %v2577 = vmul.f32 %v2053, %v2053
        %v2578 = vmul.f32 %v1584, %v1584
        %v2579 = vmul.f32 %v1820, %v1820
        %v2580 = vmul.f32 %v2056, %v2056
        %v2581 = vmul.f32 %v1586, %v1586
        %v2582 = vmul.f32 %v1822, %v1822
        %v2583 = vmul.f32 %v2058, %v2058
        %v2584 = vmul.f32 %v1589, %v1589
        %v2585 = vmul.f32 %v1825, %v1825
        %v2586 = vmul.f32 %v2061, %v2061
        %v2587 = vmul.f32 %v1591, %v1591
        %v2588 = vmul.f32 %v1827, %v1827
        %v2589 = vmul.f32 %v2063, %v2063
        %v2590 = vmul.f32 %v1594, %v1594
        %v2591 = vmul.f32 %v1830, %v1830
        %v2592 = vmul.f32 %v2066, %v2066
        %v2593 = vmul.f32 %v1596, %v1596
        %v2594 = vmul.f32 %v1832, %v1832
        %v2595 = vmul.f32 %v2068, %v2068
        %v2596 = vmul.f32 %v1599, %v1599
        %v2597 = vmul.f32 %v1835, %v1835
        %v2598 = vmul.f32 %v2071, %v2071
        %v2599 = vmul.f32 %v1601, %v1601
        %v2600 = vmul.f32 %v1837, %v1837
        %v2601 = vmul.f32 %v2073, %v2073
        %v2602 = vmul.f32 %v1604, %v1604
        %v2603 = vmul.f32 %v1840, %v1840
        %v2604 = vmul.f32 %v2076, %v2076
        %v2605 = vmul.f32 %v1606, %v1606
        %v2606 = vmul.f32 %v1842, %v1842
        %v2607 = vmul.f32 %v2078, %v2078
        %v2608 = vmul.f32 %v1609, %v1609
        %v2609 = vmul.f32 %v1845, %v1845
        %v2610 = vmul.f32 %v2081, %v2081
        %v2611 = vmul.f32 %v1611, %v1611
        %v2612 = vmul.f32 %v1847, %v1847
        %v2613 = vmul.f32 %v2083, %v2083
        %v2614 = vmul.f32 %v1614, %v1614
        %v2615 = vmul.f32 %v1850, %v1850
        %v2616 = vmul.f32 %v2086, %v2086
        %v2617 = vmul.f32 %v1616, %v1616
        %v2618 = vmul.f32 %v1852, %v1852
        %v2619 = vmul.f32 %v2088, %v2088
        %v2620 = vmul.f32 %v1619, %v1619
        %v2621 = vmul.f32 %v1855, %v1855
        %v2622 = vmul.f32 %v2091, %v2091
        %v2623 = vmul.f32 %v1621, %v1621
        %v2624 = vmul.f32 %v1857, %v1857
        %v2625 = vmul.f32 %v2093, %v2093
        %v2626 = vmul.f32 %v1624, %v1624
        %v2627 = vmul.f32 %v1860, %v1860
        %v2628 = vmul.f32 %v2096, %v2096
        %v2629 = vmul.f32 %v1626, %v1626
        %v2630 = vmul.f32 %v1862, %v1862
        %v2631 = vmul.f32 %v2098, %v2098
        %v2632 = vmul.f32 %v2287, %v2287
        %v2633 = vmul.f32 %v2523, %v2523
        %v2634 = vmul.f32 %v2289, %v2289
        %v2635 = vmul.f32 %v2525, %v2525
        %v2636 = vmul.f32 %v2292, %v2292
        %v2637 = vmul.f32 %v2528, %v2528
        %v2638 = vmul.f32 %v2294, %v2294
        %v2639 = vmul.f32 %v2530, %v2530
        %v2640 = vmul.f32 %v2297, %v2297
        %v2641 = vmul.f32 %v2533, %v2533
        %v2642 = vmul.f32 %v2299, %v2299
        %v2643 = vmul.f32 %v2535, %v2535
        %v2644 = vmul.f32 %v2302, %v2302
        %v2645 = vmul.f32 %v2538, %v2538
        %v2646 = vmul.f32 %v2304, %v2304
        %v2647 = vmul.f32 %v2540, %v2540
        %v2648 = vmul.f32 %v2307, %v2307
        %v2649 = vmul.f32 %v2543, %v2543
        %v2650 = vmul.f32 %v2309, %v2309
        %v2651 = vmul.f32 %v2545, %v2545
        %v2652 = vmul.f32 %v2312, %v2312
        %v2653 = vmul.f32 %v2548, %v2548
        %v2654 = vmul.f32 %v2314, %v2314
        %v2655 = vmul.f32 %v2550, %v2550
        %v2656 = vmul.f32 %v2317, %v2317
        %v2657 = vmul.f32 %v2553, %v2553
        %v2658 = vmul.f32 %v2319, %v2319
        %v2659 = vmul.f32 %v2555, %v2555
        %v2660 = vmul.f32 %v2322, %v2322
        %v2661 = vmul.f32 %v2558, %v2558
        %v2662 = vmul.f32 %v2324, %v2324
        %v2663 = vmul.f32 %v2560, %v2560
        %v2664 = vmul.f32 %v2327, %v2327
        %v2665 = vmul.f32 %v2563, %v2563
        %v2666 = vmul.f32 %v2329, %v2329
        %v2667 = vmul.f32 %v2565, %v2565
        %v2668 = vmul.f32 %v2332, %v2332
        %v2669 = vmul.f32 %v2568, %v2568
        %v2670 = vmul.f32 %v2334, %v2334
        %v2671 = vmul.f32 %v2570, %v2570
        %2732 = vrot.lane.b32.xlu0 %v2574, 127
        %v2733 = vpop.permute.xlu0 %2732
        %2734 = vrot.lane.b32.xlu0 %v2632, 127
        %v2735 = vpop.permute.xlu0 %2734
        %2736 = vrot.lane.b32.xlu0 %v2633, 127
        %v2737 = vpop.permute.xlu0 %2736
        %2738 = vrot.lane.b32.xlu0 %v2577, 127
        %v2739 = vpop.permute.xlu0 %2738
        %2740 = vrot.lane.b32.xlu0 %v2634, 127
        %v2741 = vpop.permute.xlu0 %2740
        %2742 = vrot.lane.b32.xlu0 %v2635, 127
        %v2743 = vpop.permute.xlu0 %2742
        %2744 = vrot.lane.b32.xlu0 %v2580, 127
        %v2745 = vpop.permute.xlu0 %2744
        %2746 = vrot.lane.b32.xlu0 %v2636, 127
        %v2747 = vpop.permute.xlu0 %2746
        %2748 = vrot.lane.b32.xlu0 %v2637, 127
        %v2749 = vpop.permute.xlu0 %2748
        %2750 = vrot.lane.b32.xlu0 %v2583, 127
        %v2751 = vpop.permute.xlu0 %2750
        %2752 = vrot.lane.b32.xlu0 %v2638, 127
        %v2753 = vpop.permute.xlu0 %2752
        %2754 = vrot.lane.b32.xlu0 %v2639, 127
        %v2755 = vpop.permute.xlu0 %2754
        %2756 = vrot.lane.b32.xlu0 %v2586, 127
        %v2757 = vpop.permute.xlu0 %2756
        %2758 = vrot.lane.b32.xlu0 %v2640, 127
        %v2759 = vpop.permute.xlu0 %2758
        %2760 = vrot.lane.b32.xlu0 %v2641, 127
        %v2761 = vpop.permute.xlu0 %2760
        %2762 = vrot.lane.b32.xlu0 %v2589, 127
        %v2763 = vpop.permute.xlu0 %2762
        %2764 = vrot.lane.b32.xlu0 %v2642, 127
        %v2765 = vpop.permute.xlu0 %2764
        %2766 = vrot.lane.b32.xlu0 %v2643, 127
        %v2767 = vpop.permute.xlu0 %2766
        %2768 = vrot.lane.b32.xlu0 %v2592, 127
        %v2769 = vpop.permute.xlu0 %2768
        %2770 = vrot.lane.b32.xlu0 %v2644, 127
        %v2771 = vpop.permute.xlu0 %2770
        %2772 = vrot.lane.b32.xlu0 %v2645, 127
        %v2773 = vpop.permute.xlu0 %2772
        %2774 = vrot.lane.b32.xlu0 %v2595, 127
        %v2775 = vpop.permute.xlu0 %2774
        %2776 = vrot.lane.b32.xlu0 %v2646, 127
        %v2777 = vpop.permute.xlu0 %2776
        %2778 = vrot.lane.b32.xlu0 %v2647, 127
        %v2779 = vpop.permute.xlu0 %2778
        %2780 = vrot.lane.b32.xlu0 %v2598, 127
        %v2781 = vpop.permute.xlu0 %2780
        %2782 = vrot.lane.b32.xlu0 %v2648, 127
        %v2783 = vpop.permute.xlu0 %2782
        %2784 = vrot.lane.b32.xlu0 %v2649, 127
        %v2785 = vpop.permute.xlu0 %2784
        %2786 = vrot.lane.b32.xlu0 %v2601, 127
        %v2787 = vpop.permute.xlu0 %2786
        %2788 = vrot.lane.b32.xlu0 %v2650, 127
        %v2789 = vpop.permute.xlu0 %2788
        %2790 = vrot.lane.b32.xlu0 %v2651, 127
        %v2791 = vpop.permute.xlu0 %2790
        %2792 = vrot.lane.b32.xlu0 %v2604, 127
        %v2793 = vpop.permute.xlu0 %2792
        %2794 = vrot.lane.b32.xlu0 %v2652, 127
        %v2795 = vpop.permute.xlu0 %2794
        %2796 = vrot.lane.b32.xlu0 %v2653, 127
        %v2797 = vpop.permute.xlu0 %2796
        %2798 = vrot.lane.b32.xlu0 %v2607, 127
        %v2799 = vpop.permute.xlu0 %2798
        %2800 = vrot.lane.b32.xlu0 %v2654, 127
        %v2801 = vpop.permute.xlu0 %2800
        %2802 = vrot.lane.b32.xlu0 %v2655, 127
        %v2803 = vpop.permute.xlu0 %2802
        %2804 = vrot.lane.b32.xlu0 %v2610, 127
        %v2805 = vpop.permute.xlu0 %2804
        %2806 = vrot.lane.b32.xlu0 %v2656, 127
        %v2807 = vpop.permute.xlu0 %2806
        %2808 = vrot.lane.b32.xlu0 %v2657, 127
        %v2809 = vpop.permute.xlu0 %2808
        %2810 = vrot.lane.b32.xlu0 %v2613, 127
        %v2811 = vpop.permute.xlu0 %2810
        %2812 = vrot.lane.b32.xlu0 %v2658, 127
        %v2813 = vpop.permute.xlu0 %2812
        %2814 = vrot.lane.b32.xlu0 %v2659, 127
        %v2815 = vpop.permute.xlu0 %2814
        %2816 = vrot.lane.b32.xlu0 %v2616, 127
        %v2817 = vpop.permute.xlu0 %2816
        %2818 = vrot.lane.b32.xlu0 %v2660, 127
        %v2819 = vpop.permute.xlu0 %2818
        %2820 = vrot.lane.b32.xlu0 %v2661, 127
        %v2821 = vpop.permute.xlu0 %2820
        %2822 = vrot.lane.b32.xlu0 %v2619, 127
        %v2823 = vpop.permute.xlu0 %2822
        %2824 = vrot.lane.b32.xlu0 %v2662, 127
        %v2825 = vpop.permute.xlu0 %2824
        %2826 = vrot.lane.b32.xlu0 %v2663, 127
        %v2827 = vpop.permute.xlu0 %2826
        %2828 = vrot.lane.b32.xlu0 %v2622, 127
        %v2829 = vpop.permute.xlu0 %2828
        %2830 = vrot.lane.b32.xlu0 %v2664, 127
        %v2831 = vpop.permute.xlu0 %2830
        %2832 = vrot.lane.b32.xlu0 %v2665, 127
        %v2833 = vpop.permute.xlu0 %2832
        %2834 = vrot.lane.b32.xlu0 %v2625, 127
        %v2835 = vpop.permute.xlu0 %2834
        %2836 = vrot.lane.b32.xlu0 %v2666, 127
        %v2837 = vpop.permute.xlu0 %2836
        %2838 = vrot.lane.b32.xlu0 %v2667, 127
        %v2839 = vpop.permute.xlu0 %2838
        %2840 = vrot.lane.b32.xlu0 %v2628, 127
        %v2841 = vpop.permute.xlu0 %2840
        %2842 = vrot.lane.b32.xlu0 %v2668, 127
        %v2843 = vpop.permute.xlu0 %2842
        %2844 = vrot.lane.b32.xlu0 %v2669, 127
        %v2845 = vpop.permute.xlu0 %2844
        %2846 = vrot.lane.b32.xlu0 %v2631, 127
        %v2847 = vpop.permute.xlu0 %2846
        %2848 = vrot.lane.b32.xlu0 %v2670, 127
        %v2849 = vpop.permute.xlu0 %2848
        %2850 = vrot.lane.b32.xlu0 %v2671, 127
        %v2851 = vpop.permute.xlu0 %2850
        %vm2852 = vcmask 1039360
        %v2853 = vsel %vm2852, %v2733, %v2735
        %v2854 = vsel %vm2852, %v2735, %v2737
        %v2855 = vsel %vm2852, %v2739, %v2741
        %v2856 = vsel %vm2852, %v2741, %v2743
        %v2857 = vsel %vm2852, %v2745, %v2747
        %v2858 = vsel %vm2852, %v2747, %v2749
        %v2859 = vsel %vm2852, %v2751, %v2753
        %v2860 = vsel %vm2852, %v2753, %v2755
        %v2861 = vsel %vm2852, %v2757, %v2759
        %v2862 = vsel %vm2852, %v2759, %v2761
        %v2863 = vsel %vm2852, %v2763, %v2765
        %v2864 = vsel %vm2852, %v2765, %v2767
        %v2865 = vsel %vm2852, %v2769, %v2771
        %v2866 = vsel %vm2852, %v2771, %v2773
        %v2867 = vsel %vm2852, %v2775, %v2777
        %v2868 = vsel %vm2852, %v2777, %v2779
        %v2869 = vsel %vm2852, %v2781, %v2783
        %v2870 = vsel %vm2852, %v2783, %v2785
        %v2871 = vsel %vm2852, %v2787, %v2789
        %v2872 = vsel %vm2852, %v2789, %v2791
        %v2873 = vsel %vm2852, %v2793, %v2795
        %v2874 = vsel %vm2852, %v2795, %v2797
        %v2875 = vsel %vm2852, %v2799, %v2801
        %v2876 = vsel %vm2852, %v2801, %v2803
        %v2877 = vsel %vm2852, %v2805, %v2807
        %v2878 = vsel %vm2852, %v2807, %v2809
        %v2879 = vsel %vm2852, %v2811, %v2813
        %v2880 = vsel %vm2852, %v2813, %v2815
        %v2881 = vsel %vm2852, %v2817, %v2819
        %v2882 = vsel %vm2852, %v2819, %v2821
        %v2883 = vsel %vm2852, %v2823, %v2825
        %v2884 = vsel %vm2852, %v2825, %v2827
        %v2885 = vsel %vm2852, %v2829, %v2831
        %v2886 = vsel %vm2852, %v2831, %v2833
        %v2887 = vsel %vm2852, %v2835, %v2837
        %v2888 = vsel %vm2852, %v2837, %v2839
        %v2889 = vsel %vm2852, %v2841, %v2843
        %v2890 = vsel %vm2852, %v2843, %v2845
        %v2891 = vsel %vm2852, %v2847, %v2849
        %v2892 = vsel %vm2852, %v2849, %v2851
        %v2953 = vadd.f32 %v2572, %v2853
        %v2954 = vadd.f32 %v2573, %v2854
        %v2955 = vadd.f32 %v2574, %v2737
        %v2956 = vadd.f32 %v2575, %v2855
        %v2957 = vadd.f32 %v2576, %v2856
        %v2958 = vadd.f32 %v2577, %v2743
        %v2959 = vadd.f32 %v2578, %v2857
        %v2960 = vadd.f32 %v2579, %v2858
        %v2961 = vadd.f32 %v2580, %v2749
        %v2962 = vadd.f32 %v2581, %v2859
        %v2963 = vadd.f32 %v2582, %v2860
        %v2964 = vadd.f32 %v2583, %v2755
        %v2965 = vadd.f32 %v2584, %v2861
        %v2966 = vadd.f32 %v2585, %v2862
        %v2967 = vadd.f32 %v2586, %v2761
        %v2968 = vadd.f32 %v2587, %v2863
        %v2969 = vadd.f32 %v2588, %v2864
        %v2970 = vadd.f32 %v2589, %v2767
        %v2971 = vadd.f32 %v2590, %v2865
        %v2972 = vadd.f32 %v2591, %v2866
        %v2973 = vadd.f32 %v2592, %v2773
        %v2974 = vadd.f32 %v2593, %v2867
        %v2975 = vadd.f32 %v2594, %v2868
        %v2976 = vadd.f32 %v2595, %v2779
        %v2977 = vadd.f32 %v2596, %v2869
        %v2978 = vadd.f32 %v2597, %v2870
        %v2979 = vadd.f32 %v2598, %v2785
        %v2980 = vadd.f32 %v2599, %v2871
        %v2981 = vadd.f32 %v2600, %v2872
        %v2982 = vadd.f32 %v2601, %v2791
        %v2983 = vadd.f32 %v2602, %v2873
        %v2984 = vadd.f32 %v2603, %v2874
        %v2985 = vadd.f32 %v2604, %v2797
        %v2986 = vadd.f32 %v2605, %v2875
        %v2987 = vadd.f32 %v2606, %v2876
        %v2988 = vadd.f32 %v2607, %v2803
        %v2989 = vadd.f32 %v2608, %v2877
        %v2990 = vadd.f32 %v2609, %v2878
        %v2991 = vadd.f32 %v2610, %v2809
        %v2992 = vadd.f32 %v2611, %v2879
        %v2993 = vadd.f32 %v2612, %v2880
        %v2994 = vadd.f32 %v2613, %v2815
        %v2995 = vadd.f32 %v2614, %v2881
        %v2996 = vadd.f32 %v2615, %v2882
        %v2997 = vadd.f32 %v2616, %v2821
        %v2998 = vadd.f32 %v2617, %v2883
        %v2999 = vadd.f32 %v2618, %v2884
        %v3000 = vadd.f32 %v2619, %v2827
        %v3001 = vadd.f32 %v2620, %v2885
        %v3002 = vadd.f32 %v2621, %v2886
        %v3003 = vadd.f32 %v2622, %v2833
        %v3004 = vadd.f32 %v2623, %v2887
        %v3005 = vadd.f32 %v2624, %v2888
        %v3006 = vadd.f32 %v2625, %v2839
        %v3007 = vadd.f32 %v2626, %v2889
        %v3008 = vadd.f32 %v2627, %v2890
        %v3009 = vadd.f32 %v2628, %v2845
        %v3010 = vadd.f32 %v2629, %v2891
        %v3011 = vadd.f32 %v2630, %v2892
        %v3012 = vadd.f32 %v2631, %v2851
        %v3013 = vpack.c.bf16 %v2956, %v2953
        %v3014 = vpack.c.bf16 %v2957, %v2954
        %v3015 = vpack.c.bf16 %v2958, %v2955
        %v3016 = vpack.c.bf16 %v2962, %v2959
        %v3017 = vpack.c.bf16 %v2963, %v2960
        %v3018 = vpack.c.bf16 %v2964, %v2961
        %v3019 = vpack.c.bf16 %v2968, %v2965
        %v3020 = vpack.c.bf16 %v2969, %v2966
        %v3021 = vpack.c.bf16 %v2970, %v2967
        %v3022 = vpack.c.bf16 %v2974, %v2971
        %v3023 = vpack.c.bf16 %v2975, %v2972
        %v3024 = vpack.c.bf16 %v2976, %v2973
        %v3025 = vpack.c.bf16 %v2980, %v2977
        %v3026 = vpack.c.bf16 %v2981, %v2978
        %v3027 = vpack.c.bf16 %v2982, %v2979
        %v3028 = vpack.c.bf16 %v2986, %v2983
        %v3029 = vpack.c.bf16 %v2987, %v2984
        %v3030 = vpack.c.bf16 %v2988, %v2985
        %v3031 = vpack.c.bf16 %v2992, %v2989
        %v3032 = vpack.c.bf16 %v2993, %v2990
        %v3033 = vpack.c.bf16 %v2994, %v2991
        %v3034 = vpack.c.bf16 %v2998, %v2995
        %v3035 = vpack.c.bf16 %v2999, %v2996
        %v3036 = vpack.c.bf16 %v3000, %v2997
        %v3037 = vpack.c.bf16 %v3004, %v3001
        %v3038 = vpack.c.bf16 %v3005, %v3002
        %v3039 = vpack.c.bf16 %v3006, %v3003
        %v3040 = vpack.c.bf16 %v3010, %v3007
        %v3041 = vpack.c.bf16 %v3011, %v3008
        %v3042 = vpack.c.bf16 %v3012, %v3009
        %v3043 = vld [vmem:[%s3] sm:$0xf]
        %v3044 = vld [vmem:[%s3 + $0x4] sm:$0xf]
        %v3045 = vld [vmem:[%s3 + $0x8] sm:$0xf]
        %v3046 = vld [vmem:[%s3 + $0xc] sm:$0xf]
        %v3047 = vld [vmem:[%s3 + $0x10] sm:$0xf]
        %v3048 = vld [vmem:[%s3 + $0x14] sm:$0xf]
        %v3049 = vld [vmem:[%s3 + $0x18] sm:$0xf]
        %v3050 = vld [vmem:[%s3 + $0x1c] sm:$0xf]
        %v3051 = vld [vmem:[%s3 + $0x20] sm:$0xf]
        %v3052 = vld [vmem:[%s3 + $0x24] sm:$0xf]
        %v3053 = vld [vmem:[%s3 + $0x28] sm:$0xf]
        %v3054 = vld [vmem:[%s3 + $0x2c] sm:$0xf]
        %v3055 = vld [vmem:[%s3 + $0x30] sm:$0xf]
        %v3056 = vld [vmem:[%s3 + $0x34] sm:$0xf]
        %v3057 = vld [vmem:[%s3 + $0x38] sm:$0xf]
        %v3058 = vld [vmem:[%s3 + $0x3c] sm:$0xf]
        %v3059 = vld [vmem:[%s3 + $0x40] sm:$0xf]
        %v3060 = vld [vmem:[%s3 + $0x44] sm:$0xf]
        %v3061 = vld [vmem:[%s3 + $0x48] sm:$0xf]
        %v3062 = vld [vmem:[%s3 + $0x4c] sm:$0xf]
        %v3063 = vld [vmem:[%s3 + $0x50] sm:$0xf]
        %v3064 = vld [vmem:[%s3 + $0x54] sm:$0xf]
        %v3065 = vld [vmem:[%s3 + $0x58] sm:$0xf]
        %v3066 = vld [vmem:[%s3 + $0x5c] sm:$0xf]
        %v3067 = vld [vmem:[%s3 + $0x60] sm:$0xf]
        %v3068 = vld [vmem:[%s3 + $0x64] sm:$0xf]
        %v3069 = vld [vmem:[%s3 + $0x68] sm:$0xf]
        %v3070 = vld [vmem:[%s3 + $0x6c] sm:$0xf]
        %v3071 = vld [vmem:[%s3 + $0x70] sm:$0xf]
        %v3072 = vld [vmem:[%s3 + $0x74] sm:$0xf]
        %v3073 = vld [vmem:[%s3 + $0x78] sm:$0xf]
        %v3074 = vld [vmem:[%s3 + $0x7c] sm:$0xf]
        %v3075 = vld [vmem:[%s3 + $0x80] sm:$0x1]
        %v3109 = vunpack.c.l.b16 %v3043
        %v3110 = vunpack.c.l.b16 %v3044
        %v3111 = vunpack.c.l.b16 %v3045
        %v3112 = vunpack.c.l.b16 %v3046
        %v3113 = vunpack.c.l.b16 %v3047
        %v3114 = vunpack.c.l.b16 %v3048
        %v3115 = vunpack.c.l.b16 %v3049
        %v3116 = vunpack.c.l.b16 %v3050
        %v3117 = vunpack.c.l.b16 %v3051
        %v3118 = vunpack.c.l.b16 %v3052
        %v3119 = vunpack.c.l.b16 %v3053
        %v3120 = vunpack.c.l.b16 %v3054
        %v3121 = vunpack.c.l.b16 %v3055
        %v3122 = vunpack.c.l.b16 %v3056
        %v3123 = vunpack.c.l.b16 %v3057
        %v3124 = vunpack.c.l.b16 %v3058
        %v3125 = vunpack.c.l.b16 %v3059
        %v3126 = vunpack.c.l.b16 %v3060
        %v3127 = vunpack.c.l.b16 %v3061
        %v3128 = vunpack.c.l.b16 %v3062
        %v3129 = vunpack.c.l.b16 %v3063
        %v3130 = vunpack.c.l.b16 %v3064
        %v3131 = vunpack.c.l.b16 %v3065
        %v3132 = vunpack.c.l.b16 %v3066
        %v3133 = vunpack.c.l.b16 %v3067
        %v3134 = vunpack.c.l.b16 %v3068
        %v3135 = vunpack.c.l.b16 %v3069
        %v3136 = vunpack.c.l.b16 %v3070
        %v3137 = vunpack.c.l.b16 %v3071
        %v3138 = vunpack.c.l.b16 %v3072
        %v3139 = vunpack.c.l.b16 %v3073
        %v3140 = vunpack.c.l.b16 %v3074
        %v3141 = vunpack.c.l.b16 %v3075
        %v3142 = vpack.c.b16 %v3110, %v3109
        %v3143 = vpack.c.b16 %v3112, %v3111
        %v3144 = vpack.c.b16 %v3114, %v3113
        %v3145 = vpack.c.b16 %v3116, %v3115
        %v3146 = vpack.c.b16 %v3118, %v3117
        %v3147 = vpack.c.b16 %v3120, %v3119
        %v3148 = vpack.c.b16 %v3122, %v3121
        %v3149 = vpack.c.b16 %v3124, %v3123
        %v3150 = vpack.c.b16 %v3126, %v3125
        %v3151 = vpack.c.b16 %v3128, %v3127
        %v3152 = vpack.c.b16 %v3130, %v3129
        %v3153 = vpack.c.b16 %v3132, %v3131
        %v3154 = vpack.c.b16 %v3134, %v3133
        %v3155 = vpack.c.b16 %v3136, %v3135
        %v3156 = vpack.c.b16 %v3138, %v3137
        %v3157 = vpack.c.b16 %v3140, %v3139
        %v3158 = vpack.c.b16 %v3141, %v3141
        %vm3175 = vcmask 7168
        %v3177 = vsel %vm3175, %v3015, 0
        %v3180 = vsel %vm3175, %v3018, 0
        %v3183 = vsel %vm3175, %v3021, 0
        %v3186 = vsel %vm3175, %v3024, 0
        %v3189 = vsel %vm3175, %v3027, 0
        %v3192 = vsel %vm3175, %v3030, 0
        %v3195 = vsel %vm3175, %v3033, 0
        %v3198 = vsel %vm3175, %v3036, 0
        %v3201 = vsel %vm3175, %v3039, 0
        %v3204 = vsel %vm3175, %v3042, 0
        %v3207 = vand.u32 %v3158, %v1376
        %3209 = vmatpush.bf16.msra.mxu0 %v3149
        %3210 = vmatpush.bf16.msra.mxu0 %v3148
        %3211 = vmatpush.bf16.msra.mxu0 %v3147
        %3212 = vmatpush.bf16.msra.mxu0 %v3146
        %3213 = vmatpush.bf16.msra.mxu0 %v3145
        %3214 = vmatpush.bf16.msra.mxu0 %v3144
        %3215 = vmatpush.bf16.msra.mxu0 %v3143
        %3216 = vmatpush.bf16.msra.mxu0 %v3142
        %3217 = vmatmul.bf16.gmra.mxu0 %v3013
        %v3218 = vpop.f32.mrf.mxu0
        %v3219 = vadd.f32 1e-10, %v3218
        %v3220 = vpop.f32.mrf.mxu0
        %v3221 = vadd.f32 1e-10, %v3220
        %3222 = vmatmul.bf16.gmra.mxu0 %v3016
        %v3223 = vpop.f32.mrf.mxu0
        %v3224 = vadd.f32 1e-10, %v3223
        %v3225 = vpop.f32.mrf.mxu0
        %v3226 = vadd.f32 1e-10, %v3225
        %3227 = vmatmul.bf16.gmra.mxu0 %v3019
        %v3228 = vpop.f32.mrf.mxu0
        %v3229 = vadd.f32 1e-10, %v3228
        %v3230 = vpop.f32.mrf.mxu0
        %v3231 = vadd.f32 1e-10, %v3230
        %3232 = vmatmul.bf16.gmra.mxu0 %v3022
        %v3233 = vpop.f32.mrf.mxu0
        %v3234 = vadd.f32 1e-10, %v3233
        %v3235 = vpop.f32.mrf.mxu0
        %v3236 = vadd.f32 1e-10, %v3235
        %3237 = vmatmul.bf16.gmra.mxu0 %v3025
        %v3238 = vpop.f32.mrf.mxu0
        %v3239 = vadd.f32 1e-10, %v3238
        %v3240 = vpop.f32.mrf.mxu0
        %v3241 = vadd.f32 1e-10, %v3240
        %3242 = vmatmul.bf16.gmra.mxu0 %v3028
        %v3243 = vpop.f32.mrf.mxu0
        %v3244 = vadd.f32 1e-10, %v3243
        %v3245 = vpop.f32.mrf.mxu0
        %v3246 = vadd.f32 1e-10, %v3245
        %3247 = vmatmul.bf16.gmra.mxu0 %v3031
        %v3248 = vpop.f32.mrf.mxu0
        %v3249 = vadd.f32 1e-10, %v3248
        %v3250 = vpop.f32.mrf.mxu0
        %v3251 = vadd.f32 1e-10, %v3250
        %3252 = vmatmul.bf16.gmra.mxu0 %v3034
        %v3253 = vpop.f32.mrf.mxu0
        %v3254 = vadd.f32 1e-10, %v3253
        %v3255 = vpop.f32.mrf.mxu0
        %v3256 = vadd.f32 1e-10, %v3255
        %3257 = vmatmul.bf16.gmra.mxu0 %v3037
        %v3258 = vpop.f32.mrf.mxu0
        %v3259 = vadd.f32 1e-10, %v3258
        %v3260 = vpop.f32.mrf.mxu0
        %v3261 = vadd.f32 1e-10, %v3260
        %3262 = vmatmul.bf16.gmra.mxu0 %v3040
        %v3263 = vpop.f32.mrf.mxu0
        %v3264 = vadd.f32 1e-10, %v3263
        %v3265 = vpop.f32.mrf.mxu0
        %v3266 = vadd.f32 1e-10, %v3265
        %3267 = vdwg.mxu0
        %3268 = vmatpush.bf16.msra.mxu0 %v3157
        %3269 = vmatpush.bf16.msra.mxu0 %v3156
        %3270 = vmatpush.bf16.msra.mxu0 %v3155
        %3271 = vmatpush.bf16.msra.mxu0 %v3154
        %3272 = vmatpush.bf16.msra.mxu0 %v3153
        %3273 = vmatpush.bf16.msra.mxu0 %v3152
        %3274 = vmatpush.bf16.msra.mxu0 %v3151
        %3275 = vmatpush.bf16.msra.mxu0 %v3150
        %3276 = vmatmul.bf16.gmra.mxu0 %v3014
        %v3277 = vpop.f32.mrf.mxu0
        %v3278 = vadd.f32 %v3219, %v3277
        %v3279 = vpop.f32.mrf.mxu0
        %v3280 = vadd.f32 %v3221, %v3279
        %3281 = vmatmul.bf16.gmra.mxu0 %v3017
        %v3282 = vpop.f32.mrf.mxu0
        %v3283 = vadd.f32 %v3224, %v3282
        %v3284 = vpop.f32.mrf.mxu0
        %v3285 = vadd.f32 %v3226, %v3284
        %3286 = vmatmul.bf16.gmra.mxu0 %v3020
        %v3287 = vpop.f32.mrf.mxu0
        %v3288 = vadd.f32 %v3229, %v3287
        %v3289 = vpop.f32.mrf.mxu0
        %v3290 = vadd.f32 %v3231, %v3289
        %3291 = vmatmul.bf16.gmra.mxu0 %v3023
        %v3292 = vpop.f32.mrf.mxu0
        %v3293 = vadd.f32 %v3234, %v3292
        %v3294 = vpop.f32.mrf.mxu0
        %v3295 = vadd.f32 %v3236, %v3294
        %3296 = vmatmul.bf16.gmra.mxu0 %v3026
        %v3297 = vpop.f32.mrf.mxu0
        %v3298 = vadd.f32 %v3239, %v3297
        %v3299 = vpop.f32.mrf.mxu0
        %v3300 = vadd.f32 %v3241, %v3299
        %3301 = vmatmul.bf16.gmra.mxu0 %v3029
        %v3302 = vpop.f32.mrf.mxu0
        %v3303 = vadd.f32 %v3244, %v3302
        %v3304 = vpop.f32.mrf.mxu0
        %v3305 = vadd.f32 %v3246, %v3304
        %3306 = vmatmul.bf16.gmra.mxu0 %v3032
        %v3307 = vpop.f32.mrf.mxu0
        %v3308 = vadd.f32 %v3249, %v3307
        %v3309 = vpop.f32.mrf.mxu0
        %v3310 = vadd.f32 %v3251, %v3309
        %3311 = vmatmul.bf16.gmra.mxu0 %v3035
        %v3312 = vpop.f32.mrf.mxu0
        %v3313 = vadd.f32 %v3254, %v3312
        %v3314 = vpop.f32.mrf.mxu0
        %v3315 = vadd.f32 %v3256, %v3314
        %3316 = vmatmul.bf16.gmra.mxu0 %v3038
        %v3317 = vpop.f32.mrf.mxu0
        %v3318 = vadd.f32 %v3259, %v3317
        %v3319 = vpop.f32.mrf.mxu0
        %v3320 = vadd.f32 %v3261, %v3319
        %3321 = vmatmul.bf16.gmra.mxu0 %v3041
        %v3322 = vpop.f32.mrf.mxu0
        %v3323 = vadd.f32 %v3264, %v3322
        %v3324 = vpop.f32.mrf.mxu0
        %v3325 = vadd.f32 %v3266, %v3324
        %3326 = vdwg.mxu0
        %3327 = vmatpush.bf16.msra.mxu0 0
        %3328 = vmatpush.bf16.msra.mxu0 0
        %3329 = vmatpush.bf16.msra.mxu0 0
        %3330 = vmatpush.bf16.msra.mxu0 0
        %3331 = vmatpush.bf16.msra.mxu0 0
        %3332 = vmatpush.bf16.msra.mxu0 0
        %3333 = vmatpush.bf16.msra.mxu0 0
        %3334 = vmatpush.bf16.msra.mxu0 %v3207
        %3335 = vmatmul.bf16.gmra.mxu0 %v3177
        %v3336 = vpop.f32.mrf.mxu0
        %v3337 = vadd.f32 %v3278, %v3336
        %v3338 = vpop.f32.mrf.mxu0
        %v3339 = vadd.f32 %v3280, %v3338
        %3340 = vmatmul.bf16.gmra.mxu0 %v3180
        %v3341 = vpop.f32.mrf.mxu0
        %v3342 = vadd.f32 %v3283, %v3341
        %v3343 = vpop.f32.mrf.mxu0
        %v3344 = vadd.f32 %v3285, %v3343
        %3345 = vmatmul.bf16.gmra.mxu0 %v3183
        %v3346 = vpop.f32.mrf.mxu0
        %v3347 = vadd.f32 %v3288, %v3346
        %v3348 = vpop.f32.mrf.mxu0
        %v3349 = vadd.f32 %v3290, %v3348
        %3350 = vmatmul.bf16.gmra.mxu0 %v3186
        %v3351 = vpop.f32.mrf.mxu0
        %v3352 = vadd.f32 %v3293, %v3351
        %v3353 = vpop.f32.mrf.mxu0
        %v3354 = vadd.f32 %v3295, %v3353
        %3355 = vmatmul.bf16.gmra.mxu0 %v3189
        %v3356 = vpop.f32.mrf.mxu0
        %v3357 = vadd.f32 %v3298, %v3356
        %v3358 = vpop.f32.mrf.mxu0
        %v3359 = vadd.f32 %v3300, %v3358
        %3360 = vmatmul.bf16.gmra.mxu0 %v3192
        %v3361 = vpop.f32.mrf.mxu0
        %v3362 = vadd.f32 %v3303, %v3361
        %v3363 = vpop.f32.mrf.mxu0
        %v3364 = vadd.f32 %v3305, %v3363
        %3365 = vmatmul.bf16.gmra.mxu0 %v3195
        %v3366 = vpop.f32.mrf.mxu0
        %v3367 = vadd.f32 %v3308, %v3366
        %v3368 = vpop.f32.mrf.mxu0
        %v3369 = vadd.f32 %v3310, %v3368
        %3370 = vmatmul.bf16.gmra.mxu0 %v3198
        %v3371 = vpop.f32.mrf.mxu0
        %v3372 = vadd.f32 %v3313, %v3371
        %v3373 = vpop.f32.mrf.mxu0
        %v3374 = vadd.f32 %v3315, %v3373
        %3375 = vmatmul.bf16.gmra.mxu0 %v3201
        %v3376 = vpop.f32.mrf.mxu0
        %v3377 = vadd.f32 %v3318, %v3376
        %v3378 = vpop.f32.mrf.mxu0
        %v3379 = vadd.f32 %v3320, %v3378
        %3380 = vmatmul.bf16.gmra.mxu0 %v3204
        %v3381 = vpop.f32.mrf.mxu0
        %v3382 = vadd.f32 %v3323, %v3381
        %v3383 = vpop.f32.mrf.mxu0
        %v3384 = vadd.f32 %v3325, %v3383
        %3385 = vdwg.mxu0
        %v3386 = vlog2.pop %v3337
        %v3387 = vmul.f32 %v3386, 0.6931472
        %v3388 = vlog2.pop %v3339
        %v3389 = vmul.f32 %v3388, 0.6931472
        %v3390 = vlog2.pop %v3342
        %v3391 = vmul.f32 %v3390, 0.6931472
        %v3392 = vlog2.pop %v3344
        %v3393 = vmul.f32 %v3392, 0.6931472
        %v3394 = vlog2.pop %v3347
        %v3395 = vmul.f32 %v3394, 0.6931472
        %v3396 = vlog2.pop %v3349
        %v3397 = vmul.f32 %v3396, 0.6931472
        %v3398 = vlog2.pop %v3352
        %v3399 = vmul.f32 %v3398, 0.6931472
        %v3400 = vlog2.pop %v3354
        %v3401 = vmul.f32 %v3400, 0.6931472
        %v3402 = vlog2.pop %v3357
        %v3403 = vmul.f32 %v3402, 0.6931472
        %v3404 = vlog2.pop %v3359
        %v3405 = vmul.f32 %v3404, 0.6931472
        %v3406 = vlog2.pop %v3362
        %v3407 = vmul.f32 %v3406, 0.6931472
        %v3408 = vlog2.pop %v3364
        %v3409 = vmul.f32 %v3408, 0.6931472
        %v3410 = vlog2.pop %v3367
        %v3411 = vmul.f32 %v3410, 0.6931472
        %v3412 = vlog2.pop %v3369
        %v3413 = vmul.f32 %v3412, 0.6931472
        %v3414 = vlog2.pop %v3372
        %v3415 = vmul.f32 %v3414, 0.6931472
        %v3416 = vlog2.pop %v3374
        %v3417 = vmul.f32 %v3416, 0.6931472
        %v3418 = vlog2.pop %v3377
        %v3419 = vmul.f32 %v3418, 0.6931472
        %v3420 = vlog2.pop %v3379
        %v3421 = vmul.f32 %v3420, 0.6931472
        %v3422 = vlog2.pop %v3382
        %v3423 = vmul.f32 %v3422, 0.6931472
        %v3424 = vlog2.pop %v3384
        %v3425 = vmul.f32 %v3424, 0.6931472
        %v3426 = vld [vmem:[%s4] sm:$0xff]
        %v3427 = vld [vmem:[%s4 + $0x8] sm:$0xff]
        %v3428 = vld [vmem:[%s4 + $0x10] sm:$0x7f]
        %vm3429 = vcmask 187392
        %v3431 = vsel %vm3429, %v3387, 0
        %v3434 = vsel %vm3429, %v3389, 0
        %v3437 = vsel %vm3429, %v3391, 0
        %v3440 = vsel %vm3429, %v3393, 0
        %v3443 = vsel %vm3429, %v3395, 0
        %v3446 = vsel %vm3429, %v3397, 0
        %v3449 = vsel %vm3429, %v3399, 0
        %v3452 = vsel %vm3429, %v3401, 0
        %v3455 = vsel %vm3429, %v3403, 0
        %v3458 = vsel %vm3429, %v3405, 0
        %v3461 = vsel %vm3429, %v3407, 0
        %v3464 = vsel %vm3429, %v3409, 0
        %v3467 = vsel %vm3429, %v3411, 0
        %v3470 = vsel %vm3429, %v3413, 0
        %v3473 = vsel %vm3429, %v3415, 0
        %v3476 = vsel %vm3429, %v3417, 0
        %v3479 = vsel %vm3429, %v3419, 0
        %v3482 = vsel %vm3429, %v3421, 0
        %v3485 = vsel %vm3429, %v3423, 0
        %v3488 = vsel %vm3429, %v3425, 0
        %vm3490 = vcmask 1046528
        %v3492 = vsel %vm3490, %v3428, 0
        %3494 = vmatpush.msra.mxu0 0.0
        %3495 = vmatpush.msra.mxu0 0.0
        %3496 = vmatpush.msra.mxu0 0.0
        %3497 = vmatpush.msra.mxu0 0.0
        %3498 = vmatpush.msra.mxu0 0.0
        %3499 = vmatpush.msra.mxu0 0.0
        %3500 = vmatpush.msra.mxu0 0.0
        %3501 = vmatpush.msra.mxu0 0.0
        %3502 = vmatpush.msra.mxu0 0.0
        %3503 = vmatpush.msra.mxu0 0.0
        %3504 = vmatpush.msra.mxu0 0.0
        %3505 = vmatpush.msra.mxu0 0.0
        %3506 = vmatpush.msra.mxu0 0.0
        %3507 = vmatpush.msra.mxu0 %v3492
        %3508 = vmatpush.msra.mxu0 %v3427
        %3509 = vmatpush.msra.mxu0 %v3426
        %3510 = vmatmul.f32.gmra.mxu0 %v3431
        %v3511 = vpop.f32.mrf.mxu0
        %v3512 = vadd.f32 0.0, %v3511
        %3513 = vmatmul.f32.gmra.mxu0 %v3434
        %v3514 = vpop.f32.mrf.mxu0
        %v3515 = vadd.f32 0.0, %v3514
        %3516 = vmatmul.f32.gmra.mxu0 %v3437
        %v3517 = vpop.f32.mrf.mxu0
        %v3518 = vadd.f32 0.0, %v3517
        %3519 = vmatmul.f32.gmra.mxu0 %v3440
        %v3520 = vpop.f32.mrf.mxu0
        %v3521 = vadd.f32 0.0, %v3520
        %3522 = vmatmul.f32.gmra.mxu0 %v3443
        %v3523 = vpop.f32.mrf.mxu0
        %v3524 = vadd.f32 0.0, %v3523
        %3525 = vmatmul.f32.gmra.mxu0 %v3446
        %v3526 = vpop.f32.mrf.mxu0
        %v3527 = vadd.f32 0.0, %v3526
        %3528 = vmatmul.f32.gmra.mxu0 %v3449
        %v3529 = vpop.f32.mrf.mxu0
        %v3530 = vadd.f32 0.0, %v3529
        %3531 = vmatmul.f32.gmra.mxu0 %v3452
        %v3532 = vpop.f32.mrf.mxu0
        %v3533 = vadd.f32 0.0, %v3532
        %3534 = vmatmul.f32.gmra.mxu0 %v3455
        %v3535 = vpop.f32.mrf.mxu0
        %v3536 = vadd.f32 0.0, %v3535
        %3537 = vmatmul.f32.gmra.mxu0 %v3458
        %v3538 = vpop.f32.mrf.mxu0
        %v3539 = vadd.f32 0.0, %v3538
        %3540 = vmatmul.f32.gmra.mxu0 %v3461
        %v3541 = vpop.f32.mrf.mxu0
        %v3542 = vadd.f32 0.0, %v3541
        %3543 = vmatmul.f32.gmra.mxu0 %v3464
        %v3544 = vpop.f32.mrf.mxu0
        %v3545 = vadd.f32 0.0, %v3544
        %3546 = vmatmul.f32.gmra.mxu0 %v3467
        %v3547 = vpop.f32.mrf.mxu0
        %v3548 = vadd.f32 0.0, %v3547
        %3549 = vmatmul.f32.gmra.mxu0 %v3470
        %v3550 = vpop.f32.mrf.mxu0
        %v3551 = vadd.f32 0.0, %v3550
        %3552 = vmatmul.f32.gmra.mxu0 %v3473
        %v3553 = vpop.f32.mrf.mxu0
        %v3554 = vadd.f32 0.0, %v3553
        %3555 = vmatmul.f32.gmra.mxu0 %v3476
        %v3556 = vpop.f32.mrf.mxu0
        %v3557 = vadd.f32 0.0, %v3556
        %3558 = vmatmul.f32.gmra.mxu0 %v3479
        %v3559 = vpop.f32.mrf.mxu0
        %v3560 = vadd.f32 0.0, %v3559
        %3561 = vmatmul.f32.gmra.mxu0 %v3482
        %v3562 = vpop.f32.mrf.mxu0
        %v3563 = vadd.f32 0.0, %v3562
        %3564 = vmatmul.f32.gmra.mxu0 %v3485
        %v3565 = vpop.f32.mrf.mxu0
        %v3566 = vadd.f32 0.0, %v3565
        %3567 = vmatmul.f32.gmra.mxu0 %v3488
        %v3568 = vpop.f32.mrf.mxu0
        %v3569 = vadd.f32 0.0, %v3568
        %3570 = vdwg.mxu0
        %vm3571 = vcmask 105472
        %3572 = vst.msk [vmem:[%s259] sm:$0xff] %vm3571, %v3512
        %3573 = vst.msk [vmem:[%s259 + $0x8] sm:$0xff] %vm3571, %v3515
        %3574 = vst.msk [vmem:[%s259 + $0x10] sm:$0xff] %vm3571, %v3518
        %3575 = vst.msk [vmem:[%s259 + $0x18] sm:$0xff] %vm3571, %v3521
        %3576 = vst.msk [vmem:[%s259 + $0x20] sm:$0xff] %vm3571, %v3524
        %3577 = vst.msk [vmem:[%s259 + $0x28] sm:$0xff] %vm3571, %v3527
        %3578 = vst.msk [vmem:[%s259 + $0x30] sm:$0xff] %vm3571, %v3530
        %3579 = vst.msk [vmem:[%s259 + $0x38] sm:$0xff] %vm3571, %v3533
        %3580 = vst.msk [vmem:[%s259 + $0x40] sm:$0xff] %vm3571, %v3536
        %3581 = vst.msk [vmem:[%s259 + $0x48] sm:$0xff] %vm3571, %v3539
        %3582 = vst.msk [vmem:[%s259 + $0x50] sm:$0xff] %vm3571, %v3542
        %3583 = vst.msk [vmem:[%s259 + $0x58] sm:$0xff] %vm3571, %v3545
        %3584 = vst.msk [vmem:[%s259 + $0x60] sm:$0xff] %vm3571, %v3548
        %3585 = vst.msk [vmem:[%s259 + $0x68] sm:$0xff] %vm3571, %v3551
        %3586 = vst.msk [vmem:[%s259 + $0x70] sm:$0xff] %vm3571, %v3554
        %3587 = vst.msk [vmem:[%s259 + $0x78] sm:$0xff] %vm3571, %v3557
        %3588 = vst.msk [vmem:[%s259 + $0x80] sm:$0xff] %vm3571, %v3560
        %3589 = vst.msk [vmem:[%s259 + $0x88] sm:$0xff] %vm3571, %v3563
        %3590 = vst.msk [vmem:[%s259 + $0x90] sm:$0xff] %vm3571, %v3566
        %3591 = vst.msk [vmem:[%s259 + $0x98] sm:$0xff] %vm3571, %v3569
        %v3592 = vld [vmem:[%s285] sm:$0xff]
        %v3593 = vld [vmem:[%s285 + $0x8] sm:$0xff]
        %v3594 = vld [vmem:[%s285 + $0x10] sm:$0xff]
        %v3595 = vld [vmem:[%s285 + $0x18] sm:$0xff]
        %v3596 = vld [vmem:[%s285 + $0x20] sm:$0xff]
        %v3597 = vld [vmem:[%s285 + $0x28] sm:$0xff]
        %v3598 = vld [vmem:[%s285 + $0x30] sm:$0xff]
        %v3599 = vld [vmem:[%s285 + $0x38] sm:$0xff]
        %v3600 = vld [vmem:[%s285 + $0x40] sm:$0xff]
        %v3601 = vld [vmem:[%s285 + $0x48] sm:$0xff]
        %v3602 = vld [vmem:[%s285 + $0x50] sm:$0xff]
        %v3603 = vld [vmem:[%s285 + $0x58] sm:$0xff]
        %v3604 = vld [vmem:[%s285 + $0x60] sm:$0xff]
        %v3605 = vld [vmem:[%s285 + $0x68] sm:$0xff]
        %v3606 = vld [vmem:[%s285 + $0x70] sm:$0xff]
        %v3607 = vld [vmem:[%s285 + $0x78] sm:$0xff]
        %v3608 = vld [vmem:[%s285 + $0x80] sm:$0xff]
        %v3609 = vld [vmem:[%s285 + $0x88] sm:$0xff]
        %v3610 = vld [vmem:[%s285 + $0x90] sm:$0xff]
        %v3611 = vld [vmem:[%s285 + $0x98] sm:$0xff]
        %3612 = vst.msk [vmem:[%s259] sm:$0xff] %vm3175, %v3592
        %3613 = vst.msk [vmem:[%s259 + $0x8] sm:$0xff] %vm3175, %v3593
        %3614 = vst.msk [vmem:[%s259 + $0x10] sm:$0xff] %vm3175, %v3594
        %3615 = vst.msk [vmem:[%s259 + $0x18] sm:$0xff] %vm3175, %v3595
        %3616 = vst.msk [vmem:[%s259 + $0x20] sm:$0xff] %vm3175, %v3596
        %3617 = vst.msk [vmem:[%s259 + $0x28] sm:$0xff] %vm3175, %v3597
        %3618 = vst.msk [vmem:[%s259 + $0x30] sm:$0xff] %vm3175, %v3598
        %3619 = vst.msk [vmem:[%s259 + $0x38] sm:$0xff] %vm3175, %v3599
        %3620 = vst.msk [vmem:[%s259 + $0x40] sm:$0xff] %vm3175, %v3600
        %3621 = vst.msk [vmem:[%s259 + $0x48] sm:$0xff] %vm3175, %v3601
        %3622 = vst.msk [vmem:[%s259 + $0x50] sm:$0xff] %vm3175, %v3602
        %3623 = vst.msk [vmem:[%s259 + $0x58] sm:$0xff] %vm3175, %v3603
        %3624 = vst.msk [vmem:[%s259 + $0x60] sm:$0xff] %vm3175, %v3604
        %3625 = vst.msk [vmem:[%s259 + $0x68] sm:$0xff] %vm3175, %v3605
        %3626 = vst.msk [vmem:[%s259 + $0x70] sm:$0xff] %vm3175, %v3606
        %3627 = vst.msk [vmem:[%s259 + $0x78] sm:$0xff] %vm3175, %v3607
        %3628 = vst.msk [vmem:[%s259 + $0x80] sm:$0xff] %vm3175, %v3608
        %3629 = vst.msk [vmem:[%s259 + $0x88] sm:$0xff] %vm3175, %v3609
        %3630 = vst.msk [vmem:[%s259 + $0x90] sm:$0xff] %vm3175, %v3610
        %3631 = vst.msk [vmem:[%s259 + $0x98] sm:$0xff] %vm3175, %v3611
        %s3632 = sand.u32 %s139, 1
        %s3633 = sand.u32 %s139, 1
        %s3634 = smul.addr %s3633, 160
        %s3635 = scalar_lea.vmem [#allocation2], %s3634
        // Predicated region
        $region41: #{_forward.1} parent=39 // pred_check
          %p3636 = pneg %p149
        $region42: #{_forward.1} parent=39 // pred_check_branch
          %3638 = sbr.rel (%p3636) target = $region44
        $region43: #{_forward.1} parent=39 // pred_region
          %s3639 = smul.u32 20, %s16
          %s3640 = ssub.s32 37, %s3639
          %p3641 = scmp.lt.s32.totalorder %s3640, 20
          %s3642 = scalar_select %p3641, %s3640, 20
          %s3643 = smul.u32 8, %s3642
          %p3644 = scmp.ne.s32.totalorder 0, %s3643
          %s3645 = smul.addr %s3639, 8
          %s3646 = scalar_lea.vmem %s5, %s3645
          // Predicated region
          $region45: #{_forward.1} parent=43 // pred_check
            %p3647 = pneg %p3644
          $region46: #{_forward.1} parent=43 // pred_check_branch
            %3649 = sbr.rel (%p3647) target = $region48
          $region47: #{_forward.1} parent=43 // pred_region
            // Predicated region
            $region49: #{_forward.1} parent=47 // pred_check
              _
            $region50: #{_forward.1} parent=47 // pred_check_branch
              %3651 = sbr.rel (0) target = $region52
            $region51: #{_forward.1} parent=47 // pred_region
              // Predicated region
              $region71: #{_forward.1} parent=51 // pred_check
                _
              $region72: #{_forward.1} parent=51 // pred_check_branch
                %3740 = sbr.rel (0) target = $region74
              $region73: #{_forward.1} parent=51 // pred_region
                %s3741 = sdiv.u32.pop %s3642, 20
                %s3742 = srem.u32.pop %s3642, 20
                // While loop
                $region75: #{_forward.1} parent=73 // loop_pre_header
                  _
                $region76: #{_forward.1} parent=73 // loop_header
                  %s3744 = sphi 0, %s3746
                  %p3745 = scmp.ge.s32.totalorder %s3744, %s3741
                  %s3749 = sphi 0, %s3794
                  %s3750 = sphi %s3635, %s3797
                  %s3751 = sphi %s3646, %s3798
                $region77: #{_forward.1} parent=73 // loop_header_branch
                  %3748 = sbr.rel (%p3745) target = $region81
                $region78: #{_forward.1} parent=73 // loop_body
                  %v3752 = vld [vmem:[%s3750] sm:$0xff]
                  %3753 = vst [vmem:[%s3751] sm:$0xff] %v3752
                  %v3754 = vld [vmem:[%s3750 + $0x8] sm:$0xff]
                  %3755 = vst [vmem:[%s3751 + $0x8] sm:$0xff] %v3754
                  %v3756 = vld [vmem:[%s3750 + $0x10] sm:$0xff]
                  %3757 = vst [vmem:[%s3751 + $0x10] sm:$0xff] %v3756
                  %v3758 = vld [vmem:[%s3750 + $0x18] sm:$0xff]
                  %3759 = vst [vmem:[%s3751 + $0x18] sm:$0xff] %v3758
                  %v3760 = vld [vmem:[%s3750 + $0x20] sm:$0xff]
                  %3761 = vst [vmem:[%s3751 + $0x20] sm:$0xff] %v3760
                  %v3762 = vld [vmem:[%s3750 + $0x28] sm:$0xff]
                  %3763 = vst [vmem:[%s3751 + $0x28] sm:$0xff] %v3762
                  %v3764 = vld [vmem:[%s3750 + $0x30] sm:$0xff]
                  %3765 = vst [vmem:[%s3751 + $0x30] sm:$0xff] %v3764
                  %v3766 = vld [vmem:[%s3750 + $0x38] sm:$0xff]
                  %3767 = vst [vmem:[%s3751 + $0x38] sm:$0xff] %v3766
                  %v3768 = vld [vmem:[%s3750 + $0x40] sm:$0xff]
                  %3769 = vst [vmem:[%s3751 + $0x40] sm:$0xff] %v3768
                  %v3770 = vld [vmem:[%s3750 + $0x48] sm:$0xff]
                  %3771 = vst [vmem:[%s3751 + $0x48] sm:$0xff] %v3770
                  %v3772 = vld [vmem:[%s3750 + $0x50] sm:$0xff]
                  %3773 = vst [vmem:[%s3751 + $0x50] sm:$0xff] %v3772
                  %v3774 = vld [vmem:[%s3750 + $0x58] sm:$0xff]
                  %3775 = vst [vmem:[%s3751 + $0x58] sm:$0xff] %v3774
                  %v3776 = vld [vmem:[%s3750 + $0x60] sm:$0xff]
                  %3777 = vst [vmem:[%s3751 + $0x60] sm:$0xff] %v3776
                  %v3778 = vld [vmem:[%s3750 + $0x68] sm:$0xff]
                  %3779 = vst [vmem:[%s3751 + $0x68] sm:$0xff] %v3778
                  %v3780 = vld [vmem:[%s3750 + $0x70] sm:$0xff]
                  %3781 = vst [vmem:[%s3751 + $0x70] sm:$0xff] %v3780
                  %v3782 = vld [vmem:[%s3750 + $0x78] sm:$0xff]
                  %3783 = vst [vmem:[%s3751 + $0x78] sm:$0xff] %v3782
                  %v3784 = vld [vmem:[%s3750 + $0x80] sm:$0xff]
                  %3785 = vst [vmem:[%s3751 + $0x80] sm:$0xff] %v3784
                  %v3786 = vld [vmem:[%s3750 + $0x88] sm:$0xff]
                  %3787 = vst [vmem:[%s3751 + $0x88] sm:$0xff] %v3786
                  %v3788 = vld [vmem:[%s3750 + $0x90] sm:$0xff]
                  %3789 = vst [vmem:[%s3751 + $0x90] sm:$0xff] %v3788
                  %v3790 = vld [vmem:[%s3750 + $0x98] sm:$0xff]
                  %3791 = vst [vmem:[%s3751 + $0x98] sm:$0xff] %v3790
                  %s3792 = sadd.s32 1, %s3749
                  %p3793 = scmp.ge.s32.totalorder %s3792, %s3741
                  %s3794 = scalar_select %p3793, 0, %s3792
                  %s3795 = smul.u32 %s3794, 160
                  %s3796 = smul.u32 %s3794, 160
                  %s3797 = scalar_lea.vmem %s3635, %s3795 [#allocation2]
                  %s3798 = scalar_lea.vmem %s3646, %s3796
                $region79: #{_forward.1} parent=73 // loop_footer
                  %s3746 = sadd.s32 %s3744, 1
                $region80: #{_forward.1} parent=73 // loop_footer_branch
                  %3743 = sbr.rel target = $region76
                $region81: #{_forward.1} parent=73 // loop_exit
                  _
                %s3799 = sdiv.u32.pop %s3642, 20
                %s3800 = srem.u32.pop %s3642, 20
                %s3801 = smul.u32 %s3799, 20
                %s3802 = smul.u32 8, %s3801
                %s3803 = scalar_lea.vmem %s3635, %s3802 [#allocation2]
                %s3804 = smul.u32 8, %s3801
                %s3805 = scalar_lea.vmem %s3646, %s3804
                // While loop
                $region82: #{_forward.1} parent=73 // loop_pre_header
                  _
                $region83: #{_forward.1} parent=73 // loop_header
                  %s3807 = sphi 0, %s3809
                  %p3808 = scmp.ge.s32.totalorder %s3807, %s3800
                  %s3812 = sphi 0, %s3819
                  %s3813 = sphi %s3803, %s3822
                  %s3814 = sphi %s3805, %s3823
                $region84: #{_forward.1} parent=73 // loop_header_branch
                  %3811 = sbr.rel (%p3808) target = $region88
                $region85: #{_forward.1} parent=73 // loop_body
                  %v3815 = vld [vmem:[%s3813] sm:$0xff]
                  %3816 = vst [vmem:[%s3814] sm:$0xff] %v3815
                  %s3817 = sadd.s32 1, %s3812
                  %p3818 = scmp.ge.s32.totalorder %s3817, %s3800
                  %s3819 = scalar_select %p3818, 0, %s3817
                  %s3820 = smul.u32 %s3819, 8
                  %s3821 = smul.u32 %s3819, 8
                  %s3822 = scalar_lea.vmem %s3803, %s3820 [#allocation2]
                  %s3823 = scalar_lea.vmem %s3805, %s3821
                $region86: #{_forward.1} parent=73 // loop_footer
                  %s3809 = sadd.s32 %s3807, 1
                $region87: #{_forward.1} parent=73 // loop_footer_branch
                  %3806 = sbr.rel target = $region83
                $region88: #{_forward.1} parent=73 // loop_exit
                  _
              $region74: #{_forward.1} parent=51 // pred_fallthru
                _
              // Predicated region
              $region89: #{_forward.1} parent=51 // pred_check
                _
              $region90: #{_forward.1} parent=51 // pred_check_branch
                %3825 = sbr.rel target = $region92
              $region91: #{_forward.1} parent=51 // pred_region
                _
              $region92: #{_forward.1} parent=51 // pred_fallthru
                _
            $region52: #{_forward.1} parent=47 // pred_fallthru
              _
            // Predicated region
            $region53: #{_forward.1} parent=47 // pred_check
              _
            $region54: #{_forward.1} parent=47 // pred_check_branch
              %3653 = sbr.rel target = $region56
            $region55: #{_forward.1} parent=47 // pred_region
              %s3655 = ssub.s32 256, 1
              %s3656 = sdiv.u32.pop %s3642, 20
              %s3657 = srem.u32.pop %s3642, 20
              // While loop
              $region57: #{_forward.1} parent=55 // loop_pre_header
                _
              $region58: #{_forward.1} parent=55 // loop_header
                %s3659 = sphi 0, %s3661
                %p3660 = scmp.ge.s32.totalorder %s3659, %s3656
                %s3664 = sphi 0, %s3709
                %s3665 = sphi %s3635, %s3712
                %s3666 = sphi %s3646, %s3713
              $region59: #{_forward.1} parent=55 // loop_header_branch
                %3663 = sbr.rel (%p3660) target = $region63
              $region60: #{_forward.1} parent=55 // loop_body
                %v3667 = vld [vmem:[%s3665] sm:%s3655]
                %3668 = vst [vmem:[%s3666] sm:%s3655] %v3667
                %v3669 = vld [vmem:[%s3665 + $0x8] sm:%s3655]
                %3670 = vst [vmem:[%s3666 + $0x8] sm:%s3655] %v3669
                %v3671 = vld [vmem:[%s3665 + $0x10] sm:%s3655]
                %3672 = vst [vmem:[%s3666 + $0x10] sm:%s3655] %v3671
                %v3673 = vld [vmem:[%s3665 + $0x18] sm:%s3655]
                %3674 = vst [vmem:[%s3666 + $0x18] sm:%s3655] %v3673
                %v3675 = vld [vmem:[%s3665 + $0x20] sm:%s3655]
                %3676 = vst [vmem:[%s3666 + $0x20] sm:%s3655] %v3675
                %v3677 = vld [vmem:[%s3665 + $0x28] sm:%s3655]
                %3678 = vst [vmem:[%s3666 + $0x28] sm:%s3655] %v3677
                %v3679 = vld [vmem:[%s3665 + $0x30] sm:%s3655]
                %3680 = vst [vmem:[%s3666 + $0x30] sm:%s3655] %v3679
                %v3681 = vld [vmem:[%s3665 + $0x38] sm:%s3655]
                %3682 = vst [vmem:[%s3666 + $0x38] sm:%s3655] %v3681
                %v3683 = vld [vmem:[%s3665 + $0x40] sm:%s3655]
                %3684 = vst [vmem:[%s3666 + $0x40] sm:%s3655] %v3683
                %v3685 = vld [vmem:[%s3665 + $0x48] sm:%s3655]
                %3686 = vst [vmem:[%s3666 + $0x48] sm:%s3655] %v3685
                %v3687 = vld [vmem:[%s3665 + $0x50] sm:%s3655]
                %3688 = vst [vmem:[%s3666 + $0x50] sm:%s3655] %v3687
                %v3689 = vld [vmem:[%s3665 + $0x58] sm:%s3655]
                %3690 = vst [vmem:[%s3666 + $0x58] sm:%s3655] %v3689
                %v3691 = vld [vmem:[%s3665 + $0x60] sm:%s3655]
                %3692 = vst [vmem:[%s3666 + $0x60] sm:%s3655] %v3691
                %v3693 = vld [vmem:[%s3665 + $0x68] sm:%s3655]
                %3694 = vst [vmem:[%s3666 + $0x68] sm:%s3655] %v3693
                %v3695 = vld [vmem:[%s3665 + $0x70] sm:%s3655]
                %3696 = vst [vmem:[%s3666 + $0x70] sm:%s3655] %v3695
                %v3697 = vld [vmem:[%s3665 + $0x78] sm:%s3655]
                %3698 = vst [vmem:[%s3666 + $0x78] sm:%s3655] %v3697
                %v3699 = vld [vmem:[%s3665 + $0x80] sm:%s3655]
                %3700 = vst [vmem:[%s3666 + $0x80] sm:%s3655] %v3699
                %v3701 = vld [vmem:[%s3665 + $0x88] sm:%s3655]
                %3702 = vst [vmem:[%s3666 + $0x88] sm:%s3655] %v3701
                %v3703 = vld [vmem:[%s3665 + $0x90] sm:%s3655]
                %3704 = vst [vmem:[%s3666 + $0x90] sm:%s3655] %v3703
                %v3705 = vld [vmem:[%s3665 + $0x98] sm:%s3655]
                %3706 = vst [vmem:[%s3666 + $0x98] sm:%s3655] %v3705
                %s3707 = sadd.s32 1, %s3664
                %p3708 = scmp.ge.s32.totalorder %s3707, %s3656
                %s3709 = scalar_select %p3708, 0, %s3707
                %s3710 = smul.u32 %s3709, 160
                %s3711 = smul.u32 %s3709, 160
                %s3712 = scalar_lea.vmem %s3635, %s3710 [#allocation2]
                %s3713 = scalar_lea.vmem %s3646, %s3711
              $region61: #{_forward.1} parent=55 // loop_footer
                %s3661 = sadd.s32 %s3659, 1
              $region62: #{_forward.1} parent=55 // loop_footer_branch
                %3658 = sbr.rel target = $region58
              $region63: #{_forward.1} parent=55 // loop_exit
                _
              %s3714 = sdiv.u32.pop %s3642, 20
              %s3715 = srem.u32.pop %s3642, 20
              %s3716 = smul.u32 %s3714, 20
              %s3717 = smul.u32 8, %s3716
              %s3718 = scalar_lea.vmem %s3635, %s3717 [#allocation2]
              %s3719 = smul.u32 8, %s3716
              %s3720 = scalar_lea.vmem %s3646, %s3719
              // While loop
              $region64: #{_forward.1} parent=55 // loop_pre_header
                _
              $region65: #{_forward.1} parent=55 // loop_header
                %s3722 = sphi 0, %s3724
                %p3723 = scmp.ge.s32.totalorder %s3722, %s3715
                %s3727 = sphi 0, %s3734
                %s3728 = sphi %s3718, %s3737
                %s3729 = sphi %s3720, %s3738
              $region66: #{_forward.1} parent=55 // loop_header_branch
                %3726 = sbr.rel (%p3723) target = $region70
              $region67: #{_forward.1} parent=55 // loop_body
                %v3730 = vld [vmem:[%s3728] sm:%s3655]
                %3731 = vst [vmem:[%s3729] sm:%s3655] %v3730
                %s3732 = sadd.s32 1, %s3727
                %p3733 = scmp.ge.s32.totalorder %s3732, %s3715
                %s3734 = scalar_select %p3733, 0, %s3732
                %s3735 = smul.u32 %s3734, 8
                %s3736 = smul.u32 %s3734, 8
                %s3737 = scalar_lea.vmem %s3718, %s3735 [#allocation2]
                %s3738 = scalar_lea.vmem %s3720, %s3736
              $region68: #{_forward.1} parent=55 // loop_footer
                %s3724 = sadd.s32 %s3722, 1
              $region69: #{_forward.1} parent=55 // loop_footer_branch
                %3721 = sbr.rel target = $region65
              $region70: #{_forward.1} parent=55 // loop_exit
                _
            $region56: #{_forward.1} parent=47 // pred_fallthru
              _
          $region48: #{_forward.1} parent=43 // pred_fallthru
            _
          %3826 = vnop
        $region44: #{_forward.1} parent=39 // pred_fallthru
          _
      $region40: #{_forward.1} parent=5 // pred_fallthru
        _
      %p3827 = scmp.le.s32.totalorder 2, %s11
      // Predicated region
      $region93: #{_forward.1} parent=5 // pred_check
        %p3828 = pneg %p3827
      $region94: #{_forward.1} parent=5 // pred_check_branch
        %3830 = sbr.rel (%p3828) target = $region96
      $region95: #{_forward.1} parent=5 // pred_region
        %s3831 = ssub.s32 %s11, 2
        // Predicated region
        $region97: #{_forward.1} parent=95 // pred_check
          %p3832 = pneg %p155
        $region98: #{_forward.1} parent=95 // pred_check_branch
          %3834 = sbr.rel (%p3832) target = $region100
        $region99: #{_forward.1} parent=95 // pred_region
          %s3835 = sand.u32 %s140, 1
          %s3836 = sand.u32 %s140, 1
          %s3837 = smul.addr %s3836, 160
          %s3838 = scalar_lea.vmem [#allocation2], %s3837
        $region100: #{_forward.1} parent=95 // pred_fallthru
          _
      $region96: #{_forward.1} parent=5 // pred_fallthru
        _
    $region6: #{_forward.1} parent=1 // loop_footer
      %s15 = sadd.s32 1, %s11
    $region7: #{_forward.1} parent=1 // loop_footer_branch
      %10 = sbr.rel target = $region3
    $region8: #{_forward.1} parent=1 // loop_exit
      _

</llo_original>
